<compile_context>
chip_gen: v7x
topology: tpu7x:2x2x1
jax: 0.10.0
libtpu: 0.0.40
codegen_flags: <defaults>
</compile_context>

<pallas_src>
import functools
import math

import jax
import jax.numpy as jnp
from jax.experimental import pallas as pl
from jax.experimental.pallas import tpu as pltpu


CONFIG = {
    "vocab_size": 128,
    "hidden_size": 128,
    "num_heads": 4,
    "num_layers": 2,
    "intermediate_size": 256,
    "max_length": 16,
    "class_num": 9,
    "use_crf": False,
}

CLS_PAD = 128   # lane-dense padded classifier width (class_num=9 -> 128)
LN_EPS = 1e-12


# ----------------------------------------------------------------------------- kernel

def _layernorm(y, g, b, eps):
    mu = jnp.mean(y, axis=-1, keepdims=True)
    var = jnp.mean(jnp.square(y - mu), axis=-1, keepdims=True)
    return (y - mu) * jax.lax.rsqrt(var + eps) * g + b


def _fused_bert_kernel(
    emb_ref, emb_g_ref, emb_b_ref,
    wqkv_ref, bqkv_ref, wo_ref, bo_ref, ln1_g_ref, ln1_b_ref,
    w1_ref, b1_ref, w2_ref, b2_ref, ln2_g_ref, ln2_b_ref,
    cls_w_ref, cls_b_ref,
    out_ref,
    x_scr,
    *, B, S, H, nH, eps, scale):
    layer = pl.program_id(0)
    Dh = H // nH
    bf16 = jnp.bfloat16

    # Grid step 0: embedding LayerNorm (no fake zeros residual); result stays resident in VMEM.
    @pl.when(layer == 0)
    def _():
        x_scr[...] = _layernorm(emb_ref[...], emb_g_ref[...], emb_b_ref[...], eps)

    x = x_scr[...]                          # (M, H) f32, carried across layers in VMEM
    xb = x.astype(bf16)

    # Fused Q/K/V projection: one (M,H) @ (H,3H) bf16 MXU matmul, f32 accumulate.
    qkv = jnp.dot(xb, wqkv_ref[...], preferred_element_type=jnp.float32) + bqkv_ref[...]
    q = qkv[:, :H]
    k = qkv[:, H:2 * H]
    v = qkv[:, 2 * H:]

    # Scaled dot-product attention, fully unrolled over (batch, head); output reassembled
    # lane-dense as (M, H) directly (no split/merge-head transposes, no lane-sparse stores).
    batch_rows = []
    for b in range(B):
        r0 = b * S
        qb = q[r0:r0 + S, :]
        kb = k[r0:r0 + S, :]
        vb = v[r0:r0 + S, :]
        head_cols = []
        for h in range(nH):
            c0 = h * Dh
            qh = qb[:, c0:c0 + Dh].astype(bf16)
            kh = kb[:, c0:c0 + Dh].astype(bf16)
            vh = vb[:, c0:c0 + Dh].astype(bf16)
            s = jax.lax.dot_general(qh, kh, (((1,), (1,)), ((), ())),
                                    preferred_element_type=jnp.float32) * scale
            m = jnp.max(s, axis=-1, keepdims=True)
            p = jnp.exp(s - m)
            p = p * pl.reciprocal(jnp.sum(p, axis=-1, keepdims=True), approx=True)
            head_cols.append(jnp.dot(p.astype(bf16), vh,
                                     preferred_element_type=jnp.float32))
        batch_rows.append(jnp.concatenate(head_cols, axis=-1))      # (S, H)
    attn = jnp.concatenate(batch_rows, axis=0)                      # (M, H) f32

    # Attention output projection + residual + LayerNorm.
    attn_out = jnp.dot(attn.astype(bf16), wo_ref[...],
                       preferred_element_type=jnp.float32) + bo_ref[...]
    x1 = _layernorm(attn_out + x, ln1_g_ref[...], ln1_b_ref[...], eps)

    # Feed-forward (GELU) + residual + LayerNorm.
    # TODO(synk): torch nn.GELU / HF BERT default to the exact erf GELU; tanh approximation here.
    ff = jnp.dot(x1.astype(bf16), w1_ref[...], preferred_element_type=jnp.float32) + b1_ref[...]
    ff = jax.nn.gelu(ff, approximate=True)
    ff = jnp.dot(ff.astype(bf16), w2_ref[...], preferred_element_type=jnp.float32) + b2_ref[...]
    x2 = _layernorm(ff + x1, ln2_g_ref[...], ln2_b_ref[...], eps)

    x_scr[...] = x2

    # Final grid step: classifier, lane-padded to 128 columns -> unmasked full-vreg stores.
    @pl.when(layer == pl.num_programs(0) - 1)
    def _():
        logits = jnp.dot(x2.astype(bf16), cls_w_ref[...],
                         preferred_element_type=jnp.float32) + cls_b_ref[...]
        out_ref[...] = logits.astype(out_ref.dtype)


# ----------------------------------------------------------------------------- params

def init_params(key, cfg):
    H, I = cfg["hidden_size"], cfg["intermediate_size"]
    V, P, C, L = cfg["vocab_size"], cfg["max_length"], cfg["class_num"], cfg["num_layers"]

    def nrm(k, shape):
        return jax.random.normal(k, shape, jnp.float32) * 0.02

    keys = iter(jax.random.split(key, 16 + 8 * L))

    wq = [nrm(next(keys), (H, H)) for _ in range(L)]
    wk = [nrm(next(keys), (H, H)) for _ in range(L)]
    wv = [nrm(next(keys), (H, H)) for _ in range(L)]
    wo = [nrm(next(keys), (H, H)) for _ in range(L)]
    w1 = [nrm(next(keys), (H, I)) for _ in range(L)]
    w2 = [nrm(next(keys), (I, H)) for _ in range(L)]
    cls_w = nrm(next(keys), (H, C))

    params = {
        "word_emb": nrm(next(keys), (V, H)),
        "pos_emb": nrm(next(keys), (P, H)),
        "type_emb": nrm(next(keys), (2, H)),
        "emb_ln_g": jnp.ones((1, H), jnp.float32),
        "emb_ln_b": jnp.zeros((1, H), jnp.float32),
        # Per-layer weights stacked on a leading L axis; matmul operands stored in bf16.
        "wqkv": jnp.stack([jnp.concatenate([wq[i], wk[i], wv[i]], axis=1)
                           for i in range(L)]).astype(jnp.bfloat16),
        "bqkv": jnp.zeros((L, 1, 3 * H), jnp.float32),
        "wo": jnp.stack(wo).astype(jnp.bfloat16),
        "bo": jnp.zeros((L, 1, H), jnp.float32),
        "ln1_g": jnp.ones((L, 1, H), jnp.float32),
        "ln1_b": jnp.zeros((L, 1, H), jnp.float32),
        "w1": jnp.stack(w1).astype(jnp.bfloat16),
        "b1": jnp.zeros((L, 1, I), jnp.float32),
        "w2": jnp.stack(w2).astype(jnp.bfloat16),
        "b2": jnp.zeros((L, 1, H), jnp.float32),
        "ln2_g": jnp.ones((L, 1, H), jnp.float32),
        "ln2_b": jnp.zeros((L, 1, H), jnp.float32),
        # Classifier padded to a lane-dense 128 columns; real logits are [:, :C].
        "cls_w_pad": jnp.pad(cls_w, ((0, 0), (0, CLS_PAD - C))).astype(jnp.bfloat16),
        "cls_b_pad": jnp.zeros((1, CLS_PAD), jnp.float32),
    }
    return params


# ----------------------------------------------------------------------------- forward

def torch_model_forward(params, token_ids, cfg):
    """Equivalent of TorchModel.forward(x) with target=None, use_crf=False (logits output)."""
    B, S = token_ids.shape
    H = cfg["hidden_size"]
    nH = cfg["num_heads"]
    I = cfg["intermediate_size"]
    C = cfg["class_num"]
    L = cfg["num_layers"]
    M = B * S

    # Embedding table gathers stay in XLA glue; everything else runs in one fused kernel.
    emb = (params["word_emb"][token_ids]
           + params["pos_emb"][jnp.arange(S)][None, :, :]
           + params["type_emb"][0][None, None, :]).reshape(M, H).astype(jnp.float32)

    kernel = functools.partial(
        _fused_bert_kernel, B=B, S=S, H=H, nH=nH, eps=LN_EPS,
        scale=1.0 / math.sqrt(H // nH))

    def const_spec(shape):
        return pl.BlockSpec(shape, lambda l: (0, 0))

    def per_layer(shape):
        return pl.BlockSpec((None,) + shape, lambda l: (l, 0, 0))

    logits_pad = pl.pallas_call(
        kernel,
        out_shape=jax.ShapeDtypeStruct((M, CLS_PAD), jnp.float32),
        grid=(L,),
        in_specs=[
            const_spec((M, H)),         # emb
            const_spec((1, H)),         # emb_ln_g
            const_spec((1, H)),         # emb_ln_b
            per_layer((H, 3 * H)),      # wqkv
            per_layer((1, 3 * H)),      # bqkv
            per_layer((H, H)),          # wo
            per_layer((1, H)),          # bo
            per_layer((1, H)),          # ln1_g
            per_layer((1, H)),          # ln1_b
            per_layer((H, I)),          # w1
            per_layer((1, I)),          # b1
            per_layer((I, H)),          # w2
            per_layer((1, H)),          # b2
            per_layer((1, H)),          # ln2_g
            per_layer((1, H)),          # ln2_b
            const_spec((H, CLS_PAD)),   # cls_w (lane-padded)
            const_spec((1, CLS_PAD)),   # cls_b (lane-padded)
        ],
        out_specs=const_spec((M, CLS_PAD)),
        scratch_shapes=[pltpu.VMEM((M, H), jnp.float32)],
        compiler_params=pltpu.CompilerParams(
            # the layer axis carries the activation in VMEM scratch -> must be sequential.
            dimension_semantics=("arbitrary",)),
    )(emb, params["emb_ln_g"], params["emb_ln_b"],
      params["wqkv"], params["bqkv"], params["wo"], params["bo"],
      params["ln1_g"], params["ln1_b"], params["w1"], params["b1"],
      params["w2"], params["b2"], params["ln2_g"], params["ln2_b"],
      params["cls_w_pad"], params["cls_b_pad"])

    return logits_pad[:, :C].reshape(B, S, C)


# ----------------------------------------------------------------------------- main

if __name__ == "__main__":
    key = jax.random.PRNGKey(0)
    pkey, dkey = jax.random.split(key)

    params = init_params(pkey, CONFIG)

    B, S = 2, 8
    token_ids = jax.random.randint(dkey, (B, S), 0, CONFIG["vocab_size"], dtype=jnp.int32)

    fwd = jax.jit(functools.partial(torch_model_forward, cfg=CONFIG))
    predict = fwd(params, token_ids)
    jax.block_until_ready(predict)

    assert predict.shape == (B, S, CONFIG["class_num"])
    assert predict.dtype == jnp.float32
    assert bool(jnp.all(jnp.isfinite(predict)))
    print("KERNEL_OK")
</pallas_src>

<mosaic_0001>
module attributes {stable_mosaic.version = 11 : i64} {
  func.func @_fused_bert_kernel(%arg0: i32, %arg1: memref<16x128xf32, #tpu.memory_space<vmem>>, %arg2: memref<1x128xf32, #tpu.memory_space<vmem>>, %arg3: memref<1x128xf32, #tpu.memory_space<vmem>>, %arg4: memref<1x128x384xbf16, #tpu.memory_space<vmem>>, %arg5: memref<1x1x384xf32, #tpu.memory_space<vmem>>, %arg6: memref<1x128x128xbf16, #tpu.memory_space<vmem>>, %arg7: memref<1x1x128xf32, #tpu.memory_space<vmem>>, %arg8: memref<1x1x128xf32, #tpu.memory_space<vmem>>, %arg9: memref<1x1x128xf32, #tpu.memory_space<vmem>>, %arg10: memref<1x128x256xbf16, #tpu.memory_space<vmem>>, %arg11: memref<1x1x256xf32, #tpu.memory_space<vmem>>, %arg12: memref<1x256x128xbf16, #tpu.memory_space<vmem>>, %arg13: memref<1x1x128xf32, #tpu.memory_space<vmem>>, %arg14: memref<1x1x128xf32, #tpu.memory_space<vmem>>, %arg15: memref<1x1x128xf32, #tpu.memory_space<vmem>>, %arg16: memref<128x128xbf16, #tpu.memory_space<vmem>>, %arg17: memref<1x128xf32, #tpu.memory_space<vmem>>, %arg18: memref<16x128xf32, #tpu.memory_space<vmem>>, %arg19: memref<16x128xf32, #tpu.memory_space<vmem>>) attributes {dimension_semantics = [#tpu.dimension_semantics<arbitrary>], iteration_bounds = array<i64: 2>, scalar_prefetch = 0 : i64, scratch_operands = 1 : i64, tpu.core_type = #tpu.core_type<tc>, window_params = [{pipeline_mode = #tpu.pipeline_mode<synchronous>, transform_indices = @transform_0, window_bounds = array<i64: 16, 128>}, {pipeline_mode = #tpu.pipeline_mode<synchronous>, transform_indices = @transform_1, window_bounds = array<i64: 1, 128>}, {pipeline_mode = #tpu.pipeline_mode<synchronous>, transform_indices = @transform_2, window_bounds = array<i64: 1, 128>}, {transform_indices = @transform_3, window_bounds = array<i64: 1, 128, 384>}, {transform_indices = @transform_4, window_bounds = array<i64: 1, 1, 384>}, {transform_indices = @transform_5, window_bounds = array<i64: 1, 128, 128>}, {transform_indices = @transform_6, window_bounds = array<i64: 1, 1, 128>}, {transform_indices = @transform_7, window_bounds = array<i64: 1, 1, 128>}, {transform_indices = @transform_8, window_bounds = array<i64: 1, 1, 128>}, {transform_indices = @transform_9, window_bounds = array<i64: 1, 128, 256>}, {transform_indices = @transform_10, window_bounds = array<i64: 1, 1, 256>}, {transform_indices = @transform_11, window_bounds = array<i64: 1, 256, 128>}, {transform_indices = @transform_12, window_bounds = array<i64: 1, 1, 128>}, {transform_indices = @transform_13, window_bounds = array<i64: 1, 1, 128>}, {transform_indices = @transform_14, window_bounds = array<i64: 1, 1, 128>}, {pipeline_mode = #tpu.pipeline_mode<synchronous>, transform_indices = @transform_15, window_bounds = array<i64: 128, 128>}, {pipeline_mode = #tpu.pipeline_mode<synchronous>, transform_indices = @transform_16, window_bounds = array<i64: 1, 128>}, {pipeline_mode = #tpu.pipeline_mode<synchronous>, transform_indices = @transform_17, window_bounds = array<i64: 16, 128>}]} {
    %c0_i32 = arith.constant 0 : i32
    %0 = arith.cmpi eq, %arg0, %c0_i32 : i32
    %1 = arith.extui %0 : i1 to i32
    %c0_i32_0 = arith.constant 0 : i32
    %2 = arith.cmpi ne, %1, %c0_i32_0 : i32
    scf.if %2 {
      %c0_98 = arith.constant 0 : index
      %c0_99 = arith.constant 0 : index
      %287 = vector.load %arg1[%c0_98, %c0_99] : memref<16x128xf32, #tpu.memory_space<vmem>>, vector<16x128xf32>
      %c0_100 = arith.constant 0 : index
      %c0_101 = arith.constant 0 : index
      %288 = vector.load %arg2[%c0_100, %c0_101] : memref<1x128xf32, #tpu.memory_space<vmem>>, vector<1x128xf32>
      %c0_102 = arith.constant 0 : index
      %c0_103 = arith.constant 0 : index
      %289 = vector.load %arg3[%c0_102, %c0_103] : memref<1x128xf32, #tpu.memory_space<vmem>>, vector<1x128xf32>
      %cst_104 = arith.constant dense<0.000000e+00> : vector<16xf32>
      %290 = vector.multi_reduction <add>, %287, %cst_104 [1] : vector<16x128xf32> to vector<16xf32>
      %291 = vector.shape_cast %290 : vector<16xf32> to vector<16x1xf32>
      %cst_105 = arith.constant 1.280000e+02 : f32
      %292 = vector.broadcast %cst_105 : f32 to vector<16x1xf32>
      %293 = arith.divf %291, %292 : vector<16x1xf32>
      %294 = vector.broadcast %293 : vector<16x1xf32> to vector<16x128xf32>
      %295 = arith.subf %287, %294 : vector<16x128xf32>
      %296 = arith.mulf %295, %295 : vector<16x128xf32>
      %cst_106 = arith.constant dense<0.000000e+00> : vector<16xf32>
      %297 = vector.multi_reduction <add>, %296, %cst_106 [1] : vector<16x128xf32> to vector<16xf32>
      %298 = vector.shape_cast %297 : vector<16xf32> to vector<16x1xf32>
      %cst_107 = arith.constant 1.280000e+02 : f32
      %299 = vector.broadcast %cst_107 : f32 to vector<16x1xf32>
      %300 = arith.divf %298, %299 : vector<16x1xf32>
      %301 = vector.broadcast %293 : vector<16x1xf32> to vector<16x128xf32>
      %302 = arith.subf %287, %301 : vector<16x128xf32>
      %cst_108 = arith.constant 9.99999996E-13 : f32
      %303 = vector.broadcast %cst_108 : f32 to vector<16x1xf32>
      %304 = arith.addf %300, %303 : vector<16x1xf32>
      %305 = math.rsqrt %304 : vector<16x1xf32>
      %306 = vector.broadcast %305 : vector<16x1xf32> to vector<16x128xf32>
      %307 = arith.mulf %302, %306 : vector<16x128xf32>
      %308 = vector.broadcast %288 : vector<1x128xf32> to vector<16x128xf32>
      %309 = arith.mulf %307, %308 : vector<16x128xf32>
      %310 = vector.broadcast %289 : vector<1x128xf32> to vector<16x128xf32>
      %311 = arith.addf %309, %310 : vector<16x128xf32>
      %c0_109 = arith.constant 0 : index
      %c0_110 = arith.constant 0 : index
      %312 = vector.load %arg19[%c0_109, %c0_110] : memref<16x128xf32, #tpu.memory_space<vmem>>, vector<16x128xf32>
      tpu.vector_store %arg19[%c0_109, %c0_110], %311 {strides = array<i32>} : memref<16x128xf32, #tpu.memory_space<vmem>>, vector<16x128xf32>,
    } else {
    }
    %c0 = arith.constant 0 : index
    %c0_1 = arith.constant 0 : index
    %3 = vector.load %arg19[%c0, %c0_1] : memref<16x128xf32, #tpu.memory_space<vmem>>, vector<16x128xf32>
    %4 = arith.truncf %3 : vector<16x128xf32> to vector<16x128xbf16>
    %c0_2 = arith.constant 0 : index
    %c0_3 = arith.constant 0 : index
    %c0_4 = arith.constant 0 : index
    %5 = vector.load %arg4[%c0_2, %c0_3, %c0_4] : memref<1x128x384xbf16, #tpu.memory_space<vmem>>, vector<1x128x384xbf16>
    %6 = vector.shape_cast %5 : vector<1x128x384xbf16> to vector<128x384xbf16>
    %cst = arith.constant dense<0.000000e+00> : vector<16x384xf32>
    %7 = tpu.matmul %4, %6, %cst {dimension_numbers = #tpu.dot_dimension_numbers<[1], [0], [0], [1], [0, 0, 1, 1], [], []>} : vector<16x128xbf16>, vector<128x384xbf16>, vector<16x384xf32> -> vector<16x384xf32>
    %c0_5 = arith.constant 0 : index
    %c0_6 = arith.constant 0 : index
    %c0_7 = arith.constant 0 : index
    %8 = vector.load %arg5[%c0_5, %c0_6, %c0_7] : memref<1x1x384xf32, #tpu.memory_space<vmem>>, vector<1x1x384xf32>
    %9 = vector.shape_cast %8 : vector<1x1x384xf32> to vector<1x384xf32>
    %10 = vector.broadcast %9 : vector<1x384xf32> to vector<16x384xf32>
    %11 = arith.addf %7, %10 : vector<16x384xf32>
    %12 = vector.extract_strided_slice %11 {offsets = [0, 0], sizes = [16, 128], strides = [1, 1]} : vector<16x384xf32> to vector<16x128xf32>
    %13 = vector.extract_strided_slice %11 {offsets = [0, 128], sizes = [16, 128], strides = [1, 1]} : vector<16x384xf32> to vector<16x128xf32>
    %14 = vector.extract_strided_slice %11 {offsets = [0, 256], sizes = [16, 128], strides = [1, 1]} : vector<16x384xf32> to vector<16x128xf32>
    %15 = vector.extract_strided_slice %12 {offsets = [0, 0], sizes = [8, 128], strides = [1, 1]} : vector<16x128xf32> to vector<8x128xf32>
    %16 = vector.extract_strided_slice %13 {offsets = [0, 0], sizes = [8, 128], strides = [1, 1]} : vector<16x128xf32> to vector<8x128xf32>
    %17 = vector.extract_strided_slice %14 {offsets = [0, 0], sizes = [8, 128], strides = [1, 1]} : vector<16x128xf32> to vector<8x128xf32>
    %18 = vector.extract_strided_slice %15 {offsets = [0, 0], sizes = [8, 32], strides = [1, 1]} : vector<8x128xf32> to vector<8x32xf32>
    %19 = arith.truncf %18 : vector<8x32xf32> to vector<8x32xbf16>
    %20 = vector.extract_strided_slice %16 {offsets = [0, 0], sizes = [8, 32], strides = [1, 1]} : vector<8x128xf32> to vector<8x32xf32>
    %21 = arith.truncf %20 : vector<8x32xf32> to vector<8x32xbf16>
    %22 = vector.extract_strided_slice %17 {offsets = [0, 0], sizes = [8, 32], strides = [1, 1]} : vector<8x128xf32> to vector<8x32xf32>
    %23 = arith.truncf %22 : vector<8x32xf32> to vector<8x32xbf16>
    %cst_8 = arith.constant dense<0.000000e+00> : vector<8x8xf32>
    %24 = tpu.matmul %19, %21, %cst_8 {dimension_numbers = #tpu.dot_dimension_numbers<[1], [1], [0], [0], [0, 0, 1, 0], [], []>} : vector<8x32xbf16>, vector<8x32xbf16>, vector<8x8xf32> -> vector<8x8xf32>
    %cst_9 = arith.constant 0.176776692 : f32
    %25 = vector.broadcast %cst_9 : f32 to vector<8x8xf32>
    %26 = arith.mulf %24, %25 : vector<8x8xf32>
    %cst_10 = arith.constant dense<0xFF800000> : vector<8xf32>
    %27 = vector.multi_reduction <maximumf>, %26, %cst_10 [1] : vector<8x8xf32> to vector<8xf32>
    %28 = vector.shape_cast %27 : vector<8xf32> to vector<8x1xf32>
    %29 = vector.broadcast %28 : vector<8x1xf32> to vector<8x8xf32>
    %30 = arith.subf %26, %29 : vector<8x8xf32>
    %31 = math.exp %30 : vector<8x8xf32>
    %cst_11 = arith.constant dense<0.000000e+00> : vector<8xf32>
    %32 = vector.multi_reduction <add>, %31, %cst_11 [1] : vector<8x8xf32> to vector<8xf32>
    %33 = vector.shape_cast %32 : vector<8xf32> to vector<8x1xf32>
    %34 = tpu.reciprocal %33 {approx = true} : vector<8x1xf32> -> vector<8x1xf32>
    %35 = vector.broadcast %34 : vector<8x1xf32> to vector<8x8xf32>
    %36 = arith.mulf %31, %35 : vector<8x8xf32>
    %37 = arith.truncf %36 : vector<8x8xf32> to vector<8x8xbf16>
    %cst_12 = arith.constant dense<0.000000e+00> : vector<8x32xf32>
    %38 = tpu.matmul %37, %23, %cst_12 {dimension_numbers = #tpu.dot_dimension_numbers<[1], [0], [0], [1], [0, 0, 1, 1], [], []>} : vector<8x8xbf16>, vector<8x32xbf16>, vector<8x32xf32> -> vector<8x32xf32>
    %39 = vector.extract_strided_slice %15 {offsets = [0, 32], sizes = [8, 32], strides = [1, 1]} : vector<8x128xf32> to vector<8x32xf32>
    %40 = arith.truncf %39 : vector<8x32xf32> to vector<8x32xbf16>
    %41 = vector.extract_strided_slice %16 {offsets = [0, 32], sizes = [8, 32], strides = [1, 1]} : vector<8x128xf32> to vector<8x32xf32>
    %42 = arith.truncf %41 : vector<8x32xf32> to vector<8x32xbf16>
    %43 = vector.extract_strided_slice %17 {offsets = [0, 32], sizes = [8, 32], strides = [1, 1]} : vector<8x128xf32> to vector<8x32xf32>
    %44 = arith.truncf %43 : vector<8x32xf32> to vector<8x32xbf16>
    %cst_13 = arith.constant dense<0.000000e+00> : vector<8x8xf32>
    %45 = tpu.matmul %40, %42, %cst_13 {dimension_numbers = #tpu.dot_dimension_numbers<[1], [1], [0], [0], [0, 0, 1, 0], [], []>} : vector<8x32xbf16>, vector<8x32xbf16>, vector<8x8xf32> -> vector<8x8xf32>
    %cst_14 = arith.constant 0.176776692 : f32
    %46 = vector.broadcast %cst_14 : f32 to vector<8x8xf32>
    %47 = arith.mulf %45, %46 : vector<8x8xf32>
    %cst_15 = arith.constant dense<0xFF800000> : vector<8xf32>
    %48 = vector.multi_reduction <maximumf>, %47, %cst_15 [1] : vector<8x8xf32> to vector<8xf32>
    %49 = vector.shape_cast %48 : vector<8xf32> to vector<8x1xf32>
    %50 = vector.broadcast %49 : vector<8x1xf32> to vector<8x8xf32>
    %51 = arith.subf %47, %50 : vector<8x8xf32>
    %52 = math.exp %51 : vector<8x8xf32>
    %cst_16 = arith.constant dense<0.000000e+00> : vector<8xf32>
    %53 = vector.multi_reduction <add>, %52, %cst_16 [1] : vector<8x8xf32> to vector<8xf32>
    %54 = vector.shape_cast %53 : vector<8xf32> to vector<8x1xf32>
    %55 = tpu.reciprocal %54 {approx = true} : vector<8x1xf32> -> vector<8x1xf32>
    %56 = vector.broadcast %55 : vector<8x1xf32> to vector<8x8xf32>
    %57 = arith.mulf %52, %56 : vector<8x8xf32>
    %58 = arith.truncf %57 : vector<8x8xf32> to vector<8x8xbf16>
    %cst_17 = arith.constant dense<0.000000e+00> : vector<8x32xf32>
    %59 = tpu.matmul %58, %44, %cst_17 {dimension_numbers = #tpu.dot_dimension_numbers<[1], [0], [0], [1], [0, 0, 1, 1], [], []>} : vector<8x8xbf16>, vector<8x32xbf16>, vector<8x32xf32> -> vector<8x32xf32>
    %60 = vector.extract_strided_slice %15 {offsets = [0, 64], sizes = [8, 32], strides = [1, 1]} : vector<8x128xf32> to vector<8x32xf32>
    %61 = arith.truncf %60 : vector<8x32xf32> to vector<8x32xbf16>
    %62 = vector.extract_strided_slice %16 {offsets = [0, 64], sizes = [8, 32], strides = [1, 1]} : vector<8x128xf32> to vector<8x32xf32>
    %63 = arith.truncf %62 : vector<8x32xf32> to vector<8x32xbf16>
    %64 = vector.extract_strided_slice %17 {offsets = [0, 64], sizes = [8, 32], strides = [1, 1]} : vector<8x128xf32> to vector<8x32xf32>
    %65 = arith.truncf %64 : vector<8x32xf32> to vector<8x32xbf16>
    %cst_18 = arith.constant dense<0.000000e+00> : vector<8x8xf32>
    %66 = tpu.matmul %61, %63, %cst_18 {dimension_numbers = #tpu.dot_dimension_numbers<[1], [1], [0], [0], [0, 0, 1, 0], [], []>} : vector<8x32xbf16>, vector<8x32xbf16>, vector<8x8xf32> -> vector<8x8xf32>
    %cst_19 = arith.constant 0.176776692 : f32
    %67 = vector.broadcast %cst_19 : f32 to vector<8x8xf32>
    %68 = arith.mulf %66, %67 : vector<8x8xf32>
    %cst_20 = arith.constant dense<0xFF800000> : vector<8xf32>
    %69 = vector.multi_reduction <maximumf>, %68, %cst_20 [1] : vector<8x8xf32> to vector<8xf32>
    %70 = vector.shape_cast %69 : vector<8xf32> to vector<8x1xf32>
    %71 = vector.broadcast %70 : vector<8x1xf32> to vector<8x8xf32>
    %72 = arith.subf %68, %71 : vector<8x8xf32>
    %73 = math.exp %72 : vector<8x8xf32>
    %cst_21 = arith.constant dense<0.000000e+00> : vector<8xf32>
    %74 = vector.multi_reduction <add>, %73, %cst_21 [1] : vector<8x8xf32> to vector<8xf32>
    %75 = vector.shape_cast %74 : vector<8xf32> to vector<8x1xf32>
    %76 = tpu.reciprocal %75 {approx = true} : vector<8x1xf32> -> vector<8x1xf32>
    %77 = vector.broadcast %76 : vector<8x1xf32> to vector<8x8xf32>
    %78 = arith.mulf %73, %77 : vector<8x8xf32>
    %79 = arith.truncf %78 : vector<8x8xf32> to vector<8x8xbf16>
    %cst_22 = arith.constant dense<0.000000e+00> : vector<8x32xf32>
    %80 = tpu.matmul %79, %65, %cst_22 {dimension_numbers = #tpu.dot_dimension_numbers<[1], [0], [0], [1], [0, 0, 1, 1], [], []>} : vector<8x8xbf16>, vector<8x32xbf16>, vector<8x32xf32> -> vector<8x32xf32>
    %81 = vector.extract_strided_slice %15 {offsets = [0, 96], sizes = [8, 32], strides = [1, 1]} : vector<8x128xf32> to vector<8x32xf32>
    %82 = arith.truncf %81 : vector<8x32xf32> to vector<8x32xbf16>
    %83 = vector.extract_strided_slice %16 {offsets = [0, 96], sizes = [8, 32], strides = [1, 1]} : vector<8x128xf32> to vector<8x32xf32>
    %84 = arith.truncf %83 : vector<8x32xf32> to vector<8x32xbf16>
    %85 = vector.extract_strided_slice %17 {offsets = [0, 96], sizes = [8, 32], strides = [1, 1]} : vector<8x128xf32> to vector<8x32xf32>
    %86 = arith.truncf %85 : vector<8x32xf32> to vector<8x32xbf16>
    %cst_23 = arith.constant dense<0.000000e+00> : vector<8x8xf32>
    %87 = tpu.matmul %82, %84, %cst_23 {dimension_numbers = #tpu.dot_dimension_numbers<[1], [1], [0], [0], [0, 0, 1, 0], [], []>} : vector<8x32xbf16>, vector<8x32xbf16>, vector<8x8xf32> -> vector<8x8xf32>
    %cst_24 = arith.constant 0.176776692 : f32
    %88 = vector.broadcast %cst_24 : f32 to vector<8x8xf32>
    %89 = arith.mulf %87, %88 : vector<8x8xf32>
    %cst_25 = arith.constant dense<0xFF800000> : vector<8xf32>
    %90 = vector.multi_reduction <maximumf>, %89, %cst_25 [1] : vector<8x8xf32> to vector<8xf32>
    %91 = vector.shape_cast %90 : vector<8xf32> to vector<8x1xf32>
    %92 = vector.broadcast %91 : vector<8x1xf32> to vector<8x8xf32>
    %93 = arith.subf %89, %92 : vector<8x8xf32>
    %94 = math.exp %93 : vector<8x8xf32>
    %cst_26 = arith.constant dense<0.000000e+00> : vector<8xf32>
    %95 = vector.multi_reduction <add>, %94, %cst_26 [1] : vector<8x8xf32> to vector<8xf32>
    %96 = vector.shape_cast %95 : vector<8xf32> to vector<8x1xf32>
    %97 = tpu.reciprocal %96 {approx = true} : vector<8x1xf32> -> vector<8x1xf32>
    %98 = vector.broadcast %97 : vector<8x1xf32> to vector<8x8xf32>
    %99 = arith.mulf %94, %98 : vector<8x8xf32>
    %100 = arith.truncf %99 : vector<8x8xf32> to vector<8x8xbf16>
    %cst_27 = arith.constant dense<0.000000e+00> : vector<8x32xf32>
    %101 = tpu.matmul %100, %86, %cst_27 {dimension_numbers = #tpu.dot_dimension_numbers<[1], [0], [0], [1], [0, 0, 1, 1], [], []>} : vector<8x8xbf16>, vector<8x32xbf16>, vector<8x32xf32> -> vector<8x32xf32>
    %102 = tpu.concatenate %38, %59, %80, %101 in 1 : vector<8x32xf32>, vector<8x32xf32>, vector<8x32xf32>, vector<8x32xf32> -> vector<8x128xf32>
    %103 = vector.extract_strided_slice %12 {offsets = [8, 0], sizes = [8, 128], strides = [1, 1]} : vector<16x128xf32> to vector<8x128xf32>
    %104 = vector.extract_strided_slice %13 {offsets = [8, 0], sizes = [8, 128], strides = [1, 1]} : vector<16x128xf32> to vector<8x128xf32>
    %105 = vector.extract_strided_slice %14 {offsets = [8, 0], sizes = [8, 128], strides = [1, 1]} : vector<16x128xf32> to vector<8x128xf32>
    %106 = vector.extract_strided_slice %103 {offsets = [0, 0], sizes = [8, 32], strides = [1, 1]} : vector<8x128xf32> to vector<8x32xf32>
    %107 = arith.truncf %106 : vector<8x32xf32> to vector<8x32xbf16>
    %108 = vector.extract_strided_slice %104 {offsets = [0, 0], sizes = [8, 32], strides = [1, 1]} : vector<8x128xf32> to vector<8x32xf32>
    %109 = arith.truncf %108 : vector<8x32xf32> to vector<8x32xbf16>
    %110 = vector.extract_strided_slice %105 {offsets = [0, 0], sizes = [8, 32], strides = [1, 1]} : vector<8x128xf32> to vector<8x32xf32>
    %111 = arith.truncf %110 : vector<8x32xf32> to vector<8x32xbf16>
    %cst_28 = arith.constant dense<0.000000e+00> : vector<8x8xf32>
    %112 = tpu.matmul %107, %109, %cst_28 {dimension_numbers = #tpu.dot_dimension_numbers<[1], [1], [0], [0], [0, 0, 1, 0], [], []>} : vector<8x32xbf16>, vector<8x32xbf16>, vector<8x8xf32> -> vector<8x8xf32>
    %cst_29 = arith.constant 0.176776692 : f32
    %113 = vector.broadcast %cst_29 : f32 to vector<8x8xf32>
    %114 = arith.mulf %112, %113 : vector<8x8xf32>
    %cst_30 = arith.constant dense<0xFF800000> : vector<8xf32>
    %115 = vector.multi_reduction <maximumf>, %114, %cst_30 [1] : vector<8x8xf32> to vector<8xf32>
    %116 = vector.shape_cast %115 : vector<8xf32> to vector<8x1xf32>
    %117 = vector.broadcast %116 : vector<8x1xf32> to vector<8x8xf32>
    %118 = arith.subf %114, %117 : vector<8x8xf32>
    %119 = math.exp %118 : vector<8x8xf32>
    %cst_31 = arith.constant dense<0.000000e+00> : vector<8xf32>
    %120 = vector.multi_reduction <add>, %119, %cst_31 [1] : vector<8x8xf32> to vector<8xf32>
    %121 = vector.shape_cast %120 : vector<8xf32> to vector<8x1xf32>
    %122 = tpu.reciprocal %121 {approx = true} : vector<8x1xf32> -> vector<8x1xf32>
    %123 = vector.broadcast %122 : vector<8x1xf32> to vector<8x8xf32>
    %124 = arith.mulf %119, %123 : vector<8x8xf32>
    %125 = arith.truncf %124 : vector<8x8xf32> to vector<8x8xbf16>
    %cst_32 = arith.constant dense<0.000000e+00> : vector<8x32xf32>
    %126 = tpu.matmul %125, %111, %cst_32 {dimension_numbers = #tpu.dot_dimension_numbers<[1], [0], [0], [1], [0, 0, 1, 1], [], []>} : vector<8x8xbf16>, vector<8x32xbf16>, vector<8x32xf32> -> vector<8x32xf32>
    %127 = vector.extract_strided_slice %103 {offsets = [0, 32], sizes = [8, 32], strides = [1, 1]} : vector<8x128xf32> to vector<8x32xf32>
    %128 = arith.truncf %127 : vector<8x32xf32> to vector<8x32xbf16>
    %129 = vector.extract_strided_slice %104 {offsets = [0, 32], sizes = [8, 32], strides = [1, 1]} : vector<8x128xf32> to vector<8x32xf32>
    %130 = arith.truncf %129 : vector<8x32xf32> to vector<8x32xbf16>
    %131 = vector.extract_strided_slice %105 {offsets = [0, 32], sizes = [8, 32], strides = [1, 1]} : vector<8x128xf32> to vector<8x32xf32>
    %132 = arith.truncf %131 : vector<8x32xf32> to vector<8x32xbf16>
    %cst_33 = arith.constant dense<0.000000e+00> : vector<8x8xf32>
    %133 = tpu.matmul %128, %130, %cst_33 {dimension_numbers = #tpu.dot_dimension_numbers<[1], [1], [0], [0], [0, 0, 1, 0], [], []>} : vector<8x32xbf16>, vector<8x32xbf16>, vector<8x8xf32> -> vector<8x8xf32>
    %cst_34 = arith.constant 0.176776692 : f32
    %134 = vector.broadcast %cst_34 : f32 to vector<8x8xf32>
    %135 = arith.mulf %133, %134 : vector<8x8xf32>
    %cst_35 = arith.constant dense<0xFF800000> : vector<8xf32>
    %136 = vector.multi_reduction <maximumf>, %135, %cst_35 [1] : vector<8x8xf32> to vector<8xf32>
    %137 = vector.shape_cast %136 : vector<8xf32> to vector<8x1xf32>
    %138 = vector.broadcast %137 : vector<8x1xf32> to vector<8x8xf32>
    %139 = arith.subf %135, %138 : vector<8x8xf32>
    %140 = math.exp %139 : vector<8x8xf32>
    %cst_36 = arith.constant dense<0.000000e+00> : vector<8xf32>
    %141 = vector.multi_reduction <add>, %140, %cst_36 [1] : vector<8x8xf32> to vector<8xf32>
    %142 = vector.shape_cast %141 : vector<8xf32> to vector<8x1xf32>
    %143 = tpu.reciprocal %142 {approx = true} : vector<8x1xf32> -> vector<8x1xf32>
    %144 = vector.broadcast %143 : vector<8x1xf32> to vector<8x8xf32>
    %145 = arith.mulf %140, %144 : vector<8x8xf32>
    %146 = arith.truncf %145 : vector<8x8xf32> to vector<8x8xbf16>
    %cst_37 = arith.constant dense<0.000000e+00> : vector<8x32xf32>
    %147 = tpu.matmul %146, %132, %cst_37 {dimension_numbers = #tpu.dot_dimension_numbers<[1], [0], [0], [1], [0, 0, 1, 1], [], []>} : vector<8x8xbf16>, vector<8x32xbf16>, vector<8x32xf32> -> vector<8x32xf32>
    %148 = vector.extract_strided_slice %103 {offsets = [0, 64], sizes = [8, 32], strides = [1, 1]} : vector<8x128xf32> to vector<8x32xf32>
    %149 = arith.truncf %148 : vector<8x32xf32> to vector<8x32xbf16>
    %150 = vector.extract_strided_slice %104 {offsets = [0, 64], sizes = [8, 32], strides = [1, 1]} : vector<8x128xf32> to vector<8x32xf32>
    %151 = arith.truncf %150 : vector<8x32xf32> to vector<8x32xbf16>
    %152 = vector.extract_strided_slice %105 {offsets = [0, 64], sizes = [8, 32], strides = [1, 1]} : vector<8x128xf32> to vector<8x32xf32>
    %153 = arith.truncf %152 : vector<8x32xf32> to vector<8x32xbf16>
    %cst_38 = arith.constant dense<0.000000e+00> : vector<8x8xf32>
    %154 = tpu.matmul %149, %151, %cst_38 {dimension_numbers = #tpu.dot_dimension_numbers<[1], [1], [0], [0], [0, 0, 1, 0], [], []>} : vector<8x32xbf16>, vector<8x32xbf16>, vector<8x8xf32> -> vector<8x8xf32>
    %cst_39 = arith.constant 0.176776692 : f32
    %155 = vector.broadcast %cst_39 : f32 to vector<8x8xf32>
    %156 = arith.mulf %154, %155 : vector<8x8xf32>
    %cst_40 = arith.constant dense<0xFF800000> : vector<8xf32>
    %157 = vector.multi_reduction <maximumf>, %156, %cst_40 [1] : vector<8x8xf32> to vector<8xf32>
    %158 = vector.shape_cast %157 : vector<8xf32> to vector<8x1xf32>
    %159 = vector.broadcast %158 : vector<8x1xf32> to vector<8x8xf32>
    %160 = arith.subf %156, %159 : vector<8x8xf32>
    %161 = math.exp %160 : vector<8x8xf32>
    %cst_41 = arith.constant dense<0.000000e+00> : vector<8xf32>
    %162 = vector.multi_reduction <add>, %161, %cst_41 [1] : vector<8x8xf32> to vector<8xf32>
    %163 = vector.shape_cast %162 : vector<8xf32> to vector<8x1xf32>
    %164 = tpu.reciprocal %163 {approx = true} : vector<8x1xf32> -> vector<8x1xf32>
    %165 = vector.broadcast %164 : vector<8x1xf32> to vector<8x8xf32>
    %166 = arith.mulf %161, %165 : vector<8x8xf32>
    %167 = arith.truncf %166 : vector<8x8xf32> to vector<8x8xbf16>
    %cst_42 = arith.constant dense<0.000000e+00> : vector<8x32xf32>
    %168 = tpu.matmul %167, %153, %cst_42 {dimension_numbers = #tpu.dot_dimension_numbers<[1], [0], [0], [1], [0, 0, 1, 1], [], []>} : vector<8x8xbf16>, vector<8x32xbf16>, vector<8x32xf32> -> vector<8x32xf32>
    %169 = vector.extract_strided_slice %103 {offsets = [0, 96], sizes = [8, 32], strides = [1, 1]} : vector<8x128xf32> to vector<8x32xf32>
    %170 = arith.truncf %169 : vector<8x32xf32> to vector<8x32xbf16>
    %171 = vector.extract_strided_slice %104 {offsets = [0, 96], sizes = [8, 32], strides = [1, 1]} : vector<8x128xf32> to vector<8x32xf32>
    %172 = arith.truncf %171 : vector<8x32xf32> to vector<8x32xbf16>
    %173 = vector.extract_strided_slice %105 {offsets = [0, 96], sizes = [8, 32], strides = [1, 1]} : vector<8x128xf32> to vector<8x32xf32>
    %174 = arith.truncf %173 : vector<8x32xf32> to vector<8x32xbf16>
    %cst_43 = arith.constant dense<0.000000e+00> : vector<8x8xf32>
    %175 = tpu.matmul %170, %172, %cst_43 {dimension_numbers = #tpu.dot_dimension_numbers<[1], [1], [0], [0], [0, 0, 1, 0], [], []>} : vector<8x32xbf16>, vector<8x32xbf16>, vector<8x8xf32> -> vector<8x8xf32>
    %cst_44 = arith.constant 0.176776692 : f32
    %176 = vector.broadcast %cst_44 : f32 to vector<8x8xf32>
    %177 = arith.mulf %175, %176 : vector<8x8xf32>
    %cst_45 = arith.constant dense<0xFF800000> : vector<8xf32>
    %178 = vector.multi_reduction <maximumf>, %177, %cst_45 [1] : vector<8x8xf32> to vector<8xf32>
    %179 = vector.shape_cast %178 : vector<8xf32> to vector<8x1xf32>
    %180 = vector.broadcast %179 : vector<8x1xf32> to vector<8x8xf32>
    %181 = arith.subf %177, %180 : vector<8x8xf32>
    %182 = math.exp %181 : vector<8x8xf32>
    %cst_46 = arith.constant dense<0.000000e+00> : vector<8xf32>
    %183 = vector.multi_reduction <add>, %182, %cst_46 [1] : vector<8x8xf32> to vector<8xf32>
    %184 = vector.shape_cast %183 : vector<8xf32> to vector<8x1xf32>
    %185 = tpu.reciprocal %184 {approx = true} : vector<8x1xf32> -> vector<8x1xf32>
    %186 = vector.broadcast %185 : vector<8x1xf32> to vector<8x8xf32>
    %187 = arith.mulf %182, %186 : vector<8x8xf32>
    %188 = arith.truncf %187 : vector<8x8xf32> to vector<8x8xbf16>
    %cst_47 = arith.constant dense<0.000000e+00> : vector<8x32xf32>
    %189 = tpu.matmul %188, %174, %cst_47 {dimension_numbers = #tpu.dot_dimension_numbers<[1], [0], [0], [1], [0, 0, 1, 1], [], []>} : vector<8x8xbf16>, vector<8x32xbf16>, vector<8x32xf32> -> vector<8x32xf32>
    %190 = tpu.concatenate %126, %147, %168, %189 in 1 : vector<8x32xf32>, vector<8x32xf32>, vector<8x32xf32>, vector<8x32xf32> -> vector<8x128xf32>
    %191 = tpu.concatenate %102, %190 in 0 : vector<8x128xf32>, vector<8x128xf32> -> vector<16x128xf32>
    %192 = arith.truncf %191 : vector<16x128xf32> to vector<16x128xbf16>
    %c0_48 = arith.constant 0 : index
    %c0_49 = arith.constant 0 : index
    %c0_50 = arith.constant 0 : index
    %193 = vector.load %arg6[%c0_48, %c0_49, %c0_50] : memref<1x128x128xbf16, #tpu.memory_space<vmem>>, vector<1x128x128xbf16>
    %194 = vector.shape_cast %193 : vector<1x128x128xbf16> to vector<128x128xbf16>
    %cst_51 = arith.constant dense<0.000000e+00> : vector<16x128xf32>
    %195 = tpu.matmul %192, %194, %cst_51 {dimension_numbers = #tpu.dot_dimension_numbers<[1], [0], [0], [1], [0, 0, 1, 1], [], []>} : vector<16x128xbf16>, vector<128x128xbf16>, vector<16x128xf32> -> vector<16x128xf32>
    %c0_52 = arith.constant 0 : index
    %c0_53 = arith.constant 0 : index
    %c0_54 = arith.constant 0 : index
    %196 = vector.load %arg7[%c0_52, %c0_53, %c0_54] : memref<1x1x128xf32, #tpu.memory_space<vmem>>, vector<1x1x128xf32>
    %197 = vector.shape_cast %196 : vector<1x1x128xf32> to vector<1x128xf32>
    %198 = vector.broadcast %197 : vector<1x128xf32> to vector<16x128xf32>
    %199 = arith.addf %195, %198 : vector<16x128xf32>
    %200 = arith.addf %199, %3 : vector<16x128xf32>
    %c0_55 = arith.constant 0 : index
    %c0_56 = arith.constant 0 : index
    %c0_57 = arith.constant 0 : index
    %201 = vector.load %arg8[%c0_55, %c0_56, %c0_57] : memref<1x1x128xf32, #tpu.memory_space<vmem>>, vector<1x1x128xf32>
    %202 = vector.shape_cast %201 : vector<1x1x128xf32> to vector<1x128xf32>
    %c0_58 = arith.constant 0 : index
    %c0_59 = arith.constant 0 : index
    %c0_60 = arith.constant 0 : index
    %203 = vector.load %arg9[%c0_58, %c0_59, %c0_60] : memref<1x1x128xf32, #tpu.memory_space<vmem>>, vector<1x1x128xf32>
    %204 = vector.shape_cast %203 : vector<1x1x128xf32> to vector<1x128xf32>
    %cst_61 = arith.constant dense<0.000000e+00> : vector<16xf32>
    %205 = vector.multi_reduction <add>, %200, %cst_61 [1] : vector<16x128xf32> to vector<16xf32>
    %206 = vector.shape_cast %205 : vector<16xf32> to vector<16x1xf32>
    %cst_62 = arith.constant 1.280000e+02 : f32
    %207 = vector.broadcast %cst_62 : f32 to vector<16x1xf32>
    %208 = arith.divf %206, %207 : vector<16x1xf32>
    %209 = vector.broadcast %208 : vector<16x1xf32> to vector<16x128xf32>
    %210 = arith.subf %200, %209 : vector<16x128xf32>
    %211 = arith.mulf %210, %210 : vector<16x128xf32>
    %cst_63 = arith.constant dense<0.000000e+00> : vector<16xf32>
    %212 = vector.multi_reduction <add>, %211, %cst_63 [1] : vector<16x128xf32> to vector<16xf32>
    %213 = vector.shape_cast %212 : vector<16xf32> to vector<16x1xf32>
    %cst_64 = arith.constant 1.280000e+02 : f32
    %214 = vector.broadcast %cst_64 : f32 to vector<16x1xf32>
    %215 = arith.divf %213, %214 : vector<16x1xf32>
    %216 = vector.broadcast %208 : vector<16x1xf32> to vector<16x128xf32>
    %217 = arith.subf %200, %216 : vector<16x128xf32>
    %cst_65 = arith.constant 9.99999996E-13 : f32
    %218 = vector.broadcast %cst_65 : f32 to vector<16x1xf32>
    %219 = arith.addf %215, %218 : vector<16x1xf32>
    %220 = math.rsqrt %219 : vector<16x1xf32>
    %221 = vector.broadcast %220 : vector<16x1xf32> to vector<16x128xf32>
    %222 = arith.mulf %217, %221 : vector<16x128xf32>
    %223 = vector.broadcast %202 : vector<1x128xf32> to vector<16x128xf32>
    %224 = arith.mulf %222, %223 : vector<16x128xf32>
    %225 = vector.broadcast %204 : vector<1x128xf32> to vector<16x128xf32>
    %226 = arith.addf %224, %225 : vector<16x128xf32>
    %227 = arith.truncf %226 : vector<16x128xf32> to vector<16x128xbf16>
    %c0_66 = arith.constant 0 : index
    %c0_67 = arith.constant 0 : index
    %c0_68 = arith.constant 0 : index
    %228 = vector.load %arg10[%c0_66, %c0_67, %c0_68] : memref<1x128x256xbf16, #tpu.memory_space<vmem>>, vector<1x128x256xbf16>
    %229 = vector.shape_cast %228 : vector<1x128x256xbf16> to vector<128x256xbf16>
    %cst_69 = arith.constant dense<0.000000e+00> : vector<16x256xf32>
    %230 = tpu.matmul %227, %229, %cst_69 {dimension_numbers = #tpu.dot_dimension_numbers<[1], [0], [0], [1], [0, 0, 1, 1], [], []>} : vector<16x128xbf16>, vector<128x256xbf16>, vector<16x256xf32> -> vector<16x256xf32>
    %c0_70 = arith.constant 0 : index
    %c0_71 = arith.constant 0 : index
    %c0_72 = arith.constant 0 : index
    %231 = vector.load %arg11[%c0_70, %c0_71, %c0_72] : memref<1x1x256xf32, #tpu.memory_space<vmem>>, vector<1x1x256xf32>
    %232 = vector.shape_cast %231 : vector<1x1x256xf32> to vector<1x256xf32>
    %233 = vector.broadcast %232 : vector<1x256xf32> to vector<16x256xf32>
    %234 = arith.addf %230, %233 : vector<16x256xf32>
    %235 = arith.mulf %234, %234 : vector<16x256xf32>
    %236 = arith.mulf %234, %235 : vector<16x256xf32>
    %cst_73 = arith.constant 4.471500e-02 : f32
    %237 = vector.broadcast %cst_73 : f32 to vector<16x256xf32>
    %238 = arith.mulf %237, %236 : vector<16x256xf32>
    %239 = arith.addf %234, %238 : vector<16x256xf32>
    %cst_74 = arith.constant 0.797884583 : f32
    %240 = vector.broadcast %cst_74 : f32 to vector<16x256xf32>
    %241 = arith.mulf %240, %239 : vector<16x256xf32>
    %242 = math.tanh %241 : vector<16x256xf32>
    %cst_75 = arith.constant 1.000000e+00 : f32
    %243 = vector.broadcast %cst_75 : f32 to vector<16x256xf32>
    %244 = arith.addf %243, %242 : vector<16x256xf32>
    %cst_76 = arith.constant 5.000000e-01 : f32
    %245 = vector.broadcast %cst_76 : f32 to vector<16x256xf32>
    %246 = arith.mulf %245, %244 : vector<16x256xf32>
    %247 = arith.mulf %234, %246 : vector<16x256xf32>
    %248 = arith.truncf %247 : vector<16x256xf32> to vector<16x256xbf16>
    %c0_77 = arith.constant 0 : index
    %c0_78 = arith.constant 0 : index
    %c0_79 = arith.constant 0 : index
    %249 = vector.load %arg12[%c0_77, %c0_78, %c0_79] : memref<1x256x128xbf16, #tpu.memory_space<vmem>>, vector<1x256x128xbf16>
    %250 = vector.shape_cast %249 : vector<1x256x128xbf16> to vector<256x128xbf16>
    %cst_80 = arith.constant dense<0.000000e+00> : vector<16x128xf32>
    %251 = tpu.matmul %248, %250, %cst_80 {dimension_numbers = #tpu.dot_dimension_numbers<[1], [0], [0], [1], [0, 0, 1, 1], [], []>} : vector<16x256xbf16>, vector<256x128xbf16>, vector<16x128xf32> -> vector<16x128xf32>
    %c0_81 = arith.constant 0 : index
    %c0_82 = arith.constant 0 : index
    %c0_83 = arith.constant 0 : index
    %252 = vector.load %arg13[%c0_81, %c0_82, %c0_83] : memref<1x1x128xf32, #tpu.memory_space<vmem>>, vector<1x1x128xf32>
    %253 = vector.shape_cast %252 : vector<1x1x128xf32> to vector<1x128xf32>
    %254 = vector.broadcast %253 : vector<1x128xf32> to vector<16x128xf32>
    %255 = arith.addf %251, %254 : vector<16x128xf32>
    %256 = arith.addf %255, %226 : vector<16x128xf32>
    %c0_84 = arith.constant 0 : index
    %c0_85 = arith.constant 0 : index
    %c0_86 = arith.constant 0 : index
    %257 = vector.load %arg14[%c0_84, %c0_85, %c0_86] : memref<1x1x128xf32, #tpu.memory_space<vmem>>, vector<1x1x128xf32>
    %258 = vector.shape_cast %257 : vector<1x1x128xf32> to vector<1x128xf32>
    %c0_87 = arith.constant 0 : index
    %c0_88 = arith.constant 0 : index
    %c0_89 = arith.constant 0 : index
    %259 = vector.load %arg15[%c0_87, %c0_88, %c0_89] : memref<1x1x128xf32, #tpu.memory_space<vmem>>, vector<1x1x128xf32>
    %260 = vector.shape_cast %259 : vector<1x1x128xf32> to vector<1x128xf32>
    %cst_90 = arith.constant dense<0.000000e+00> : vector<16xf32>
    %261 = vector.multi_reduction <add>, %256, %cst_90 [1] : vector<16x128xf32> to vector<16xf32>
    %262 = vector.shape_cast %261 : vector<16xf32> to vector<16x1xf32>
    %cst_91 = arith.constant 1.280000e+02 : f32
    %263 = vector.broadcast %cst_91 : f32 to vector<16x1xf32>
    %264 = arith.divf %262, %263 : vector<16x1xf32>
    %265 = vector.broadcast %264 : vector<16x1xf32> to vector<16x128xf32>
    %266 = arith.subf %256, %265 : vector<16x128xf32>
    %267 = arith.mulf %266, %266 : vector<16x128xf32>
    %cst_92 = arith.constant dense<0.000000e+00> : vector<16xf32>
    %268 = vector.multi_reduction <add>, %267, %cst_92 [1] : vector<16x128xf32> to vector<16xf32>
    %269 = vector.shape_cast %268 : vector<16xf32> to vector<16x1xf32>
    %cst_93 = arith.constant 1.280000e+02 : f32
    %270 = vector.broadcast %cst_93 : f32 to vector<16x1xf32>
    %271 = arith.divf %269, %270 : vector<16x1xf32>
    %272 = vector.broadcast %264 : vector<16x1xf32> to vector<16x128xf32>
    %273 = arith.subf %256, %272 : vector<16x128xf32>
    %cst_94 = arith.constant 9.99999996E-13 : f32
    %274 = vector.broadcast %cst_94 : f32 to vector<16x1xf32>
    %275 = arith.addf %271, %274 : vector<16x1xf32>
    %276 = math.rsqrt %275 : vector<16x1xf32>
    %277 = vector.broadcast %276 : vector<16x1xf32> to vector<16x128xf32>
    %278 = arith.mulf %273, %277 : vector<16x128xf32>
    %279 = vector.broadcast %258 : vector<1x128xf32> to vector<16x128xf32>
    %280 = arith.mulf %278, %279 : vector<16x128xf32>
    %281 = vector.broadcast %260 : vector<1x128xf32> to vector<16x128xf32>
    %282 = arith.addf %280, %281 : vector<16x128xf32>
    %c0_95 = arith.constant 0 : index
    %c0_96 = arith.constant 0 : index
    %283 = vector.load %arg19[%c0_95, %c0_96] : memref<16x128xf32, #tpu.memory_space<vmem>>, vector<16x128xf32>
    tpu.vector_store %arg19[%c0_95, %c0_96], %282 {strides = array<i32>} : memref<16x128xf32, #tpu.memory_space<vmem>>, vector<16x128xf32>,
    %c1_i32 = arith.constant 1 : i32
    %284 = arith.cmpi eq, %arg0, %c1_i32 : i32
    %285 = arith.extui %284 : i1 to i32
    %c0_i32_97 = arith.constant 0 : i32
    %286 = arith.cmpi ne, %285, %c0_i32_97 : i32
    scf.if %286 {
      %287 = arith.truncf %282 : vector<16x128xf32> to vector<16x128xbf16>
      %c0_98 = arith.constant 0 : index
      %c0_99 = arith.constant 0 : index
      %288 = vector.load %arg16[%c0_98, %c0_99] : memref<128x128xbf16, #tpu.memory_space<vmem>>, vector<128x128xbf16>
      %cst_100 = arith.constant dense<0.000000e+00> : vector<16x128xf32>
      %289 = tpu.matmul %287, %288, %cst_100 {dimension_numbers = #tpu.dot_dimension_numbers<[1], [0], [0], [1], [0, 0, 1, 1], [], []>} : vector<16x128xbf16>, vector<128x128xbf16>, vector<16x128xf32> -> vector<16x128xf32>
      %c0_101 = arith.constant 0 : index
      %c0_102 = arith.constant 0 : index
      %290 = vector.load %arg17[%c0_101, %c0_102] : memref<1x128xf32, #tpu.memory_space<vmem>>, vector<1x128xf32>
      %291 = vector.broadcast %290 : vector<1x128xf32> to vector<16x128xf32>
      %292 = arith.addf %289, %291 : vector<16x128xf32>
      %c0_103 = arith.constant 0 : index
      %c0_104 = arith.constant 0 : index
      %293 = vector.load %arg18[%c0_103, %c0_104] : memref<16x128xf32, #tpu.memory_space<vmem>>, vector<16x128xf32>
      tpu.vector_store %arg18[%c0_103, %c0_104], %292 {strides = array<i32>} : memref<16x128xf32, #tpu.memory_space<vmem>>, vector<16x128xf32>,
    } else {
    }
    return
  }
  func.func @transform_0(%arg0: i32) -> (i32, i32) {
    %c0_i32 = arith.constant 0 : i32
    %c0_i32_0 = arith.constant 0 : i32
    %c0_i32_1 = arith.constant 0 : i32
    return %c0_i32, %c0_i32_0 : i32, i32
  }
  func.func @transform_1(%arg0: i32) -> (i32, i32) {
    %c0_i32 = arith.constant 0 : i32
    %c0_i32_0 = arith.constant 0 : i32
    %c0_i32_1 = arith.constant 0 : i32
    return %c0_i32, %c0_i32_0 : i32, i32
  }
  func.func @transform_2(%arg0: i32) -> (i32, i32) {
    %c0_i32 = arith.constant 0 : i32
    %c0_i32_0 = arith.constant 0 : i32
    %c0_i32_1 = arith.constant 0 : i32
    return %c0_i32, %c0_i32_0 : i32, i32
  }
  func.func @transform_3(%arg0: i32) -> (i32, i32, i32) {
    %c0_i32 = arith.constant 0 : i32
    %c0_i32_0 = arith.constant 0 : i32
    %c0_i32_1 = arith.constant 0 : i32
    return %arg0, %c0_i32, %c0_i32_0 : i32, i32, i32
  }
  func.func @transform_4(%arg0: i32) -> (i32, i32, i32) {
    %c0_i32 = arith.constant 0 : i32
    %c0_i32_0 = arith.constant 0 : i32
    %c0_i32_1 = arith.constant 0 : i32
    return %arg0, %c0_i32, %c0_i32_0 : i32, i32, i32
  }
  func.func @transform_5(%arg0: i32) -> (i32, i32, i32) {
    %c0_i32 = arith.constant 0 : i32
    %c0_i32_0 = arith.constant 0 : i32
    %c0_i32_1 = arith.constant 0 : i32
    return %arg0, %c0_i32, %c0_i32_0 : i32, i32, i32
  }
  func.func @transform_6(%arg0: i32) -> (i32, i32, i32) {
    %c0_i32 = arith.constant 0 : i32
    %c0_i32_0 = arith.constant 0 : i32
    %c0_i32_1 = arith.constant 0 : i32
    return %arg0, %c0_i32, %c0_i32_0 : i32, i32, i32
  }
  func.func @transform_7(%arg0: i32) -> (i32, i32, i32) {
    %c0_i32 = arith.constant 0 : i32
    %c0_i32_0 = arith.constant 0 : i32
    %c0_i32_1 = arith.constant 0 : i32
    return %arg0, %c0_i32, %c0_i32_0 : i32, i32, i32
  }
  func.func @transform_8(%arg0: i32) -> (i32, i32, i32) {
    %c0_i32 = arith.constant 0 : i32
    %c0_i32_0 = arith.constant 0 : i32
    %c0_i32_1 = arith.constant 0 : i32
    return %arg0, %c0_i32, %c0_i32_0 : i32, i32, i32
  }
  func.func @transform_9(%arg0: i32) -> (i32, i32, i32) {
    %c0_i32 = arith.constant 0 : i32
    %c0_i32_0 = arith.constant 0 : i32
    %c0_i32_1 = arith.constant 0 : i32
    return %arg0, %c0_i32, %c0_i32_0 : i32, i32, i32
  }
  func.func @transform_10(%arg0: i32) -> (i32, i32, i32) {
    %c0_i32 = arith.constant 0 : i32
    %c0_i32_0 = arith.constant 0 : i32
    %c0_i32_1 = arith.constant 0 : i32
    return %arg0, %c0_i32, %c0_i32_0 : i32, i32, i32
  }
  func.func @transform_11(%arg0: i32) -> (i32, i32, i32) {
    %c0_i32 = arith.constant 0 : i32
    %c0_i32_0 = arith.constant 0 : i32
    %c0_i32_1 = arith.constant 0 : i32
    return %arg0, %c0_i32, %c0_i32_0 : i32, i32, i32
  }
  func.func @transform_12(%arg0: i32) -> (i32, i32, i32) {
    %c0_i32 = arith.constant 0 : i32
    %c0_i32_0 = arith.constant 0 : i32
    %c0_i32_1 = arith.constant 0 : i32
    return %arg0, %c0_i32, %c0_i32_0 : i32, i32, i32
  }
  func.func @transform_13(%arg0: i32) -> (i32, i32, i32) {
    %c0_i32 = arith.constant 0 : i32
    %c0_i32_0 = arith.constant 0 : i32
    %c0_i32_1 = arith.constant 0 : i32
    return %arg0, %c0_i32, %c0_i32_0 : i32, i32, i32
  }
  func.func @transform_14(%arg0: i32) -> (i32, i32, i32) {
    %c0_i32 = arith.constant 0 : i32
    %c0_i32_0 = arith.constant 0 : i32
    %c0_i32_1 = arith.constant 0 : i32
    return %arg0, %c0_i32, %c0_i32_0 : i32, i32, i32
  }
  func.func @transform_15(%arg0: i32) -> (i32, i32) {
    %c0_i32 = arith.constant 0 : i32
    %c0_i32_0 = arith.constant 0 : i32
    %c0_i32_1 = arith.constant 0 : i32
    return %c0_i32, %c0_i32_0 : i32, i32
  }
  func.func @transform_16(%arg0: i32) -> (i32, i32) {
    %c0_i32 = arith.constant 0 : i32
    %c0_i32_0 = arith.constant 0 : i32
    %c0_i32_1 = arith.constant 0 : i32
    return %c0_i32, %c0_i32_0 : i32, i32
  }
  func.func @transform_17(%arg0: i32) -> (i32, i32) {
    %c0_i32 = arith.constant 0 : i32
    %c0_i32_0 = arith.constant 0 : i32
    %c0_i32_1 = arith.constant 0 : i32
    return %c0_i32, %c0_i32_0 : i32, i32
  }
}

</mosaic_0001>

<llo_original>
// kernel: torch_model_forward.1
$region0: #{torch_model_forward.1}
  #allocation0 [shape = 'u32[]', space=smem, size = 0x4, offset = 0x4, fixed_abs, tag = 'smem constant byte address 0x4 - core index']
  #allocation1 [shape = 'u32[144,128]{1,0:T(1,128)}', space=vmem, size = 0x12000, scoped, tag = 'internal scratch']
  #allocation2 [shape = 'f32[16,128]{1,0:T(8,128)}', space=vmem, size = 0x2000, scoped, tag = 'scratch operand']
  %s0 = inlined_call_operand.vmem [shape: f32[16,128], index: 0, kind: input, shape index: {}]
  %s1 = inlined_call_operand.vmem [shape: f32[1,128], index: 1, kind: input, shape index: {}]
  %s2 = inlined_call_operand.vmem [shape: f32[1,128], index: 2, kind: input, shape index: {}]
  %s3 = inlined_call_operand.hbm [shape: bf16[2,128,384], index: 3, kind: input, shape index: {}]
  %s4 = inlined_call_operand.vmem [shape: f32[2,1,384], index: 4, kind: input, shape index: {}]
  %s5 = inlined_call_operand.hbm [shape: bf16[2,128,128], index: 5, kind: input, shape index: {}]
  %s6 = inlined_call_operand.vmem [shape: f32[2,1,128], index: 6, kind: input, shape index: {}]
  %s7 = inlined_call_operand.vmem [shape: f32[2,1,128], index: 7, kind: input, shape index: {}]
  %s8 = inlined_call_operand.vmem [shape: f32[2,1,128], index: 8, kind: input, shape index: {}]
  %s9 = inlined_call_operand.vmem [shape: bf16[2,128,256], index: 9, kind: input, shape index: {}]
  %s10 = inlined_call_operand.vmem [shape: f32[2,1,256], index: 10, kind: input, shape index: {}]
  %s11 = inlined_call_operand.hbm [shape: bf16[2,256,128], index: 11, kind: input, shape index: {}]
  %s12 = inlined_call_operand.vmem [shape: f32[2,1,128], index: 12, kind: input, shape index: {}]
  %s13 = inlined_call_operand.vmem [shape: f32[2,1,128], index: 13, kind: input, shape index: {}]
  %s14 = inlined_call_operand.vmem [shape: f32[2,1,128], index: 14, kind: input, shape index: {}]
  %s15 = inlined_call_operand.hbm [shape: bf16[128,128], index: 15, kind: input, shape index: {}]
  %s16 = inlined_call_operand.vmem [shape: f32[1,128], index: 16, kind: input, shape index: {}]
  %s17 = inlined_call_operand.vmem [shape: f32[16,128], index: 17, kind: output, shape index: {}]
  %s18 = sld [smem:[#allocation0]]
  $region125: #{torch_model_forward.1} parent=0
    _
  %s20 = ssub.s32 1, %s18
  %s21 = scalar_select 0, %s20, %s18
  $region1: #{torch_model_forward.1} parent=0
    #allocation3 [shape = 'u8[196608]{0}', space=vmem, size = 0x30000, scoped, tag = 'input window, operand 3']
    #allocation4 [shape = 's32[2]{0}', space=sflag, size = 0x8, scoped, tag = 'scoped memory for torch_model_forward.1']
    #allocation5 [shape = 'u8[65536]{0}', space=vmem, size = 0x10000, scoped, tag = 'input window, operand 5']
    #allocation6 [shape = 's32[2]{0}', space=sflag, size = 0x8, scoped, tag = 'scoped memory for torch_model_forward.1']
    #allocation7 [shape = 'u8[131072]{0}', space=vmem, size = 0x20000, scoped, tag = 'input window, operand 11']
    #allocation8 [shape = 'u8[32768]{0}', space=vmem, size = 0x8000, scoped, tag = 'input window, operand 15, single buffered']
    #allocation9 [shape = 's32[1]{0}', space=sflag, size = 0x4, scoped, tag = 'scoped memory for torch_model_forward.1']
    %22 = vsyncpa [#allocation4], 0
    %s23 = scalar_lea.sflag [#allocation4], 1
    %24 = vsyncpa %s23, 0
    %25 = vsyncpa [#allocation6], 0
    %s26 = scalar_lea.sflag [#allocation6], 1
    %27 = vsyncpa %s26, 0
    %28 = vsyncpa [#allocation9], 0
    loop: start=0, step=1, limit=4
    $region2: #{torch_model_forward.1} parent=1 // loop_pre_header
      _
    $region3: #{torch_model_forward.1} parent=1 // loop_header
      %s30 = sphi 0, %s34
      %p31 = scmp.ge.s32.totalorder %s30, 4
      %s38 = sphi 0, %s38
      %s40 = sphi 0, %s38
      %s41 = sphi 0, %s40
      %s55 = sphi 0, %s41
      %s59 = sphi 0, %s59
      %s61 = sphi 0, %s59
      %s62 = sphi 0, %s61
      %s76 = sphi 0, %s62
      %s80 = sphi 0, %s80
      %s82 = sphi 0, %s80
      %s83 = sphi 0, %s82
      %s97 = sphi 0, %s83
      %s103 = sphi 0, %s105
      %s106 = sphi 0, %s103
      %s107 = sphi 0, %s106
      %s123 = sphi 0, %s107
      %s129 = sphi 0, %s131
      %s132 = sphi 0, %s129
      %s133 = sphi 0, %s132
      %s149 = sphi 0, %s133
      %s155 = sphi 0, %s157
      %s158 = sphi 0, %s155
      %s159 = sphi 0, %s158
      %s175 = sphi 0, %s159
      %s181 = sphi 0, %s183
      %s184 = sphi 0, %s181
      %s185 = sphi 0, %s184
      %s201 = sphi 0, %s185
      %s207 = sphi 0, %s209
      %s210 = sphi 0, %s207
      %s211 = sphi 0, %s210
      %s227 = sphi 0, %s211
      %s233 = sphi 0, %s235
      %s236 = sphi 0, %s233
      %s237 = sphi 0, %s236
      %s253 = sphi 0, %s237
      %s259 = sphi 0, %s261
      %s262 = sphi 0, %s259
      %s263 = sphi 0, %s262
      %s279 = sphi 0, %s263
      %s285 = sphi 0, %s287
      %s288 = sphi 0, %s285
      %s289 = sphi 0, %s288
      %s305 = sphi 0, %s289
      %s311 = sphi 0, %s313
      %s314 = sphi 0, %s311
      %s315 = sphi 0, %s314
      %s331 = sphi 0, %s315
      %s337 = sphi 0, %s339
      %s340 = sphi 0, %s337
      %s341 = sphi 0, %s340
      %s357 = sphi 0, %s341
      %s363 = sphi 0, %s365
      %s366 = sphi 0, %s363
      %s367 = sphi 0, %s366
      %s383 = sphi 0, %s367
      %s389 = sphi 0, %s391
      %s392 = sphi 0, %s389
      %s393 = sphi 0, %s392
      %s409 = sphi 0, %s393
      %s413 = sphi 0, %s413
      %s415 = sphi 0, %s413
      %s416 = sphi 0, %s415
      %s430 = sphi 0, %s416
      %s434 = sphi 0, %s434
      %s436 = sphi 0, %s434
      %s437 = sphi 0, %s436
      %s451 = sphi 0, %s437
      %s455 = sphi 0, %s455
      %s457 = sphi 0, %s455
      %s458 = sphi 0, %s457
      %s472 = sphi 0, %s458
    $region4: #{torch_model_forward.1} parent=1 // loop_header_branch
      %33 = sbr.rel (%p31) target = $region8
    $region5: #{torch_model_forward.1} parent=1 // loop_body
      %s35 = ssub.s32 %s30, 1
      %s36 = ssub.s32 %s30, 2
      %s37 = sadd.s32 %s30, 1
      %s39 = sadd.s32 %s38, 1
      %p42 = scmp.eq.s32.totalorder %s30, 1
      %p43 = scmp.ne.s32.totalorder %s38, %s40
      %p44 = scmp.eq.s32.totalorder %s30, 0
      %p45 = por %p43, %p44
      %p46 = scmp.ne.s32.totalorder %s38, %s40
      %p47 = scmp.eq.s32.totalorder %s35, 1
      %p48 = por %p46, %p47
      %p49 = scmp.ne.s32.totalorder %s40, %s41
      %p50 = scmp.eq.s32.totalorder %s35, 0
      %p51 = por %p49, %p50
      %p52 = scmp.ne.s32.totalorder %s40, %s41
      %p53 = scmp.eq.s32.totalorder %s36, 1
      %p54 = por %p52, %p53
      %p56 = scmp.ne.s32.totalorder %s41, %s55
      %p57 = scmp.eq.s32.totalorder %s36, 0
      %p58 = por %p56, %p57
      %s60 = sadd.s32 %s59, 1
      %p63 = scmp.eq.s32.totalorder %s30, 1
      %p64 = scmp.ne.s32.totalorder %s59, %s61
      %p65 = scmp.eq.s32.totalorder %s30, 0
      %p66 = por %p64, %p65
      %p67 = scmp.ne.s32.totalorder %s59, %s61
      %p68 = scmp.eq.s32.totalorder %s35, 1
      %p69 = por %p67, %p68
      %p70 = scmp.ne.s32.totalorder %s61, %s62
      %p71 = scmp.eq.s32.totalorder %s35, 0
      %p72 = por %p70, %p71
      %p73 = scmp.ne.s32.totalorder %s61, %s62
      %p74 = scmp.eq.s32.totalorder %s36, 1
      %p75 = por %p73, %p74
      %p77 = scmp.ne.s32.totalorder %s62, %s76
      %p78 = scmp.eq.s32.totalorder %s36, 0
      %p79 = por %p77, %p78
      %s81 = sadd.s32 %s80, 1
      %p84 = scmp.eq.s32.totalorder %s30, 1
      %p85 = scmp.ne.s32.totalorder %s80, %s82
      %p86 = scmp.eq.s32.totalorder %s30, 0
      %p87 = por %p85, %p86
      %p88 = scmp.ne.s32.totalorder %s80, %s82
      %p89 = scmp.eq.s32.totalorder %s35, 1
      %p90 = por %p88, %p89
      %p91 = scmp.ne.s32.totalorder %s82, %s83
      %p92 = scmp.eq.s32.totalorder %s35, 0
      %p93 = por %p91, %p92
      %p94 = scmp.ne.s32.totalorder %s82, %s83
      %p95 = scmp.eq.s32.totalorder %s36, 1
      %p96 = por %p94, %p95
      %p98 = scmp.ne.s32.totalorder %s83, %s97
      %p99 = scmp.eq.s32.totalorder %s36, 0
      %p100 = por %p98, %p99
      %s101 = ssub.s32 %s30, %s37
      %p102 = scmp.eq.s32.totalorder %s101, 0
      %s104 = sadd.s32 %s103, 1
      %s105 = scalar_select %p102, %s103, %s104
      %p108 = pneg %p102
      %p109 = scmp.eq.s32.totalorder %s30, 1
      %p110 = por %p108, %p109
      %p111 = scmp.ne.s32.totalorder %s103, %s106
      %p112 = scmp.eq.s32.totalorder %s30, 0
      %p113 = por %p111, %p112
      %p114 = scmp.ne.s32.totalorder %s103, %s106
      %p115 = scmp.eq.s32.totalorder %s35, 1
      %p116 = por %p114, %p115
      %p117 = scmp.ne.s32.totalorder %s106, %s107
      %p118 = scmp.eq.s32.totalorder %s35, 0
      %p119 = por %p117, %p118
      %p120 = scmp.ne.s32.totalorder %s106, %s107
      %p121 = scmp.eq.s32.totalorder %s36, 1
      %p122 = por %p120, %p121
      %p124 = scmp.ne.s32.totalorder %s107, %s123
      %p125 = scmp.eq.s32.totalorder %s36, 0
      %p126 = por %p124, %p125
      %s127 = ssub.s32 %s30, %s37
      %p128 = scmp.eq.s32.totalorder %s127, 0
      %s130 = sadd.s32 %s129, 1
      %s131 = scalar_select %p128, %s129, %s130
      %p134 = pneg %p128
      %p135 = scmp.eq.s32.totalorder %s30, 1
      %p136 = por %p134, %p135
      %p137 = scmp.ne.s32.totalorder %s129, %s132
      %p138 = scmp.eq.s32.totalorder %s30, 0
      %p139 = por %p137, %p138
      %p140 = scmp.ne.s32.totalorder %s129, %s132
      %p141 = scmp.eq.s32.totalorder %s35, 1
      %p142 = por %p140, %p141
      %p143 = scmp.ne.s32.totalorder %s132, %s133
      %p144 = scmp.eq.s32.totalorder %s35, 0
      %p145 = por %p143, %p144
      %p146 = scmp.ne.s32.totalorder %s132, %s133
      %p147 = scmp.eq.s32.totalorder %s36, 1
      %p148 = por %p146, %p147
      %p150 = scmp.ne.s32.totalorder %s133, %s149
      %p151 = scmp.eq.s32.totalorder %s36, 0
      %p152 = por %p150, %p151
      %s153 = ssub.s32 %s30, %s37
      %p154 = scmp.eq.s32.totalorder %s153, 0
      %s156 = sadd.s32 %s155, 1
      %s157 = scalar_select %p154, %s155, %s156
      %p160 = pneg %p154
      %p161 = scmp.eq.s32.totalorder %s30, 1
      %p162 = por %p160, %p161
      %p163 = scmp.ne.s32.totalorder %s155, %s158
      %p164 = scmp.eq.s32.totalorder %s30, 0
      %p165 = por %p163, %p164
      %p166 = scmp.ne.s32.totalorder %s155, %s158
      %p167 = scmp.eq.s32.totalorder %s35, 1
      %p168 = por %p166, %p167
      %p169 = scmp.ne.s32.totalorder %s158, %s159
      %p170 = scmp.eq.s32.totalorder %s35, 0
      %p171 = por %p169, %p170
      %p172 = scmp.ne.s32.totalorder %s158, %s159
      %p173 = scmp.eq.s32.totalorder %s36, 1
      %p174 = por %p172, %p173
      %p176 = scmp.ne.s32.totalorder %s159, %s175
      %p177 = scmp.eq.s32.totalorder %s36, 0
      %p178 = por %p176, %p177
      %s179 = ssub.s32 %s30, %s37
      %p180 = scmp.eq.s32.totalorder %s179, 0
      %s182 = sadd.s32 %s181, 1
      %s183 = scalar_select %p180, %s181, %s182
      %p186 = pneg %p180
      %p187 = scmp.eq.s32.totalorder %s30, 1
      %p188 = por %p186, %p187
      %p189 = scmp.ne.s32.totalorder %s181, %s184
      %p190 = scmp.eq.s32.totalorder %s30, 0
      %p191 = por %p189, %p190
      %p192 = scmp.ne.s32.totalorder %s181, %s184
      %p193 = scmp.eq.s32.totalorder %s35, 1
      %p194 = por %p192, %p193
      %p195 = scmp.ne.s32.totalorder %s184, %s185
      %p196 = scmp.eq.s32.totalorder %s35, 0
      %p197 = por %p195, %p196
      %p198 = scmp.ne.s32.totalorder %s184, %s185
      %p199 = scmp.eq.s32.totalorder %s36, 1
      %p200 = por %p198, %p199
      %p202 = scmp.ne.s32.totalorder %s185, %s201
      %p203 = scmp.eq.s32.totalorder %s36, 0
      %p204 = por %p202, %p203
      %s205 = ssub.s32 %s30, %s37
      %p206 = scmp.eq.s32.totalorder %s205, 0
      %s208 = sadd.s32 %s207, 1
      %s209 = scalar_select %p206, %s207, %s208
      %p212 = pneg %p206
      %p213 = scmp.eq.s32.totalorder %s30, 1
      %p214 = por %p212, %p213
      %p215 = scmp.ne.s32.totalorder %s207, %s210
      %p216 = scmp.eq.s32.totalorder %s30, 0
      %p217 = por %p215, %p216
      %p218 = scmp.ne.s32.totalorder %s207, %s210
      %p219 = scmp.eq.s32.totalorder %s35, 1
      %p220 = por %p218, %p219
      %p221 = scmp.ne.s32.totalorder %s210, %s211
      %p222 = scmp.eq.s32.totalorder %s35, 0
      %p223 = por %p221, %p222
      %p224 = scmp.ne.s32.totalorder %s210, %s211
      %p225 = scmp.eq.s32.totalorder %s36, 1
      %p226 = por %p224, %p225
      %p228 = scmp.ne.s32.totalorder %s211, %s227
      %p229 = scmp.eq.s32.totalorder %s36, 0
      %p230 = por %p228, %p229
      %s231 = ssub.s32 %s30, %s37
      %p232 = scmp.eq.s32.totalorder %s231, 0
      %s234 = sadd.s32 %s233, 1
      %s235 = scalar_select %p232, %s233, %s234
      %p238 = pneg %p232
      %p239 = scmp.eq.s32.totalorder %s30, 1
      %p240 = por %p238, %p239
      %p241 = scmp.ne.s32.totalorder %s233, %s236
      %p242 = scmp.eq.s32.totalorder %s30, 0
      %p243 = por %p241, %p242
      %p244 = scmp.ne.s32.totalorder %s233, %s236
      %p245 = scmp.eq.s32.totalorder %s35, 1
      %p246 = por %p244, %p245
      %p247 = scmp.ne.s32.totalorder %s236, %s237
      %p248 = scmp.eq.s32.totalorder %s35, 0
      %p249 = por %p247, %p248
      %p250 = scmp.ne.s32.totalorder %s236, %s237
      %p251 = scmp.eq.s32.totalorder %s36, 1
      %p252 = por %p250, %p251
      %p254 = scmp.ne.s32.totalorder %s237, %s253
      %p255 = scmp.eq.s32.totalorder %s36, 0
      %p256 = por %p254, %p255
      %s257 = ssub.s32 %s30, %s37
      %p258 = scmp.eq.s32.totalorder %s257, 0
      %s260 = sadd.s32 %s259, 1
      %s261 = scalar_select %p258, %s259, %s260
      %p264 = pneg %p258
      %p265 = scmp.eq.s32.totalorder %s30, 1
      %p266 = por %p264, %p265
      %p267 = scmp.ne.s32.totalorder %s259, %s262
      %p268 = scmp.eq.s32.totalorder %s30, 0
      %p269 = por %p267, %p268
      %p270 = scmp.ne.s32.totalorder %s259, %s262
      %p271 = scmp.eq.s32.totalorder %s35, 1
      %p272 = por %p270, %p271
      %p273 = scmp.ne.s32.totalorder %s262, %s263
      %p274 = scmp.eq.s32.totalorder %s35, 0
      %p275 = por %p273, %p274
      %p276 = scmp.ne.s32.totalorder %s262, %s263
      %p277 = scmp.eq.s32.totalorder %s36, 1
      %p278 = por %p276, %p277
      %p280 = scmp.ne.s32.totalorder %s263, %s279
      %p281 = scmp.eq.s32.totalorder %s36, 0
      %p282 = por %p280, %p281
      %s283 = ssub.s32 %s30, %s37
      %p284 = scmp.eq.s32.totalorder %s283, 0
      %s286 = sadd.s32 %s285, 1
      %s287 = scalar_select %p284, %s285, %s286
      %p290 = pneg %p284
      %p291 = scmp.eq.s32.totalorder %s30, 1
      %p292 = por %p290, %p291
      %p293 = scmp.ne.s32.totalorder %s285, %s288
      %p294 = scmp.eq.s32.totalorder %s30, 0
      %p295 = por %p293, %p294
      %p296 = scmp.ne.s32.totalorder %s285, %s288
      %p297 = scmp.eq.s32.totalorder %s35, 1
      %p298 = por %p296, %p297
      %p299 = scmp.ne.s32.totalorder %s288, %s289
      %p300 = scmp.eq.s32.totalorder %s35, 0
      %p301 = por %p299, %p300
      %p302 = scmp.ne.s32.totalorder %s288, %s289
      %p303 = scmp.eq.s32.totalorder %s36, 1
      %p304 = por %p302, %p303
      %p306 = scmp.ne.s32.totalorder %s289, %s305
      %p307 = scmp.eq.s32.totalorder %s36, 0
      %p308 = por %p306, %p307
      %s309 = ssub.s32 %s30, %s37
      %p310 = scmp.eq.s32.totalorder %s309, 0
      %s312 = sadd.s32 %s311, 1
      %s313 = scalar_select %p310, %s311, %s312
      %p316 = pneg %p310
      %p317 = scmp.eq.s32.totalorder %s30, 1
      %p318 = por %p316, %p317
      %p319 = scmp.ne.s32.totalorder %s311, %s314
      %p320 = scmp.eq.s32.totalorder %s30, 0
      %p321 = por %p319, %p320
      %p322 = scmp.ne.s32.totalorder %s311, %s314
      %p323 = scmp.eq.s32.totalorder %s35, 1
      %p324 = por %p322, %p323
      %p325 = scmp.ne.s32.totalorder %s314, %s315
      %p326 = scmp.eq.s32.totalorder %s35, 0
      %p327 = por %p325, %p326
      %p328 = scmp.ne.s32.totalorder %s314, %s315
      %p329 = scmp.eq.s32.totalorder %s36, 1
      %p330 = por %p328, %p329
      %p332 = scmp.ne.s32.totalorder %s315, %s331
      %p333 = scmp.eq.s32.totalorder %s36, 0
      %p334 = por %p332, %p333
      %s335 = ssub.s32 %s30, %s37
      %p336 = scmp.eq.s32.totalorder %s335, 0
      %s338 = sadd.s32 %s337, 1
      %s339 = scalar_select %p336, %s337, %s338
      %p342 = pneg %p336
      %p343 = scmp.eq.s32.totalorder %s30, 1
      %p344 = por %p342, %p343
      %p345 = scmp.ne.s32.totalorder %s337, %s340
      %p346 = scmp.eq.s32.totalorder %s30, 0
      %p347 = por %p345, %p346
      %p348 = scmp.ne.s32.totalorder %s337, %s340
      %p349 = scmp.eq.s32.totalorder %s35, 1
      %p350 = por %p348, %p349
      %p351 = scmp.ne.s32.totalorder %s340, %s341
      %p352 = scmp.eq.s32.totalorder %s35, 0
      %p353 = por %p351, %p352
      %p354 = scmp.ne.s32.totalorder %s340, %s341
      %p355 = scmp.eq.s32.totalorder %s36, 1
      %p356 = por %p354, %p355
      %p358 = scmp.ne.s32.totalorder %s341, %s357
      %p359 = scmp.eq.s32.totalorder %s36, 0
      %p360 = por %p358, %p359
      %s361 = ssub.s32 %s30, %s37
      %p362 = scmp.eq.s32.totalorder %s361, 0
      %s364 = sadd.s32 %s363, 1
      %s365 = scalar_select %p362, %s363, %s364
      %p368 = pneg %p362
      %p369 = scmp.eq.s32.totalorder %s30, 1
      %p370 = por %p368, %p369
      %p371 = scmp.ne.s32.totalorder %s363, %s366
      %p372 = scmp.eq.s32.totalorder %s30, 0
      %p373 = por %p371, %p372
      %p374 = scmp.ne.s32.totalorder %s363, %s366
      %p375 = scmp.eq.s32.totalorder %s35, 1
      %p376 = por %p374, %p375
      %p377 = scmp.ne.s32.totalorder %s366, %s367
      %p378 = scmp.eq.s32.totalorder %s35, 0
      %p379 = por %p377, %p378
      %p380 = scmp.ne.s32.totalorder %s366, %s367
      %p381 = scmp.eq.s32.totalorder %s36, 1
      %p382 = por %p380, %p381
      %p384 = scmp.ne.s32.totalorder %s367, %s383
      %p385 = scmp.eq.s32.totalorder %s36, 0
      %p386 = por %p384, %p385
      %s387 = ssub.s32 %s30, %s37
      %p388 = scmp.eq.s32.totalorder %s387, 0
      %s390 = sadd.s32 %s389, 1
      %s391 = scalar_select %p388, %s389, %s390
      %p394 = pneg %p388
      %p395 = scmp.eq.s32.totalorder %s30, 1
      %p396 = por %p394, %p395
      %p397 = scmp.ne.s32.totalorder %s389, %s392
      %p398 = scmp.eq.s32.totalorder %s30, 0
      %p399 = por %p397, %p398
      %p400 = scmp.ne.s32.totalorder %s389, %s392
      %p401 = scmp.eq.s32.totalorder %s35, 1
      %p402 = por %p400, %p401
      %p403 = scmp.ne.s32.totalorder %s392, %s393
      %p404 = scmp.eq.s32.totalorder %s35, 0
      %p405 = por %p403, %p404
      %p406 = scmp.ne.s32.totalorder %s392, %s393
      %p407 = scmp.eq.s32.totalorder %s36, 1
      %p408 = por %p406, %p407
      %p410 = scmp.ne.s32.totalorder %s393, %s409
      %p411 = scmp.eq.s32.totalorder %s36, 0
      %p412 = por %p410, %p411
      %s414 = sadd.s32 %s413, 1
      %p417 = scmp.eq.s32.totalorder %s30, 1
      %p418 = scmp.ne.s32.totalorder %s413, %s415
      %p419 = scmp.eq.s32.totalorder %s30, 0
      %p420 = por %p418, %p419
      %p421 = scmp.ne.s32.totalorder %s413, %s415
      %p422 = scmp.eq.s32.totalorder %s35, 1
      %p423 = por %p421, %p422
      %p424 = scmp.ne.s32.totalorder %s415, %s416
      %p425 = scmp.eq.s32.totalorder %s35, 0
      %p426 = por %p424, %p425
      %p427 = scmp.ne.s32.totalorder %s415, %s416
      %p428 = scmp.eq.s32.totalorder %s36, 1
      %p429 = por %p427, %p428
      %p431 = scmp.ne.s32.totalorder %s416, %s430
      %p432 = scmp.eq.s32.totalorder %s36, 0
      %p433 = por %p431, %p432
      %s435 = sadd.s32 %s434, 1
      %p438 = scmp.eq.s32.totalorder %s30, 1
      %p439 = scmp.ne.s32.totalorder %s434, %s436
      %p440 = scmp.eq.s32.totalorder %s30, 0
      %p441 = por %p439, %p440
      %p442 = scmp.ne.s32.totalorder %s434, %s436
      %p443 = scmp.eq.s32.totalorder %s35, 1
      %p444 = por %p442, %p443
      %p445 = scmp.ne.s32.totalorder %s436, %s437
      %p446 = scmp.eq.s32.totalorder %s35, 0
      %p447 = por %p445, %p446
      %p448 = scmp.ne.s32.totalorder %s436, %s437
      %p449 = scmp.eq.s32.totalorder %s36, 1
      %p450 = por %p448, %p449
      %p452 = scmp.ne.s32.totalorder %s437, %s451
      %p453 = scmp.eq.s32.totalorder %s36, 0
      %p454 = por %p452, %p453
      %s456 = sadd.s32 %s455, 1
      %p459 = scmp.eq.s32.totalorder %s30, 1
      %p460 = scmp.ne.s32.totalorder %s455, %s457
      %p461 = scmp.eq.s32.totalorder %s30, 0
      %p462 = por %p460, %p461
      %p463 = scmp.ne.s32.totalorder %s455, %s457
      %p464 = scmp.eq.s32.totalorder %s35, 1
      %p465 = por %p463, %p464
      %p466 = scmp.ne.s32.totalorder %s457, %s458
      %p467 = scmp.eq.s32.totalorder %s35, 0
      %p468 = por %p466, %p467
      %p469 = scmp.ne.s32.totalorder %s457, %s458
      %p470 = scmp.eq.s32.totalorder %s36, 1
      %p471 = por %p469, %p470
      %p473 = scmp.ne.s32.totalorder %s458, %s472
      %p474 = scmp.eq.s32.totalorder %s36, 0
      %p475 = por %p473, %p474
      %p476 = scmp.le.s32.totalorder 1, %s30
      %p477 = scmp.lt.s32.totalorder %s30, 3
      %p478 = pnand %p476, %p477
      %p479 = pneg %p478
      // Predicated region
      $region9: #{torch_model_forward.1} parent=5 // pred_check
        _
      $region10: #{torch_model_forward.1} parent=5 // pred_check_branch
        %481 = sbr.rel (%p478) target = $region12
      $region11: #{torch_model_forward.1} parent=5 // pred_region
        %s482 = ssub.s32 %s30, 1
        // Predicated region
        $region13: #{torch_model_forward.1} parent=11 // pred_check
          %p483 = pneg %p51
        $region14: #{torch_model_forward.1} parent=11 // pred_check_branch
          %485 = sbr.rel (%p483) target = $region16
        $region15: #{torch_model_forward.1} parent=11 // pred_region
          _
        $region16: #{torch_model_forward.1} parent=11 // pred_fallthru
          _
        // Predicated region
        $region17: #{torch_model_forward.1} parent=11 // pred_check
          %p486 = pneg %p72
        $region18: #{torch_model_forward.1} parent=11 // pred_check_branch
          %488 = sbr.rel (%p486) target = $region20
        $region19: #{torch_model_forward.1} parent=11 // pred_region
          _
        $region20: #{torch_model_forward.1} parent=11 // pred_fallthru
          _
        // Predicated region
        $region21: #{torch_model_forward.1} parent=11 // pred_check
          %p489 = pneg %p93
        $region22: #{torch_model_forward.1} parent=11 // pred_check_branch
          %491 = sbr.rel (%p489) target = $region24
        $region23: #{torch_model_forward.1} parent=11 // pred_region
          _
        $region24: #{torch_model_forward.1} parent=11 // pred_fallthru
          _
        // Predicated region
        $region25: #{torch_model_forward.1} parent=11 // pred_check
          %p492 = pneg %p426
        $region26: #{torch_model_forward.1} parent=11 // pred_check_branch
          %494 = sbr.rel (%p492) target = $region28
        $region27: #{torch_model_forward.1} parent=11 // pred_region
          %s496 = ssub.s32 1024, 1024
          %497 = vsyncadd [#allocation9], %s496
          %s498 = sshll.u32 [#allocation8], 4
          %s499 = int_to_ptr.vmem [resolvable:$true] %s498
          %504 = dma.hbm_to_vmem [thread:$0]  %s15, 1024, %s499, [#allocation9], 64, 64, 4
        $region28: #{torch_model_forward.1} parent=11 // pred_fallthru
          _
        // Predicated region
        $region29: #{torch_model_forward.1} parent=11 // pred_check
          %p505 = pneg %p447
        $region30: #{torch_model_forward.1} parent=11 // pred_check_branch
          %507 = sbr.rel (%p505) target = $region32
        $region31: #{torch_model_forward.1} parent=11 // pred_region
          _
        $region32: #{torch_model_forward.1} parent=11 // pred_fallthru
          _
      $region12: #{torch_model_forward.1} parent=5 // pred_fallthru
        _
      %p508 = scmp.lt.s32.totalorder %s30, 2
      // Predicated region
      $region33: #{torch_model_forward.1} parent=5 // pred_check
        %p509 = pneg %p508
      $region34: #{torch_model_forward.1} parent=5 // pred_check_branch
        %511 = sbr.rel (%p509) target = $region36
      $region35: #{torch_model_forward.1} parent=5 // pred_region
        // Predicated region
        $region37: #{torch_model_forward.1} parent=35 // pred_check
          %p512 = pneg %p113
        $region38: #{torch_model_forward.1} parent=35 // pred_check_branch
          %514 = sbr.rel (%p512) target = $region40
        $region39: #{torch_model_forward.1} parent=35 // pred_region
          %s515 = sand.u32 %s103, 1
          %s516 = scalar_lea.sflag [#allocation4], %s515
          %s517 = sand.u32 %s103, 1
          %s518 = smul.addr %s517, 192
          %s519 = scalar_lea.vmem [#allocation3], %s518
          %s521 = ssub.s32 3072, 3072
          %522 = vsyncadd %s516, %s521
          %s523 = smul.addr %s30, 48
          %s524 = smul.addr %s523, 64
          %s525 = scalar_lea.hbm %s3, %s524
          %s526 = sshll.u32 %s519, 4
          %s527 = int_to_ptr.vmem [resolvable:$true] %s526
          %532 = dma.hbm_to_vmem [thread:$0]  %s525, 3072, %s527, %s516, 192, 192, 12
        $region40: #{torch_model_forward.1} parent=35 // pred_fallthru
          _
        // Predicated region
        $region41: #{torch_model_forward.1} parent=35 // pred_check
          %p533 = pneg %p139
        $region42: #{torch_model_forward.1} parent=35 // pred_check_branch
          %535 = sbr.rel (%p533) target = $region44
        $region43: #{torch_model_forward.1} parent=35 // pred_region
          %p536 = scmp.lt.s32.totalorder %s30, 1
          %s537 = scalar_select %p536, %s30, 1
          %s538 = smul.addr %s537, 3
          %s539 = scalar_lea.vmem %s4, %s538
        $region44: #{torch_model_forward.1} parent=35 // pred_fallthru
          _
        // Predicated region
        $region45: #{torch_model_forward.1} parent=35 // pred_check
          %p540 = pneg %p165
        $region46: #{torch_model_forward.1} parent=35 // pred_check_branch
          %542 = sbr.rel (%p540) target = $region48
        $region47: #{torch_model_forward.1} parent=35 // pred_region
          %s543 = sand.u32 %s30, 1
          %s544 = scalar_lea.sflag [#allocation6], %s543
          %s545 = sand.u32 %s155, 1
          %s546 = smul.addr %s545, 64
          %s547 = scalar_lea.vmem [#allocation5], %s546
          %s549 = ssub.s32 1024, 1024
          %550 = vsyncadd %s544, %s549
          %s551 = smul.addr %s30, 16
          %s552 = smul.addr %s551, 64
          %s553 = scalar_lea.hbm %s5, %s552
          %s554 = sshll.u32 %s547, 4
          %s555 = int_to_ptr.vmem [resolvable:$true] %s554
          %560 = dma.hbm_to_vmem [thread:$0]  %s553, 1024, %s555, %s544, 64, 64, 4
        $region48: #{torch_model_forward.1} parent=35 // pred_fallthru
          _
        // Predicated region
        $region49: #{torch_model_forward.1} parent=35 // pred_check
          %p561 = pneg %p191
        $region50: #{torch_model_forward.1} parent=35 // pred_check_branch
          %563 = sbr.rel (%p561) target = $region52
        $region51: #{torch_model_forward.1} parent=35 // pred_region
          %p564 = scmp.lt.s32.totalorder %s30, 1
          %s565 = scalar_select %p564, %s30, 1
          %s566 = scalar_lea.vmem %s6, %s565
        $region52: #{torch_model_forward.1} parent=35 // pred_fallthru
          _
        // Predicated region
        $region53: #{torch_model_forward.1} parent=35 // pred_check
          %p567 = pneg %p217
        $region54: #{torch_model_forward.1} parent=35 // pred_check_branch
          %569 = sbr.rel (%p567) target = $region56
        $region55: #{torch_model_forward.1} parent=35 // pred_region
          %p570 = scmp.lt.s32.totalorder %s30, 1
          %s571 = scalar_select %p570, %s30, 1
          %s572 = scalar_lea.vmem %s7, %s571
        $region56: #{torch_model_forward.1} parent=35 // pred_fallthru
          _
        // Predicated region
        $region57: #{torch_model_forward.1} parent=35 // pred_check
          %p573 = pneg %p243
        $region58: #{torch_model_forward.1} parent=35 // pred_check_branch
          %575 = sbr.rel (%p573) target = $region60
        $region59: #{torch_model_forward.1} parent=35 // pred_region
          %p576 = scmp.lt.s32.totalorder %s30, 1
          %s577 = scalar_select %p576, %s30, 1
          %s578 = scalar_lea.vmem %s8, %s577
        $region60: #{torch_model_forward.1} parent=35 // pred_fallthru
          _
        // Predicated region
        $region61: #{torch_model_forward.1} parent=35 // pred_check
          %p579 = pneg %p269
        $region62: #{torch_model_forward.1} parent=35 // pred_check_branch
          %581 = sbr.rel (%p579) target = $region64
        $region63: #{torch_model_forward.1} parent=35 // pred_region
          %p582 = scmp.lt.s32.totalorder %s30, 1
          %s583 = scalar_select %p582, %s30, 1
          %s584 = smul.addr %s583, 32
          %s585 = smul.addr %s584, 4
          %s586 = scalar_lea.vmem %s9, %s585
        $region64: #{torch_model_forward.1} parent=35 // pred_fallthru
          _
        // Predicated region
        $region65: #{torch_model_forward.1} parent=35 // pred_check
          %p587 = pneg %p295
        $region66: #{torch_model_forward.1} parent=35 // pred_check_branch
          %589 = sbr.rel (%p587) target = $region68
        $region67: #{torch_model_forward.1} parent=35 // pred_region
          %p590 = scmp.lt.s32.totalorder %s30, 1
          %s591 = scalar_select %p590, %s30, 1
          %s592 = smul.addr %s591, 2
          %s593 = scalar_lea.vmem %s10, %s592
        $region68: #{torch_model_forward.1} parent=35 // pred_fallthru
          _
        // Predicated region
        $region69: #{torch_model_forward.1} parent=35 // pred_check
          %p594 = pneg %p321
        $region70: #{torch_model_forward.1} parent=35 // pred_check_branch
          %596 = sbr.rel (%p594) target = $region72
        $region71: #{torch_model_forward.1} parent=35 // pred_region
          %s597 = sand.u32 %s30, 1
          %s598 = scalar_lea.sflag [#allocation6], %s597
          %s599 = sand.u32 %s311, 1
          %s600 = smul.addr %s599, 128
          %s601 = scalar_lea.vmem [#allocation7], %s600
          %s603 = ssub.s32 2048, 2048
          %604 = vsyncadd %s598, %s603
          %s605 = smul.addr %s30, 32
          %s606 = smul.addr %s605, 64
          %s607 = scalar_lea.hbm %s11, %s606
          %s608 = sshll.u32 %s601, 4
          %s609 = int_to_ptr.vmem [resolvable:$true] %s608
          %614 = dma.hbm_to_vmem [thread:$0]  %s607, 2048, %s609, %s598, 64, 64, 4
        $region72: #{torch_model_forward.1} parent=35 // pred_fallthru
          _
        // Predicated region
        $region73: #{torch_model_forward.1} parent=35 // pred_check
          %p615 = pneg %p347
        $region74: #{torch_model_forward.1} parent=35 // pred_check_branch
          %617 = sbr.rel (%p615) target = $region76
        $region75: #{torch_model_forward.1} parent=35 // pred_region
          %p618 = scmp.lt.s32.totalorder %s30, 1
          %s619 = scalar_select %p618, %s30, 1
          %s620 = scalar_lea.vmem %s12, %s619
        $region76: #{torch_model_forward.1} parent=35 // pred_fallthru
          _
        // Predicated region
        $region77: #{torch_model_forward.1} parent=35 // pred_check
          %p621 = pneg %p373
        $region78: #{torch_model_forward.1} parent=35 // pred_check_branch
          %623 = sbr.rel (%p621) target = $region80
        $region79: #{torch_model_forward.1} parent=35 // pred_region
          %p624 = scmp.lt.s32.totalorder %s30, 1
          %s625 = scalar_select %p624, %s30, 1
          %s626 = scalar_lea.vmem %s13, %s625
        $region80: #{torch_model_forward.1} parent=35 // pred_fallthru
          _
        // Predicated region
        $region81: #{torch_model_forward.1} parent=35 // pred_check
          %p627 = pneg %p399
        $region82: #{torch_model_forward.1} parent=35 // pred_check_branch
          %629 = sbr.rel (%p627) target = $region84
        $region83: #{torch_model_forward.1} parent=35 // pred_region
          %p630 = scmp.lt.s32.totalorder %s30, 1
          %s631 = scalar_select %p630, %s30, 1
          %s632 = scalar_lea.vmem %s14, %s631
        $region84: #{torch_model_forward.1} parent=35 // pred_fallthru
          _
      $region36: #{torch_model_forward.1} parent=5 // pred_fallthru
        _
      %p633 = scmp.le.s32.totalorder 1, %s30
      %p634 = scmp.lt.s32.totalorder %s30, 3
      %p635 = pnand %p633, %p634
      %p636 = pneg %p635
      // Predicated region
      $region85: #{torch_model_forward.1} parent=5 // pred_check
        _
      $region86: #{torch_model_forward.1} parent=5 // pred_check_branch
        %638 = sbr.rel (%p635) target = $region88
      $region87: #{torch_model_forward.1} parent=5 // pred_region
        %s639 = ssub.s32 %s30, 1
        %s640 = sand.u32 %s106, 1
        %s641 = scalar_lea.sflag [#allocation4], %s640
        %s642 = sand.u32 %s106, 1
        %s643 = smul.addr %s642, 192
        %s644 = scalar_lea.vmem [#allocation3], %s643
        // Predicated region
        $region89: #{torch_model_forward.1} parent=87 // pred_check
          %p645 = pneg %p119
        $region90: #{torch_model_forward.1} parent=87 // pred_check_branch
          %647 = sbr.rel (%p645) target = $region92
        $region91: #{torch_model_forward.1} parent=87 // pred_region
          %648 = dma.done %s641, 3072
        $region92: #{torch_model_forward.1} parent=87 // pred_fallthru
          _
        %s649 = sand.u32 %s35, 1
        %s650 = scalar_lea.sflag [#allocation6], %s649
        %s651 = sand.u32 %s158, 1
        %s652 = smul.addr %s651, 64
        %s653 = scalar_lea.vmem [#allocation5], %s652
        // Predicated region
        $region93: #{torch_model_forward.1} parent=87 // pred_check
          %p654 = pneg %p171
        $region94: #{torch_model_forward.1} parent=87 // pred_check_branch
          %656 = sbr.rel (%p654) target = $region96
        $region95: #{torch_model_forward.1} parent=87 // pred_region
          %657 = dma.done %s650, 1024
        $region96: #{torch_model_forward.1} parent=87 // pred_fallthru
          _
        %s658 = sand.u32 %s35, 1
        %s659 = scalar_lea.sflag [#allocation6], %s658
        %s660 = sand.u32 %s314, 1
        %s661 = smul.addr %s660, 128
        %s662 = scalar_lea.vmem [#allocation7], %s661
        // Predicated region
        $region97: #{torch_model_forward.1} parent=87 // pred_check
          %p663 = pneg %p327
        $region98: #{torch_model_forward.1} parent=87 // pred_check_branch
          %665 = sbr.rel (%p663) target = $region100
        $region99: #{torch_model_forward.1} parent=87 // pred_region
          %666 = dma.done %s659, 2048
        $region100: #{torch_model_forward.1} parent=87 // pred_fallthru
          _
        // Predicated region
        $region101: #{torch_model_forward.1} parent=87 // pred_check
          %p667 = pneg %p426
        $region102: #{torch_model_forward.1} parent=87 // pred_check_branch
          %669 = sbr.rel (%p667) target = $region104
        $region103: #{torch_model_forward.1} parent=87 // pred_region
          %670 = dma.done [#allocation9], 1024
        $region104: #{torch_model_forward.1} parent=87 // pred_fallthru
          _
        %p671 = pneg %p51
        %p672 = pneg %p48
        %p673 = pneg %p72
        %p674 = pneg %p69
        %p675 = pneg %p93
        %p676 = pneg %p90
        %s677 = sand.u32 %s106, 1
        %s678 = scalar_lea.sflag [#allocation4], %s677
        %s679 = sand.u32 %s106, 1
        %s680 = smul.addr %s679, 192
        %s681 = scalar_lea.vmem [#allocation3], %s680
        %p682 = pneg %p119
        %p683 = pneg %p116
        %p684 = scmp.lt.s32.totalorder %s35, 1
        %s685 = scalar_select %p684, %s35, 1
        %s686 = smul.addr %s685, 3
        %s687 = scalar_lea.vmem %s4, %s686
        %p688 = pneg %p145
        %p689 = pneg %p142
        %s690 = sand.u32 %s35, 1
        %s691 = scalar_lea.sflag [#allocation6], %s690
        %s692 = sand.u32 %s158, 1
        %s693 = smul.addr %s692, 64
        %s694 = scalar_lea.vmem [#allocation5], %s693
        %p695 = pneg %p171
        %p696 = pneg %p168
        %p697 = scmp.lt.s32.totalorder %s35, 1
        %s698 = scalar_select %p697, %s35, 1
        %s699 = scalar_lea.vmem %s6, %s698
        %p700 = pneg %p197
        %p701 = pneg %p194
        %p702 = scmp.lt.s32.totalorder %s35, 1
        %s703 = scalar_select %p702, %s35, 1
        %s704 = scalar_lea.vmem %s7, %s703
        %p705 = pneg %p223
        %p706 = pneg %p220
        %p707 = scmp.lt.s32.totalorder %s35, 1
        %s708 = scalar_select %p707, %s35, 1
        %s709 = scalar_lea.vmem %s8, %s708
        %p710 = pneg %p249
        %p711 = pneg %p246
        %p712 = scmp.lt.s32.totalorder %s35, 1
        %s713 = scalar_select %p712, %s35, 1
        %s714 = smul.addr %s713, 32
        %s715 = smul.addr %s714, 4
        %s716 = scalar_lea.vmem %s9, %s715
        %p717 = pneg %p275
        %p718 = pneg %p272
        %p719 = scmp.lt.s32.totalorder %s35, 1
        %s720 = scalar_select %p719, %s35, 1
        %s721 = smul.addr %s720, 2
        %s722 = scalar_lea.vmem %s10, %s721
        %p723 = pneg %p301
        %p724 = pneg %p298
        %s725 = sand.u32 %s35, 1
        %s726 = scalar_lea.sflag [#allocation6], %s725
        %s727 = sand.u32 %s314, 1
        %s728 = smul.addr %s727, 128
        %s729 = scalar_lea.vmem [#allocation7], %s728
        %p730 = pneg %p327
        %p731 = pneg %p324
        %p732 = scmp.lt.s32.totalorder %s35, 1
        %s733 = scalar_select %p732, %s35, 1
        %s734 = scalar_lea.vmem %s12, %s733
        %p735 = pneg %p353
        %p736 = pneg %p350
        %p737 = scmp.lt.s32.totalorder %s35, 1
        %s738 = scalar_select %p737, %s35, 1
        %s739 = scalar_lea.vmem %s13, %s738
        %p740 = pneg %p379
        %p741 = pneg %p376
        %p742 = scmp.lt.s32.totalorder %s35, 1
        %s743 = scalar_select %p742, %s35, 1
        %s744 = scalar_lea.vmem %s14, %s743
        %p745 = pneg %p405
        %p746 = pneg %p402
        %p747 = pneg %p426
        %p748 = pneg %p423
        %p749 = pneg %p447
        %p750 = pneg %p444
        %p751 = pneg %p468
        %p752 = pneg %p465
        %p753 = scmp.lt.s32.totalorder %s35, 1
        %s754 = scalar_select %p753, %s35, 1
        %s755 = smul.addr %s754, 3
        %s756 = scalar_lea.vmem %s4, %s755
        %p757 = scmp.lt.s32.totalorder %s35, 1
        %s758 = scalar_select %p757, %s35, 1
        %s759 = scalar_lea.vmem %s6, %s758
        %p760 = scmp.lt.s32.totalorder %s35, 1
        %s761 = scalar_select %p760, %s35, 1
        %s762 = scalar_lea.vmem %s7, %s761
        %p763 = scmp.lt.s32.totalorder %s35, 1
        %s764 = scalar_select %p763, %s35, 1
        %s765 = scalar_lea.vmem %s8, %s764
        %p766 = scmp.lt.s32.totalorder %s35, 1
        %s767 = scalar_select %p766, %s35, 1
        %s768 = smul.addr %s767, 32
        %s769 = smul.addr %s768, 4
        %s770 = scalar_lea.vmem %s9, %s769
        %p771 = scmp.lt.s32.totalorder %s35, 1
        %s772 = scalar_select %p771, %s35, 1
        %s773 = smul.addr %s772, 2
        %s774 = scalar_lea.vmem %s10, %s773
        %p775 = scmp.lt.s32.totalorder %s35, 1
        %s776 = scalar_select %p775, %s35, 1
        %s777 = scalar_lea.vmem %s12, %s776
        %p778 = scmp.lt.s32.totalorder %s35, 1
        %s779 = scalar_select %p778, %s35, 1
        %s780 = scalar_lea.vmem %s13, %s779
        %p781 = scmp.lt.s32.totalorder %s35, 1
        %s782 = scalar_select %p781, %s35, 1
        %s783 = scalar_lea.vmem %s14, %s782
        %p785 = scmp.eq.s32.totalorder %s35, 0
        // Predicated region
        $region105: #{torch_model_forward.1} parent=87 // pred_check
          %p786 = pneg %p785
        $region106: #{torch_model_forward.1} parent=87 // pred_check_branch
          %788 = sbr.rel (%p786) target = $region108
        $region107: #{torch_model_forward.1} parent=87 // pred_region
          %v789 = vld [vmem:[%s0] sm:$0xff]
          %v790 = vld [vmem:[%s0 + $0x8] sm:$0xff]
          %v791 = vld [vmem:[%s1] sm:$0x1]
          %v792 = vld [vmem:[%s2] sm:$0x1]
          %793 = vadd.xlane.f32.xlu0 %v789
          %v794 = vpop.xlane.xlu0 %793
          %795 = vadd.xlane.f32.xlu0 %v790
          %v796 = vpop.xlane.xlu0 %795
          %v797 = vrcp.pop 128.0
          %v798 = vmul.f32 %v794, %v797
          %v799 = vmul.f32 %v796, %v797
          %v800 = vsub.f32 %v789, %v798
          %v801 = vsub.f32 %v790, %v799
          %v802 = vmul.f32 %v800, %v800
          %v803 = vmul.f32 %v801, %v801
          %804 = vadd.xlane.f32.xlu0 %v802
          %v805 = vpop.xlane.xlu0 %804
          %806 = vadd.xlane.f32.xlu0 %v803
          %v807 = vpop.xlane.xlu0 %806
          %v808 = vmul.f32 %v805, %v797
          %v809 = vmul.f32 %v807, %v797
          %v810 = vadd.f32 %v808, 1e-12
          %v811 = vadd.f32 %v809, 1e-12
          %v812 = vrsqrt.pop %v810
          %v813 = vrsqrt.pop %v811
          %v814 = vmul.f32 %v800, %v812
          %v815 = vmul.f32 %v801, %v813
          %v817 = vlaneseq
          %v818 = vshrl.u32 %v817, 7
          %v819 = vsub.s32 0, %v818
          %v820 = vrot.slane %v791, %v819
          %v822 = vmul.f32 %v814, %v820
          %v823 = vmul.f32 %v815, %v820
          %v825 = vlaneseq
          %v826 = vshrl.u32 %v825, 7
          %v827 = vsub.s32 0, %v826
          %v828 = vrot.slane %v792, %v827
          %v830 = vadd.f32 %v822, %v828
          %v831 = vadd.f32 %v823, %v828
          %832 = vst [vmem:[#allocation2] sm:$0xff] %v830
          %833 = vst [vmem:[#allocation2 + $0x8] sm:$0xff] %v831
        $region108: #{torch_model_forward.1} parent=87 // pred_fallthru
          _
        %v834 = vld [vmem:[#allocation2] sm:$0xff]
        %v835 = vld [vmem:[#allocation2 + $0x8] sm:$0xff]
        %v836 = vpack.c.bf16 %v835, %v834
        %v837 = vld [vmem:[%s644] sm:$0xff]
        %v838 = vld [vmem:[%s644 + $0x8] sm:$0xf]
        %v839 = vld [vmem:[%s644 + $0xc] sm:$0xff]
        %v840 = vld [vmem:[%s644 + $0x14] sm:$0xf]
        %v841 = vld [vmem:[%s644 + $0x18] sm:$0xff]
        %v842 = vld [vmem:[%s644 + $0x20] sm:$0xf]
        %v843 = vld [vmem:[%s644 + $0x24] sm:$0xff]
        %v844 = vld [vmem:[%s644 + $0x2c] sm:$0xf]
        %v845 = vld [vmem:[%s644 + $0x30] sm:$0xff]
        %v846 = vld [vmem:[%s644 + $0x38] sm:$0xf]
        %v847 = vld [vmem:[%s644 + $0x3c] sm:$0xff]
        %v848 = vld [vmem:[%s644 + $0x44] sm:$0xf]
        %v849 = vld [vmem:[%s644 + $0x48] sm:$0xff]
        %v850 = vld [vmem:[%s644 + $0x50] sm:$0xf]
        %v851 = vld [vmem:[%s644 + $0x54] sm:$0xff]
        %v852 = vld [vmem:[%s644 + $0x5c] sm:$0xf]
        %v853 = vld [vmem:[%s644 + $0x60] sm:$0xff]
        %v854 = vld [vmem:[%s644 + $0x68] sm:$0xf]
        %v855 = vld [vmem:[%s644 + $0x6c] sm:$0xff]
        %v856 = vld [vmem:[%s644 + $0x74] sm:$0xf]
        %v857 = vld [vmem:[%s644 + $0x78] sm:$0xff]
        %v858 = vld [vmem:[%s644 + $0x80] sm:$0xf]
        %v859 = vld [vmem:[%s644 + $0x84] sm:$0xff]
        %v860 = vld [vmem:[%s644 + $0x8c] sm:$0xf]
        %v861 = vld [vmem:[%s644 + $0x90] sm:$0xff]
        %v862 = vld [vmem:[%s644 + $0x98] sm:$0xf]
        %v863 = vld [vmem:[%s644 + $0x9c] sm:$0xff]
        %v864 = vld [vmem:[%s644 + $0xa4] sm:$0xf]
        %v865 = vld [vmem:[%s644 + $0xa8] sm:$0xff]
        %v866 = vld [vmem:[%s644 + $0xb0] sm:$0xf]
        %v867 = vld [vmem:[%s644 + $0xb4] sm:$0xff]
        %v868 = vld [vmem:[%s644 + $0xbc] sm:$0xf]
        %v869 = vld [vmem:[%s756] sm:$0x7]
        %v871 = vlaneseq
        %v872 = vshrl.u32 %v871, 7
        %v873 = vsub.s32 0, %v872
        %v874 = vrot.slane %v869, %v873
        %v875 = vlaneseq
        %v876 = vshrl.u32 %v875, 7
        %v877 = vsub.s32 1, %v876
        %v878 = vrot.slane %v869, %v877
        %v879 = vlaneseq
        %v880 = vshrl.u32 %v879, 7
        %v881 = vsub.s32 2, %v880
        %v882 = vrot.slane %v869, %v881
        %v918 = vunpack.c.l.b16 %v837
        %v919 = vunpack.c.h.b16 %v837
        %v920 = vunpack.c.l.b16 %v838
        %v921 = vunpack.c.l.b16 %v839
        %v922 = vunpack.c.h.b16 %v839
        %v923 = vunpack.c.l.b16 %v840
        %v924 = vunpack.c.l.b16 %v841
        %v925 = vunpack.c.h.b16 %v841
        %v926 = vunpack.c.l.b16 %v842
        %v927 = vunpack.c.l.b16 %v843
        %v928 = vunpack.c.h.b16 %v843
        %v929 = vunpack.c.l.b16 %v844
        %v930 = vunpack.c.l.b16 %v845
        %v931 = vunpack.c.h.b16 %v845
        %v932 = vunpack.c.l.b16 %v846
        %v933 = vunpack.c.l.b16 %v847
        %v934 = vunpack.c.h.b16 %v847
        %v935 = vunpack.c.l.b16 %v848
        %v936 = vunpack.c.l.b16 %v849
        %v937 = vunpack.c.h.b16 %v849
        %v938 = vunpack.c.l.b16 %v850
        %v939 = vunpack.c.l.b16 %v851
        %v940 = vunpack.c.h.b16 %v851
        %v941 = vunpack.c.l.b16 %v852
        %v942 = vunpack.c.l.b16 %v853
        %v943 = vunpack.c.h.b16 %v853
        %v944 = vunpack.c.l.b16 %v854
        %v945 = vunpack.c.l.b16 %v855
        %v946 = vunpack.c.h.b16 %v855
        %v947 = vunpack.c.l.b16 %v856
        %v948 = vunpack.c.l.b16 %v857
        %v949 = vunpack.c.h.b16 %v857
        %v950 = vunpack.c.l.b16 %v858
        %v951 = vunpack.c.l.b16 %v859
        %v952 = vunpack.c.h.b16 %v859
        %v953 = vunpack.c.l.b16 %v860
        %v954 = vunpack.c.l.b16 %v861
        %v955 = vunpack.c.h.b16 %v861
        %v956 = vunpack.c.l.b16 %v862
        %v957 = vunpack.c.l.b16 %v863
        %v958 = vunpack.c.h.b16 %v863
        %v959 = vunpack.c.l.b16 %v864
        %v960 = vunpack.c.l.b16 %v865
        %v961 = vunpack.c.h.b16 %v865
        %v962 = vunpack.c.l.b16 %v866
        %v963 = vunpack.c.l.b16 %v867
        %v964 = vunpack.c.h.b16 %v867
        %v965 = vunpack.c.l.b16 %v868
        %v966 = vpack.c.b16 %v921, %v918
        %v967 = vpack.c.b16 %v922, %v919
        %v968 = vpack.c.b16 %v923, %v920
        %v969 = vpack.c.b16 %v927, %v924
        %v970 = vpack.c.b16 %v928, %v925
        %v971 = vpack.c.b16 %v929, %v926
        %v972 = vpack.c.b16 %v933, %v930
        %v973 = vpack.c.b16 %v934, %v931
        %v974 = vpack.c.b16 %v935, %v932
        %v975 = vpack.c.b16 %v939, %v936
        %v976 = vpack.c.b16 %v940, %v937
        %v977 = vpack.c.b16 %v941, %v938
        %v978 = vpack.c.b16 %v945, %v942
        %v979 = vpack.c.b16 %v946, %v943
        %v980 = vpack.c.b16 %v947, %v944
        %v981 = vpack.c.b16 %v951, %v948
        %v982 = vpack.c.b16 %v952, %v949
        %v983 = vpack.c.b16 %v953, %v950
        %v984 = vpack.c.b16 %v957, %v954
        %v985 = vpack.c.b16 %v958, %v955
        %v986 = vpack.c.b16 %v959, %v956
        %v987 = vpack.c.b16 %v963, %v960
        %v988 = vpack.c.b16 %v964, %v961
        %v989 = vpack.c.b16 %v965, %v962
        %1014 = vmatprep.subr.bf16.mxu0 %v967
        %1015 = vmatpush1.bf16.msra.mxu0 %v966
        %1016 = vmatprep.subr.bf16.mxu0 %v970
        %1017 = vmatpush1.bf16.msra.mxu0 %v969
        %1018 = vmatprep.subr.bf16.mxu0 %v973
        %1019 = vmatpush1.bf16.msra.mxu0 %v972
        %1020 = vmatprep.subr.bf16.mxu0 %v976
        %1021 = vmatpush1.bf16.msra.mxu0 %v975
        %1022 = vmatprep.subr.bf16.mxu0 %v979
        %1023 = vmatpush1.bf16.msra.mxu0 %v978
        %1024 = vmatprep.subr.bf16.mxu0 %v982
        %1025 = vmatpush1.bf16.msra.mxu0 %v981
        %1026 = vmatprep.subr.bf16.mxu0 %v985
        %1027 = vmatpush1.bf16.msra.mxu0 %v984
        %1028 = vmatprep.subr.bf16.mxu0 %v988
        %1029 = vmatpush1.bf16.msra.mxu0 %v987
        %1030 = vmatprep.subr.bf16.mxu0 0
        %1031 = vmatpush1.bf16.msra.mxu0 0
        %1032 = vmatprep.subr.bf16.mxu0 0
        %1033 = vmatpush1.bf16.msra.mxu0 0
        %1034 = vmatprep.subr.bf16.mxu0 0
        %1035 = vmatpush1.bf16.msra.mxu0 0
        %1036 = vmatprep.subr.bf16.mxu0 0
        %1037 = vmatpush1.bf16.msra.mxu0 0
        %1038 = vmatprep.subr.bf16.mxu0 0
        %1039 = vmatpush1.bf16.msra.mxu0 0
        %1040 = vmatprep.subr.bf16.mxu0 0
        %1041 = vmatpush1.bf16.msra.mxu0 0
        %1042 = vmatprep.subr.bf16.mxu0 0
        %1043 = vmatpush1.bf16.msra.mxu0 0
        %1044 = vmatprep.subr.bf16.mxu0 0
        %1045 = vmatpush1.bf16.msra.mxu0 0
        %1046 = vmatprep.mubr.bf16.mxu0 0
        %1047 = vmatmul.mubr.bf16.gmra.mrb[0].mxu0 %v836
        %v1048 = vpop.f32.mrb[0].mxu0
        %v1049 = vadd.f32 %v874, %v1048
        %v1050 = vpop.f32.mrb[0].mxu0
        %v1051 = vadd.f32 %v878, %v1050
        %v1052 = vpop.f32.mrb[0].mxu0
        %v1053 = vadd.f32 %v874, %v1052
        %v1054 = vpop.f32.mrb[0].mxu0
        %v1055 = vadd.f32 %v878, %v1054
        %1056 = vdwg.mxu0
        %1057 = vmatprep.subr.bf16.mxu0 0
        %1058 = vmatpush1.bf16.msra.mxu0 %v968
        %1059 = vmatprep.subr.bf16.mxu0 0
        %1060 = vmatpush1.bf16.msra.mxu0 %v971
        %1061 = vmatprep.subr.bf16.mxu0 0
        %1062 = vmatpush1.bf16.msra.mxu0 %v974
        %1063 = vmatprep.subr.bf16.mxu0 0
        %1064 = vmatpush1.bf16.msra.mxu0 %v977
        %1065 = vmatprep.subr.bf16.mxu0 0
        %1066 = vmatpush1.bf16.msra.mxu0 %v980
        %1067 = vmatprep.subr.bf16.mxu0 0
        %1068 = vmatpush1.bf16.msra.mxu0 %v983
        %1069 = vmatprep.subr.bf16.mxu0 0
        %1070 = vmatpush1.bf16.msra.mxu0 %v986
        %1071 = vmatprep.subr.bf16.mxu0 0
        %1072 = vmatpush1.bf16.msra.mxu0 %v989
        %1073 = vmatprep.subr.bf16.mxu0 0
        %1074 = vmatpush1.bf16.msra.mxu0 0
        %1075 = vmatprep.subr.bf16.mxu0 0
        %1076 = vmatpush1.bf16.msra.mxu0 0
        %1077 = vmatprep.subr.bf16.mxu0 0
        %1078 = vmatpush1.bf16.msra.mxu0 0
        %1079 = vmatprep.subr.bf16.mxu0 0
        %1080 = vmatpush1.bf16.msra.mxu0 0
        %1081 = vmatprep.subr.bf16.mxu0 0
        %1082 = vmatpush1.bf16.msra.mxu0 0
        %1083 = vmatprep.subr.bf16.mxu0 0
        %1084 = vmatpush1.bf16.msra.mxu0 0
        %1085 = vmatprep.subr.bf16.mxu0 0
        %1086 = vmatpush1.bf16.msra.mxu0 0
        %1087 = vmatprep.subr.bf16.mxu0 0
        %1088 = vmatpush1.bf16.msra.mxu0 0
        %1089 = vmatprep.mubr.bf16.mxu0 0
        %1090 = vmatmul.mubr.bf16.gmra.mrb[0].mxu0 %v836
        %v1091 = vpop.f32.mrb[0].mxu0
        %v1092 = vadd.f32 %v882, %v1091
        %v1093 = vpop.f32.mrb[0].mxu0
        %v1094 = vpop.f32.mrb[0].mxu0
        %v1095 = vadd.f32 %v882, %v1094
        %v1096 = vpop.f32.mrb[0].mxu0
        %1097 = vdwg.mxu0
        %v1098 = vpack.c.bf16 %v1049, %v1049
        %v1099 = vpack.c.bf16 %v1051, %v1051
        %v1100 = vpack.c.bf16 %v1092, %v1092
        %vm1101 = vcmask 261120
        %v1103 = vsel %vm1101, %v1098, 0
        %v1106 = vsel %vm1101, %v1099, 0
        %1108 = vmatprep.subr.bf16.mxu0 0
        %1109 = vmatpush1.bf16.xpose.msra.mxu0 %v1106
        %1110 = vmatprep.subr.bf16.mxu0 0
        %1111 = vmatpush1.bf16.xpose.msra.mxu0 0
        %1112 = vmatprep.subr.bf16.mxu0 0
        %1113 = vmatpush1.bf16.xpose.msra.mxu0 0
        %1114 = vmatprep.subr.bf16.mxu0 0
        %1115 = vmatpush1.bf16.xpose.msra.mxu0 0
        %1116 = vmatprep.subr.bf16.mxu0 0
        %1117 = vmatpush1.bf16.xpose.msra.mxu0 0
        %1118 = vmatprep.subr.bf16.mxu0 0
        %1119 = vmatpush1.bf16.xpose.msra.mxu0 0
        %1120 = vmatprep.subr.bf16.mxu0 0
        %1121 = vmatpush1.bf16.xpose.msra.mxu0 0
        %1122 = vmatprep.subr.bf16.mxu0 0
        %1123 = vmatpush1.bf16.xpose.msra.mxu0 0
        %1124 = vmatprep.subr.bf16.mxu0 0
        %1125 = vmatpush1.bf16.xpose.msra.mxu0 0
        %1126 = vmatprep.subr.bf16.mxu0 0
        %1127 = vmatpush1.bf16.xpose.msra.mxu0 0
        %1128 = vmatprep.subr.bf16.mxu0 0
        %1129 = vmatpush1.bf16.xpose.msra.mxu0 0
        %1130 = vmatprep.subr.bf16.mxu0 0
        %1131 = vmatpush1.bf16.xpose.msra.mxu0 0
        %1132 = vmatprep.subr.bf16.mxu0 0
        %1133 = vmatpush1.bf16.xpose.msra.mxu0 0
        %1134 = vmatprep.subr.bf16.mxu0 0
        %1135 = vmatpush1.bf16.xpose.msra.mxu0 0
        %1136 = vmatprep.subr.bf16.mxu0 0
        %1137 = vmatpush1.bf16.xpose.msra.mxu0 0
        %1138 = vmatprep.subr.bf16.mxu0 0
        %1139 = vmatpush1.bf16.xpose.msra.mxu0 0
        %1140 = vmatprep.mubr.bf16.mxu0 0
        %1141 = vmatmul.mubr.bf16.gmra.mrb[0].mxu0 %v1103
        %v1142 = vpop.f32.mrb[0].mxu0
        %v1143 = vadd.f32 0.0, %v1142
        %v1144 = vpop.f32.mrb[0].mxu0
        %v1145 = vpop.f32.mrb[0].mxu0
        %v1146 = vpop.f32.mrb[0].mxu0
        %1147 = vdwg.mxu0
        %v1148 = vmul.f32 %v1143, 0.17677669
        %vm1149 = vcmask 64512
        %v1150 = vsel %vm1149, %v1148, -inf
        %1151 = vmax.xlane.f32.xlu0 %v1150
        %v1152 = vpop.xlane.xlu0 %1151
        %v1153 = vsub.f32 %v1148, %v1152
        %v1154 = vmul.f32 %v1153, 1.442695
        %v1155 = vpow.pop %v1154
        %v1156 = vsel %vm1149, %v1155, 0.0
        %1157 = vadd.xlane.f32.xlu0 %v1156
        %v1158 = vpop.xlane.xlu0 %1157
        %v1159 = vrcp.pop %v1158
        %v1160 = vmul.f32 %v1155, %v1159
        %v1161 = vpack.c.bf16 %v1160, %v1160
        %v1163 = vsel %vm1149, %v1161, 0
        %vm1165 = vcmask 1043456
        %v1167 = vsel %vm1165, %v1100, 0
        %1169 = vmatprep.subr.bf16.mxu0 0
        %1170 = vmatpush1.bf16.msra.mxu0 %v1167
        %1171 = vmatprep.subr.bf16.mxu0 0
        %1172 = vmatpush1.bf16.msra.mxu0 0
        %1173 = vmatprep.subr.bf16.mxu0 0
        %1174 = vmatpush1.bf16.msra.mxu0 0
        %1175 = vmatprep.subr.bf16.mxu0 0
        %1176 = vmatpush1.bf16.msra.mxu0 0
        %1177 = vmatprep.subr.bf16.mxu0 0
        %1178 = vmatpush1.bf16.msra.mxu0 0
        %1179 = vmatprep.subr.bf16.mxu0 0
        %1180 = vmatpush1.bf16.msra.mxu0 0
        %1181 = vmatprep.subr.bf16.mxu0 0
        %1182 = vmatpush1.bf16.msra.mxu0 0
        %1183 = vmatprep.subr.bf16.mxu0 0
        %1184 = vmatpush1.bf16.msra.mxu0 0
        %1185 = vmatprep.subr.bf16.mxu0 0
        %1186 = vmatpush1.bf16.msra.mxu0 0
        %1187 = vmatprep.subr.bf16.mxu0 0
        %1188 = vmatpush1.bf16.msra.mxu0 0
        %1189 = vmatprep.subr.bf16.mxu0 0
        %1190 = vmatpush1.bf16.msra.mxu0 0
        %1191 = vmatprep.subr.bf16.mxu0 0
        %1192 = vmatpush1.bf16.msra.mxu0 0
        %1193 = vmatprep.subr.bf16.mxu0 0
        %1194 = vmatpush1.bf16.msra.mxu0 0
        %1195 = vmatprep.subr.bf16.mxu0 0
        %1196 = vmatpush1.bf16.msra.mxu0 0
        %1197 = vmatprep.subr.bf16.mxu0 0
        %1198 = vmatpush1.bf16.msra.mxu0 0
        %1199 = vmatprep.subr.bf16.mxu0 0
        %1200 = vmatpush1.bf16.msra.mxu0 0
        %1201 = vmatprep.mubr.bf16.mxu0 0
        %1202 = vmatmul.mubr.bf16.gmra.mrb[0].mxu0 %v1163
        %v1203 = vpop.f32.mrb[0].mxu0
        %v1204 = vadd.f32 0.0, %v1203
        %v1205 = vpop.f32.mrb[0].mxu0
        %v1206 = vpop.f32.mrb[0].mxu0
        %v1207 = vpop.f32.mrb[0].mxu0
        %1208 = vdwg.mxu0
        %1210 = vrot.lane.b32.xlu0 %v1098, 96
        %v1211 = vpop.permute.xlu0 %1210
        %1213 = vrot.lane.b32.xlu0 %v1099, 96
        %v1214 = vpop.permute.xlu0 %1213
        %v1216 = vsel %vm1101, %v1211, 0
        %v1219 = vsel %vm1101, %v1214, 0
        %1221 = vmatprep.subr.bf16.mxu0 0
        %1222 = vmatpush1.bf16.xpose.msra.mxu0 %v1219
        %1223 = vmatprep.subr.bf16.mxu0 0
        %1224 = vmatpush1.bf16.xpose.msra.mxu0 0
        %1225 = vmatprep.subr.bf16.mxu0 0
        %1226 = vmatpush1.bf16.xpose.msra.mxu0 0
        %1227 = vmatprep.subr.bf16.mxu0 0
        %1228 = vmatpush1.bf16.xpose.msra.mxu0 0
        %1229 = vmatprep.subr.bf16.mxu0 0
        %1230 = vmatpush1.bf16.xpose.msra.mxu0 0
        %1231 = vmatprep.subr.bf16.mxu0 0
        %1232 = vmatpush1.bf16.xpose.msra.mxu0 0
        %1233 = vmatprep.subr.bf16.mxu0 0
        %1234 = vmatpush1.bf16.xpose.msra.mxu0 0
        %1235 = vmatprep.subr.bf16.mxu0 0
        %1236 = vmatpush1.bf16.xpose.msra.mxu0 0
        %1237 = vmatprep.subr.bf16.mxu0 0
        %1238 = vmatpush1.bf16.xpose.msra.mxu0 0
        %1239 = vmatprep.subr.bf16.mxu0 0
        %1240 = vmatpush1.bf16.xpose.msra.mxu0 0
        %1241 = vmatprep.subr.bf16.mxu0 0
        %1242 = vmatpush1.bf16.xpose.msra.mxu0 0
        %1243 = vmatprep.subr.bf16.mxu0 0
        %1244 = vmatpush1.bf16.xpose.msra.mxu0 0
        %1245 = vmatprep.subr.bf16.mxu0 0
        %1246 = vmatpush1.bf16.xpose.msra.mxu0 0
        %1247 = vmatprep.subr.bf16.mxu0 0
        %1248 = vmatpush1.bf16.xpose.msra.mxu0 0
        %1249 = vmatprep.subr.bf16.mxu0 0
        %1250 = vmatpush1.bf16.xpose.msra.mxu0 0
        %1251 = vmatprep.subr.bf16.mxu0 0
        %1252 = vmatpush1.bf16.xpose.msra.mxu0 0
        %1253 = vmatprep.mubr.bf16.mxu0 0
        %1254 = vmatmul.mubr.bf16.gmra.mrb[0].mxu0 %v1216
        %v1255 = vpop.f32.mrb[0].mxu0
        %v1256 = vadd.f32 0.0, %v1255
        %v1257 = vpop.f32.mrb[0].mxu0
        %v1258 = vpop.f32.mrb[0].mxu0
        %v1259 = vpop.f32.mrb[0].mxu0
        %1260 = vdwg.mxu0
        %v1261 = vmul.f32 %v1256, 0.17677669
        %v1262 = vsel %vm1149, %v1261, -inf
        %1263 = vmax.xlane.f32.xlu0 %v1262
        %v1264 = vpop.xlane.xlu0 %1263
        %v1265 = vsub.f32 %v1261, %v1264
        %v1266 = vmul.f32 %v1265, 1.442695
        %v1267 = vpow.pop %v1266
        %v1268 = vsel %vm1149, %v1267, 0.0
        %1269 = vadd.xlane.f32.xlu0 %v1268
        %v1270 = vpop.xlane.xlu0 %1269
        %v1271 = vrcp.pop %v1270
        %v1272 = vmul.f32 %v1267, %v1271
        %v1273 = vpack.c.bf16 %v1272, %v1272
        %1275 = vrot.lane.b32.xlu0 %v1100, 96
        %v1276 = vpop.permute.xlu0 %1275
        %v1278 = vsel %vm1149, %v1273, 0
        %v1281 = vsel %vm1165, %v1276, 0
        %1283 = vmatprep.subr.bf16.mxu0 0
        %1284 = vmatpush1.bf16.msra.mxu0 %v1281
        %1285 = vmatprep.subr.bf16.mxu0 0
        %1286 = vmatpush1.bf16.msra.mxu0 0
        %1287 = vmatprep.subr.bf16.mxu0 0
        %1288 = vmatpush1.bf16.msra.mxu0 0
        %1289 = vmatprep.subr.bf16.mxu0 0
        %1290 = vmatpush1.bf16.msra.mxu0 0
        %1291 = vmatprep.subr.bf16.mxu0 0
        %1292 = vmatpush1.bf16.msra.mxu0 0
        %1293 = vmatprep.subr.bf16.mxu0 0
        %1294 = vmatpush1.bf16.msra.mxu0 0
        %1295 = vmatprep.subr.bf16.mxu0 0
        %1296 = vmatpush1.bf16.msra.mxu0 0
        %1297 = vmatprep.subr.bf16.mxu0 0
        %1298 = vmatpush1.bf16.msra.mxu0 0
        %1299 = vmatprep.subr.bf16.mxu0 0
        %1300 = vmatpush1.bf16.msra.mxu0 0
        %1301 = vmatprep.subr.bf16.mxu0 0
        %1302 = vmatpush1.bf16.msra.mxu0 0
        %1303 = vmatprep.subr.bf16.mxu0 0
        %1304 = vmatpush1.bf16.msra.mxu0 0
        %1305 = vmatprep.subr.bf16.mxu0 0
        %1306 = vmatpush1.bf16.msra.mxu0 0
        %1307 = vmatprep.subr.bf16.mxu0 0
        %1308 = vmatpush1.bf16.msra.mxu0 0
        %1309 = vmatprep.subr.bf16.mxu0 0
        %1310 = vmatpush1.bf16.msra.mxu0 0
        %1311 = vmatprep.subr.bf16.mxu0 0
        %1312 = vmatpush1.bf16.msra.mxu0 0
        %1313 = vmatprep.subr.bf16.mxu0 0
        %1314 = vmatpush1.bf16.msra.mxu0 0
        %1315 = vmatprep.mubr.bf16.mxu0 0
        %1316 = vmatmul.mubr.bf16.gmra.mrb[0].mxu0 %v1278
        %v1317 = vpop.f32.mrb[0].mxu0
        %v1318 = vadd.f32 0.0, %v1317
        %v1319 = vpop.f32.mrb[0].mxu0
        %v1320 = vpop.f32.mrb[0].mxu0
        %v1321 = vpop.f32.mrb[0].mxu0
        %1322 = vdwg.mxu0
        %1323 = vrot.lane.b32.xlu0 %v1098, 64
        %v1324 = vpop.permute.xlu0 %1323
        %1325 = vrot.lane.b32.xlu0 %v1099, 64
        %v1326 = vpop.permute.xlu0 %1325
        %v1328 = vsel %vm1101, %v1324, 0
        %v1331 = vsel %vm1101, %v1326, 0
        %1333 = vmatprep.subr.bf16.mxu0 0
        %1334 = vmatpush1.bf16.xpose.msra.mxu0 %v1331
        %1335 = vmatprep.subr.bf16.mxu0 0
        %1336 = vmatpush1.bf16.xpose.msra.mxu0 0
        %1337 = vmatprep.subr.bf16.mxu0 0
        %1338 = vmatpush1.bf16.xpose.msra.mxu0 0
        %1339 = vmatprep.subr.bf16.mxu0 0
        %1340 = vmatpush1.bf16.xpose.msra.mxu0 0
        %1341 = vmatprep.subr.bf16.mxu0 0
        %1342 = vmatpush1.bf16.xpose.msra.mxu0 0
        %1343 = vmatprep.subr.bf16.mxu0 0
        %1344 = vmatpush1.bf16.xpose.msra.mxu0 0
        %1345 = vmatprep.subr.bf16.mxu0 0
        %1346 = vmatpush1.bf16.xpose.msra.mxu0 0
        %1347 = vmatprep.subr.bf16.mxu0 0
        %1348 = vmatpush1.bf16.xpose.msra.mxu0 0
        %1349 = vmatprep.subr.bf16.mxu0 0
        %1350 = vmatpush1.bf16.xpose.msra.mxu0 0
        %1351 = vmatprep.subr.bf16.mxu0 0
        %1352 = vmatpush1.bf16.xpose.msra.mxu0 0
        %1353 = vmatprep.subr.bf16.mxu0 0
        %1354 = vmatpush1.bf16.xpose.msra.mxu0 0
        %1355 = vmatprep.subr.bf16.mxu0 0
        %1356 = vmatpush1.bf16.xpose.msra.mxu0 0
        %1357 = vmatprep.subr.bf16.mxu0 0
        %1358 = vmatpush1.bf16.xpose.msra.mxu0 0
        %1359 = vmatprep.subr.bf16.mxu0 0
        %1360 = vmatpush1.bf16.xpose.msra.mxu0 0
        %1361 = vmatprep.subr.bf16.mxu0 0
        %1362 = vmatpush1.bf16.xpose.msra.mxu0 0
        %1363 = vmatprep.subr.bf16.mxu0 0
        %1364 = vmatpush1.bf16.xpose.msra.mxu0 0
        %1365 = vmatprep.mubr.bf16.mxu0 0
        %1366 = vmatmul.mubr.bf16.gmra.mrb[0].mxu0 %v1328
        %v1367 = vpop.f32.mrb[0].mxu0
        %v1368 = vadd.f32 0.0, %v1367
        %v1369 = vpop.f32.mrb[0].mxu0
        %v1370 = vpop.f32.mrb[0].mxu0
        %v1371 = vpop.f32.mrb[0].mxu0
        %1372 = vdwg.mxu0
        %v1373 = vmul.f32 %v1368, 0.17677669
        %v1374 = vsel %vm1149, %v1373, -inf
        %1375 = vmax.xlane.f32.xlu0 %v1374
        %v1376 = vpop.xlane.xlu0 %1375
        %v1377 = vsub.f32 %v1373, %v1376
        %v1378 = vmul.f32 %v1377, 1.442695
        %v1379 = vpow.pop %v1378
        %v1380 = vsel %vm1149, %v1379, 0.0
        %1381 = vadd.xlane.f32.xlu0 %v1380
        %v1382 = vpop.xlane.xlu0 %1381
        %v1383 = vrcp.pop %v1382
        %v1384 = vmul.f32 %v1379, %v1383
        %v1385 = vpack.c.bf16 %v1384, %v1384
        %1386 = vrot.lane.b32.xlu0 %v1100, 64
        %v1387 = vpop.permute.xlu0 %1386
        %v1389 = vsel %vm1149, %v1385, 0
        %v1392 = vsel %vm1165, %v1387, 0
        %1394 = vmatprep.subr.bf16.mxu0 0
        %1395 = vmatpush1.bf16.msra.mxu0 %v1392
        %1396 = vmatprep.subr.bf16.mxu0 0
        %1397 = vmatpush1.bf16.msra.mxu0 0
        %1398 = vmatprep.subr.bf16.mxu0 0
        %1399 = vmatpush1.bf16.msra.mxu0 0
        %1400 = vmatprep.subr.bf16.mxu0 0
        %1401 = vmatpush1.bf16.msra.mxu0 0
        %1402 = vmatprep.subr.bf16.mxu0 0
        %1403 = vmatpush1.bf16.msra.mxu0 0
        %1404 = vmatprep.subr.bf16.mxu0 0
        %1405 = vmatpush1.bf16.msra.mxu0 0
        %1406 = vmatprep.subr.bf16.mxu0 0
        %1407 = vmatpush1.bf16.msra.mxu0 0
        %1408 = vmatprep.subr.bf16.mxu0 0
        %1409 = vmatpush1.bf16.msra.mxu0 0
        %1410 = vmatprep.subr.bf16.mxu0 0
        %1411 = vmatpush1.bf16.msra.mxu0 0
        %1412 = vmatprep.subr.bf16.mxu0 0
        %1413 = vmatpush1.bf16.msra.mxu0 0
        %1414 = vmatprep.subr.bf16.mxu0 0
        %1415 = vmatpush1.bf16.msra.mxu0 0
        %1416 = vmatprep.subr.bf16.mxu0 0
        %1417 = vmatpush1.bf16.msra.mxu0 0
        %1418 = vmatprep.subr.bf16.mxu0 0
        %1419 = vmatpush1.bf16.msra.mxu0 0
        %1420 = vmatprep.subr.bf16.mxu0 0
        %1421 = vmatpush1.bf16.msra.mxu0 0
        %1422 = vmatprep.subr.bf16.mxu0 0
        %1423 = vmatpush1.bf16.msra.mxu0 0
        %1424 = vmatprep.subr.bf16.mxu0 0
        %1425 = vmatpush1.bf16.msra.mxu0 0
        %1426 = vmatprep.mubr.bf16.mxu0 0
        %1427 = vmatmul.mubr.bf16.gmra.mrb[0].mxu0 %v1389
        %v1428 = vpop.f32.mrb[0].mxu0
        %v1429 = vadd.f32 0.0, %v1428
        %v1430 = vpop.f32.mrb[0].mxu0
        %v1431 = vpop.f32.mrb[0].mxu0
        %v1432 = vpop.f32.mrb[0].mxu0
        %1433 = vdwg.mxu0
        %1434 = vrot.lane.b32.xlu0 %v1098, 32
        %v1435 = vpop.permute.xlu0 %1434
        %1436 = vrot.lane.b32.xlu0 %v1099, 32
        %v1437 = vpop.permute.xlu0 %1436
        %v1439 = vsel %vm1101, %v1435, 0
        %v1442 = vsel %vm1101, %v1437, 0
        %1444 = vmatprep.subr.bf16.mxu0 0
        %1445 = vmatpush1.bf16.xpose.msra.mxu0 %v1442
        %1446 = vmatprep.subr.bf16.mxu0 0
        %1447 = vmatpush1.bf16.xpose.msra.mxu0 0
        %1448 = vmatprep.subr.bf16.mxu0 0
        %1449 = vmatpush1.bf16.xpose.msra.mxu0 0
        %1450 = vmatprep.subr.bf16.mxu0 0
        %1451 = vmatpush1.bf16.xpose.msra.mxu0 0
        %1452 = vmatprep.subr.bf16.mxu0 0
        %1453 = vmatpush1.bf16.xpose.msra.mxu0 0
        %1454 = vmatprep.subr.bf16.mxu0 0
        %1455 = vmatpush1.bf16.xpose.msra.mxu0 0
        %1456 = vmatprep.subr.bf16.mxu0 0
        %1457 = vmatpush1.bf16.xpose.msra.mxu0 0
        %1458 = vmatprep.subr.bf16.mxu0 0
        %1459 = vmatpush1.bf16.xpose.msra.mxu0 0
        %1460 = vmatprep.subr.bf16.mxu0 0
        %1461 = vmatpush1.bf16.xpose.msra.mxu0 0
        %1462 = vmatprep.subr.bf16.mxu0 0
        %1463 = vmatpush1.bf16.xpose.msra.mxu0 0
        %1464 = vmatprep.subr.bf16.mxu0 0
        %1465 = vmatpush1.bf16.xpose.msra.mxu0 0
        %1466 = vmatprep.subr.bf16.mxu0 0
        %1467 = vmatpush1.bf16.xpose.msra.mxu0 0
        %1468 = vmatprep.subr.bf16.mxu0 0
        %1469 = vmatpush1.bf16.xpose.msra.mxu0 0
        %1470 = vmatprep.subr.bf16.mxu0 0
        %1471 = vmatpush1.bf16.xpose.msra.mxu0 0
        %1472 = vmatprep.subr.bf16.mxu0 0
        %1473 = vmatpush1.bf16.xpose.msra.mxu0 0
        %1474 = vmatprep.subr.bf16.mxu0 0
        %1475 = vmatpush1.bf16.xpose.msra.mxu0 0
        %1476 = vmatprep.mubr.bf16.mxu0 0
        %1477 = vmatmul.mubr.bf16.gmra.mrb[0].mxu0 %v1439
        %v1478 = vpop.f32.mrb[0].mxu0
        %v1479 = vadd.f32 0.0, %v1478
        %v1480 = vpop.f32.mrb[0].mxu0
        %v1481 = vpop.f32.mrb[0].mxu0
        %v1482 = vpop.f32.mrb[0].mxu0
        %1483 = vdwg.mxu0
        %v1484 = vmul.f32 %v1479, 0.17677669
        %v1485 = vsel %vm1149, %v1484, -inf
        %1486 = vmax.xlane.f32.xlu0 %v1485
        %v1487 = vpop.xlane.xlu0 %1486
        %v1488 = vsub.f32 %v1484, %v1487
        %v1489 = vmul.f32 %v1488, 1.442695
        %v1490 = vpow.pop %v1489
        %v1491 = vsel %vm1149, %v1490, 0.0
        %1492 = vadd.xlane.f32.xlu0 %v1491
        %v1493 = vpop.xlane.xlu0 %1492
        %v1494 = vrcp.pop %v1493
        %v1495 = vmul.f32 %v1490, %v1494
        %v1496 = vpack.c.bf16 %v1495, %v1495
        %1497 = vrot.lane.b32.xlu0 %v1100, 32
        %v1498 = vpop.permute.xlu0 %1497
        %v1500 = vsel %vm1149, %v1496, 0
        %v1503 = vsel %vm1165, %v1498, 0
        %1505 = vmatprep.subr.bf16.mxu0 0
        %1506 = vmatpush1.bf16.msra.mxu0 %v1503
        %1507 = vmatprep.subr.bf16.mxu0 0
        %1508 = vmatpush1.bf16.msra.mxu0 0
        %1509 = vmatprep.subr.bf16.mxu0 0
        %1510 = vmatpush1.bf16.msra.mxu0 0
        %1511 = vmatprep.subr.bf16.mxu0 0
        %1512 = vmatpush1.bf16.msra.mxu0 0
        %1513 = vmatprep.subr.bf16.mxu0 0
        %1514 = vmatpush1.bf16.msra.mxu0 0
        %1515 = vmatprep.subr.bf16.mxu0 0
        %1516 = vmatpush1.bf16.msra.mxu0 0
        %1517 = vmatprep.subr.bf16.mxu0 0
        %1518 = vmatpush1.bf16.msra.mxu0 0
        %1519 = vmatprep.subr.bf16.mxu0 0
        %1520 = vmatpush1.bf16.msra.mxu0 0
        %1521 = vmatprep.subr.bf16.mxu0 0
        %1522 = vmatpush1.bf16.msra.mxu0 0
        %1523 = vmatprep.subr.bf16.mxu0 0
        %1524 = vmatpush1.bf16.msra.mxu0 0
        %1525 = vmatprep.subr.bf16.mxu0 0
        %1526 = vmatpush1.bf16.msra.mxu0 0
        %1527 = vmatprep.subr.bf16.mxu0 0
        %1528 = vmatpush1.bf16.msra.mxu0 0
        %1529 = vmatprep.subr.bf16.mxu0 0
        %1530 = vmatpush1.bf16.msra.mxu0 0
        %1531 = vmatprep.subr.bf16.mxu0 0
        %1532 = vmatpush1.bf16.msra.mxu0 0
        %1533 = vmatprep.subr.bf16.mxu0 0
        %1534 = vmatpush1.bf16.msra.mxu0 0
        %1535 = vmatprep.subr.bf16.mxu0 0
        %1536 = vmatpush1.bf16.msra.mxu0 0
        %1537 = vmatprep.mubr.bf16.mxu0 0
        %1538 = vmatmul.mubr.bf16.gmra.mrb[0].mxu0 %v1500
        %v1539 = vpop.f32.mrb[0].mxu0
        %v1540 = vadd.f32 0.0, %v1539
        %v1541 = vpop.f32.mrb[0].mxu0
        %v1542 = vpop.f32.mrb[0].mxu0
        %v1543 = vpop.f32.mrb[0].mxu0
        %1544 = vdwg.mxu0
        %1546 = vrot.lane.b32.xlu0 %v1318, 32
        %v1547 = vpop.permute.xlu0 %1546
        %1550 = vrot.lane.b32.xlu0 %v1429, 64
        %v1551 = vpop.permute.xlu0 %1550
        %1554 = vrot.lane.b32.xlu0 %v1540, 96
        %v1555 = vpop.permute.xlu0 %1554
        %v1557 = vsel %vm1101, %v1204, %v1547
        %vm1558 = vcmask 523264
        %v1559 = vsel %vm1558, %v1557, %v1551
        %vm1560 = vcmask 785408
        %v1561 = vsel %vm1560, %v1559, %v1555
        %v1562 = vpack.c.bf16 %v1053, %v1053
        %v1563 = vpack.c.bf16 %v1055, %v1055
        %v1564 = vpack.c.bf16 %v1095, %v1095
        %v1566 = vsel %vm1101, %v1562, 0
        %v1569 = vsel %vm1101, %v1563, 0
        %1571 = vmatprep.subr.bf16.mxu0 0
        %1572 = vmatpush1.bf16.xpose.msra.mxu0 %v1569
        %1573 = vmatprep.subr.bf16.mxu0 0
        %1574 = vmatpush1.bf16.xpose.msra.mxu0 0
        %1575 = vmatprep.subr.bf16.mxu0 0
        %1576 = vmatpush1.bf16.xpose.msra.mxu0 0
        %1577 = vmatprep.subr.bf16.mxu0 0
        %1578 = vmatpush1.bf16.xpose.msra.mxu0 0
        %1579 = vmatprep.subr.bf16.mxu0 0
        %1580 = vmatpush1.bf16.xpose.msra.mxu0 0
        %1581 = vmatprep.subr.bf16.mxu0 0
        %1582 = vmatpush1.bf16.xpose.msra.mxu0 0
        %1583 = vmatprep.subr.bf16.mxu0 0
        %1584 = vmatpush1.bf16.xpose.msra.mxu0 0
        %1585 = vmatprep.subr.bf16.mxu0 0
        %1586 = vmatpush1.bf16.xpose.msra.mxu0 0
        %1587 = vmatprep.subr.bf16.mxu0 0
        %1588 = vmatpush1.bf16.xpose.msra.mxu0 0
        %1589 = vmatprep.subr.bf16.mxu0 0
        %1590 = vmatpush1.bf16.xpose.msra.mxu0 0
        %1591 = vmatprep.subr.bf16.mxu0 0
        %1592 = vmatpush1.bf16.xpose.msra.mxu0 0
        %1593 = vmatprep.subr.bf16.mxu0 0
        %1594 = vmatpush1.bf16.xpose.msra.mxu0 0
        %1595 = vmatprep.subr.bf16.mxu0 0
        %1596 = vmatpush1.bf16.xpose.msra.mxu0 0
        %1597 = vmatprep.subr.bf16.mxu0 0
        %1598 = vmatpush1.bf16.xpose.msra.mxu0 0
        %1599 = vmatprep.subr.bf16.mxu0 0
        %1600 = vmatpush1.bf16.xpose.msra.mxu0 0
        %1601 = vmatprep.subr.bf16.mxu0 0
        %1602 = vmatpush1.bf16.xpose.msra.mxu0 0
        %1603 = vmatprep.mubr.bf16.mxu0 0
        %1604 = vmatmul.mubr.bf16.gmra.mrb[0].mxu0 %v1566
        %v1605 = vpop.f32.mrb[0].mxu0
        %v1606 = vadd.f32 0.0, %v1605
        %v1607 = vpop.f32.mrb[0].mxu0
        %v1608 = vpop.f32.mrb[0].mxu0
        %v1609 = vpop.f32.mrb[0].mxu0
        %1610 = vdwg.mxu0
        %v1611 = vmul.f32 %v1606, 0.17677669
        %v1612 = vsel %vm1149, %v1611, -inf
        %1613 = vmax.xlane.f32.xlu0 %v1612
        %v1614 = vpop.xlane.xlu0 %1613
        %v1615 = vsub.f32 %v1611, %v1614
        %v1616 = vmul.f32 %v1615, 1.442695
        %v1617 = vpow.pop %v1616
        %v1618 = vsel %vm1149, %v1617, 0.0
        %1619 = vadd.xlane.f32.xlu0 %v1618
        %v1620 = vpop.xlane.xlu0 %1619
        %v1621 = vrcp.pop %v1620
        %v1622 = vmul.f32 %v1617, %v1621
        %v1623 = vpack.c.bf16 %v1622, %v1622
        %v1625 = vsel %vm1149, %v1623, 0
        %v1628 = vsel %vm1165, %v1564, 0
        %1630 = vmatprep.subr.bf16.mxu0 0
        %1631 = vmatpush1.bf16.msra.mxu0 %v1628
        %1632 = vmatprep.subr.bf16.mxu0 0
        %1633 = vmatpush1.bf16.msra.mxu0 0
        %1634 = vmatprep.subr.bf16.mxu0 0
        %1635 = vmatpush1.bf16.msra.mxu0 0
        %1636 = vmatprep.subr.bf16.mxu0 0
        %1637 = vmatpush1.bf16.msra.mxu0 0
        %1638 = vmatprep.subr.bf16.mxu0 0
        %1639 = vmatpush1.bf16.msra.mxu0 0
        %1640 = vmatprep.subr.bf16.mxu0 0
        %1641 = vmatpush1.bf16.msra.mxu0 0
        %1642 = vmatprep.subr.bf16.mxu0 0
        %1643 = vmatpush1.bf16.msra.mxu0 0
        %1644 = vmatprep.subr.bf16.mxu0 0
        %1645 = vmatpush1.bf16.msra.mxu0 0
        %1646 = vmatprep.subr.bf16.mxu0 0
        %1647 = vmatpush1.bf16.msra.mxu0 0
        %1648 = vmatprep.subr.bf16.mxu0 0
        %1649 = vmatpush1.bf16.msra.mxu0 0
        %1650 = vmatprep.subr.bf16.mxu0 0
        %1651 = vmatpush1.bf16.msra.mxu0 0
        %1652 = vmatprep.subr.bf16.mxu0 0
        %1653 = vmatpush1.bf16.msra.mxu0 0
        %1654 = vmatprep.subr.bf16.mxu0 0
        %1655 = vmatpush1.bf16.msra.mxu0 0
        %1656 = vmatprep.subr.bf16.mxu0 0
        %1657 = vmatpush1.bf16.msra.mxu0 0
        %1658 = vmatprep.subr.bf16.mxu0 0
        %1659 = vmatpush1.bf16.msra.mxu0 0
        %1660 = vmatprep.subr.bf16.mxu0 0
        %1661 = vmatpush1.bf16.msra.mxu0 0
        %1662 = vmatprep.mubr.bf16.mxu0 0
        %1663 = vmatmul.mubr.bf16.gmra.mrb[0].mxu0 %v1625
        %v1664 = vpop.f32.mrb[0].mxu0
        %v1665 = vadd.f32 0.0, %v1664
        %v1666 = vpop.f32.mrb[0].mxu0
        %v1667 = vpop.f32.mrb[0].mxu0
        %v1668 = vpop.f32.mrb[0].mxu0
        %1669 = vdwg.mxu0
        %1671 = vrot.lane.b32.xlu0 %v1562, 96
        %v1672 = vpop.permute.xlu0 %1671
        %1674 = vrot.lane.b32.xlu0 %v1563, 96
        %v1675 = vpop.permute.xlu0 %1674
        %v1677 = vsel %vm1101, %v1672, 0
        %v1680 = vsel %vm1101, %v1675, 0
        %1682 = vmatprep.subr.bf16.mxu0 0
        %1683 = vmatpush1.bf16.xpose.msra.mxu0 %v1680
        %1684 = vmatprep.subr.bf16.mxu0 0
        %1685 = vmatpush1.bf16.xpose.msra.mxu0 0
        %1686 = vmatprep.subr.bf16.mxu0 0
        %1687 = vmatpush1.bf16.xpose.msra.mxu0 0
        %1688 = vmatprep.subr.bf16.mxu0 0
        %1689 = vmatpush1.bf16.xpose.msra.mxu0 0
        %1690 = vmatprep.subr.bf16.mxu0 0
        %1691 = vmatpush1.bf16.xpose.msra.mxu0 0
        %1692 = vmatprep.subr.bf16.mxu0 0
        %1693 = vmatpush1.bf16.xpose.msra.mxu0 0
        %1694 = vmatprep.subr.bf16.mxu0 0
        %1695 = vmatpush1.bf16.xpose.msra.mxu0 0
        %1696 = vmatprep.subr.bf16.mxu0 0
        %1697 = vmatpush1.bf16.xpose.msra.mxu0 0
        %1698 = vmatprep.subr.bf16.mxu0 0
        %1699 = vmatpush1.bf16.xpose.msra.mxu0 0
        %1700 = vmatprep.subr.bf16.mxu0 0
        %1701 = vmatpush1.bf16.xpose.msra.mxu0 0
        %1702 = vmatprep.subr.bf16.mxu0 0
        %1703 = vmatpush1.bf16.xpose.msra.mxu0 0
        %1704 = vmatprep.subr.bf16.mxu0 0
        %1705 = vmatpush1.bf16.xpose.msra.mxu0 0
        %1706 = vmatprep.subr.bf16.mxu0 0
        %1707 = vmatpush1.bf16.xpose.msra.mxu0 0
        %1708 = vmatprep.subr.bf16.mxu0 0
        %1709 = vmatpush1.bf16.xpose.msra.mxu0 0
        %1710 = vmatprep.subr.bf16.mxu0 0
        %1711 = vmatpush1.bf16.xpose.msra.mxu0 0
        %1712 = vmatprep.subr.bf16.mxu0 0
        %1713 = vmatpush1.bf16.xpose.msra.mxu0 0
        %1714 = vmatprep.mubr.bf16.mxu0 0
        %1715 = vmatmul.mubr.bf16.gmra.mrb[0].mxu0 %v1677
        %v1716 = vpop.f32.mrb[0].mxu0
        %v1717 = vadd.f32 0.0, %v1716
        %v1718 = vpop.f32.mrb[0].mxu0
        %v1719 = vpop.f32.mrb[0].mxu0
        %v1720 = vpop.f32.mrb[0].mxu0
        %1721 = vdwg.mxu0
        %v1722 = vmul.f32 %v1717, 0.17677669
        %v1723 = vsel %vm1149, %v1722, -inf
        %1724 = vmax.xlane.f32.xlu0 %v1723
        %v1725 = vpop.xlane.xlu0 %1724
        %v1726 = vsub.f32 %v1722, %v1725
        %v1727 = vmul.f32 %v1726, 1.442695
        %v1728 = vpow.pop %v1727
        %v1729 = vsel %vm1149, %v1728, 0.0
        %1730 = vadd.xlane.f32.xlu0 %v1729
        %v1731 = vpop.xlane.xlu0 %1730
        %v1732 = vrcp.pop %v1731
        %v1733 = vmul.f32 %v1728, %v1732
        %v1734 = vpack.c.bf16 %v1733, %v1733
        %1736 = vrot.lane.b32.xlu0 %v1564, 96
        %v1737 = vpop.permute.xlu0 %1736
        %v1739 = vsel %vm1149, %v1734, 0
        %v1742 = vsel %vm1165, %v1737, 0
        %1744 = vmatprep.subr.bf16.mxu0 0
        %1745 = vmatpush1.bf16.msra.mxu0 %v1742
        %1746 = vmatprep.subr.bf16.mxu0 0
        %1747 = vmatpush1.bf16.msra.mxu0 0
        %1748 = vmatprep.subr.bf16.mxu0 0
        %1749 = vmatpush1.bf16.msra.mxu0 0
        %1750 = vmatprep.subr.bf16.mxu0 0
        %1751 = vmatpush1.bf16.msra.mxu0 0
        %1752 = vmatprep.subr.bf16.mxu0 0
        %1753 = vmatpush1.bf16.msra.mxu0 0
        %1754 = vmatprep.subr.bf16.mxu0 0
        %1755 = vmatpush1.bf16.msra.mxu0 0
        %1756 = vmatprep.subr.bf16.mxu0 0
        %1757 = vmatpush1.bf16.msra.mxu0 0
        %1758 = vmatprep.subr.bf16.mxu0 0
        %1759 = vmatpush1.bf16.msra.mxu0 0
        %1760 = vmatprep.subr.bf16.mxu0 0
        %1761 = vmatpush1.bf16.msra.mxu0 0
        %1762 = vmatprep.subr.bf16.mxu0 0
        %1763 = vmatpush1.bf16.msra.mxu0 0
        %1764 = vmatprep.subr.bf16.mxu0 0
        %1765 = vmatpush1.bf16.msra.mxu0 0
        %1766 = vmatprep.subr.bf16.mxu0 0
        %1767 = vmatpush1.bf16.msra.mxu0 0
        %1768 = vmatprep.subr.bf16.mxu0 0
        %1769 = vmatpush1.bf16.msra.mxu0 0
        %1770 = vmatprep.subr.bf16.mxu0 0
        %1771 = vmatpush1.bf16.msra.mxu0 0
        %1772 = vmatprep.subr.bf16.mxu0 0
        %1773 = vmatpush1.bf16.msra.mxu0 0
        %1774 = vmatprep.subr.bf16.mxu0 0
        %1775 = vmatpush1.bf16.msra.mxu0 0
        %1776 = vmatprep.mubr.bf16.mxu0 0
        %1777 = vmatmul.mubr.bf16.gmra.mrb[0].mxu0 %v1739
        %v1778 = vpop.f32.mrb[0].mxu0
        %v1779 = vadd.f32 0.0, %v1778
        %v1780 = vpop.f32.mrb[0].mxu0
        %v1781 = vpop.f32.mrb[0].mxu0
        %v1782 = vpop.f32.mrb[0].mxu0
        %1783 = vdwg.mxu0
        %1784 = vrot.lane.b32.xlu0 %v1562, 64
        %v1785 = vpop.permute.xlu0 %1784
        %1786 = vrot.lane.b32.xlu0 %v1563, 64
        %v1787 = vpop.permute.xlu0 %1786
        %v1789 = vsel %vm1101, %v1785, 0
        %v1792 = vsel %vm1101, %v1787, 0
        %1794 = vmatprep.subr.bf16.mxu0 0
        %1795 = vmatpush1.bf16.xpose.msra.mxu0 %v1792
        %1796 = vmatprep.subr.bf16.mxu0 0
        %1797 = vmatpush1.bf16.xpose.msra.mxu0 0
        %1798 = vmatprep.subr.bf16.mxu0 0
        %1799 = vmatpush1.bf16.xpose.msra.mxu0 0
        %1800 = vmatprep.subr.bf16.mxu0 0
        %1801 = vmatpush1.bf16.xpose.msra.mxu0 0
        %1802 = vmatprep.subr.bf16.mxu0 0
        %1803 = vmatpush1.bf16.xpose.msra.mxu0 0
        %1804 = vmatprep.subr.bf16.mxu0 0
        %1805 = vmatpush1.bf16.xpose.msra.mxu0 0
        %1806 = vmatprep.subr.bf16.mxu0 0
        %1807 = vmatpush1.bf16.xpose.msra.mxu0 0
        %1808 = vmatprep.subr.bf16.mxu0 0
        %1809 = vmatpush1.bf16.xpose.msra.mxu0 0
        %1810 = vmatprep.subr.bf16.mxu0 0
        %1811 = vmatpush1.bf16.xpose.msra.mxu0 0
        %1812 = vmatprep.subr.bf16.mxu0 0
        %1813 = vmatpush1.bf16.xpose.msra.mxu0 0
        %1814 = vmatprep.subr.bf16.mxu0 0
        %1815 = vmatpush1.bf16.xpose.msra.mxu0 0
        %1816 = vmatprep.subr.bf16.mxu0 0
        %1817 = vmatpush1.bf16.xpose.msra.mxu0 0
        %1818 = vmatprep.subr.bf16.mxu0 0
        %1819 = vmatpush1.bf16.xpose.msra.mxu0 0
        %1820 = vmatprep.subr.bf16.mxu0 0
        %1821 = vmatpush1.bf16.xpose.msra.mxu0 0
        %1822 = vmatprep.subr.bf16.mxu0 0
        %1823 = vmatpush1.bf16.xpose.msra.mxu0 0
        %1824 = vmatprep.subr.bf16.mxu0 0
        %1825 = vmatpush1.bf16.xpose.msra.mxu0 0
        %1826 = vmatprep.mubr.bf16.mxu0 0
        %1827 = vmatmul.mubr.bf16.gmra.mrb[0].mxu0 %v1789
        %v1828 = vpop.f32.mrb[0].mxu0
        %v1829 = vadd.f32 0.0, %v1828
        %v1830 = vpop.f32.mrb[0].mxu0
        %v1831 = vpop.f32.mrb[0].mxu0
        %v1832 = vpop.f32.mrb[0].mxu0
        %1833 = vdwg.mxu0
        %v1834 = vmul.f32 %v1829, 0.17677669
        %v1835 = vsel %vm1149, %v1834, -inf
        %1836 = vmax.xlane.f32.xlu0 %v1835
        %v1837 = vpop.xlane.xlu0 %1836
        %v1838 = vsub.f32 %v1834, %v1837
        %v1839 = vmul.f32 %v1838, 1.442695
        %v1840 = vpow.pop %v1839
        %v1841 = vsel %vm1149, %v1840, 0.0
        %1842 = vadd.xlane.f32.xlu0 %v1841
        %v1843 = vpop.xlane.xlu0 %1842
        %v1844 = vrcp.pop %v1843
        %v1845 = vmul.f32 %v1840, %v1844
        %v1846 = vpack.c.bf16 %v1845, %v1845
        %1847 = vrot.lane.b32.xlu0 %v1564, 64
        %v1848 = vpop.permute.xlu0 %1847
        %v1850 = vsel %vm1149, %v1846, 0
        %v1853 = vsel %vm1165, %v1848, 0
        %1855 = vmatprep.subr.bf16.mxu0 0
        %1856 = vmatpush1.bf16.msra.mxu0 %v1853
        %1857 = vmatprep.subr.bf16.mxu0 0
        %1858 = vmatpush1.bf16.msra.mxu0 0
        %1859 = vmatprep.subr.bf16.mxu0 0
        %1860 = vmatpush1.bf16.msra.mxu0 0
        %1861 = vmatprep.subr.bf16.mxu0 0
        %1862 = vmatpush1.bf16.msra.mxu0 0
        %1863 = vmatprep.subr.bf16.mxu0 0
        %1864 = vmatpush1.bf16.msra.mxu0 0
        %1865 = vmatprep.subr.bf16.mxu0 0
        %1866 = vmatpush1.bf16.msra.mxu0 0
        %1867 = vmatprep.subr.bf16.mxu0 0
        %1868 = vmatpush1.bf16.msra.mxu0 0
        %1869 = vmatprep.subr.bf16.mxu0 0
        %1870 = vmatpush1.bf16.msra.mxu0 0
        %1871 = vmatprep.subr.bf16.mxu0 0
        %1872 = vmatpush1.bf16.msra.mxu0 0
        %1873 = vmatprep.subr.bf16.mxu0 0
        %1874 = vmatpush1.bf16.msra.mxu0 0
        %1875 = vmatprep.subr.bf16.mxu0 0
        %1876 = vmatpush1.bf16.msra.mxu0 0
        %1877 = vmatprep.subr.bf16.mxu0 0
        %1878 = vmatpush1.bf16.msra.mxu0 0
        %1879 = vmatprep.subr.bf16.mxu0 0
        %1880 = vmatpush1.bf16.msra.mxu0 0
        %1881 = vmatprep.subr.bf16.mxu0 0
        %1882 = vmatpush1.bf16.msra.mxu0 0
        %1883 = vmatprep.subr.bf16.mxu0 0
        %1884 = vmatpush1.bf16.msra.mxu0 0
        %1885 = vmatprep.subr.bf16.mxu0 0
        %1886 = vmatpush1.bf16.msra.mxu0 0
        %1887 = vmatprep.mubr.bf16.mxu0 0
        %1888 = vmatmul.mubr.bf16.gmra.mrb[0].mxu0 %v1850
        %v1889 = vpop.f32.mrb[0].mxu0
        %v1890 = vadd.f32 0.0, %v1889
        %v1891 = vpop.f32.mrb[0].mxu0
        %v1892 = vpop.f32.mrb[0].mxu0
        %v1893 = vpop.f32.mrb[0].mxu0
        %1894 = vdwg.mxu0
        %1895 = vrot.lane.b32.xlu0 %v1562, 32
        %v1896 = vpop.permute.xlu0 %1895
        %1897 = vrot.lane.b32.xlu0 %v1563, 32
        %v1898 = vpop.permute.xlu0 %1897
        %v1900 = vsel %vm1101, %v1896, 0
        %v1903 = vsel %vm1101, %v1898, 0
        %1905 = vmatprep.subr.bf16.mxu0 0
        %1906 = vmatpush1.bf16.xpose.msra.mxu0 %v1903
        %1907 = vmatprep.subr.bf16.mxu0 0
        %1908 = vmatpush1.bf16.xpose.msra.mxu0 0
        %1909 = vmatprep.subr.bf16.mxu0 0
        %1910 = vmatpush1.bf16.xpose.msra.mxu0 0
        %1911 = vmatprep.subr.bf16.mxu0 0
        %1912 = vmatpush1.bf16.xpose.msra.mxu0 0
        %1913 = vmatprep.subr.bf16.mxu0 0
        %1914 = vmatpush1.bf16.xpose.msra.mxu0 0
        %1915 = vmatprep.subr.bf16.mxu0 0
        %1916 = vmatpush1.bf16.xpose.msra.mxu0 0
        %1917 = vmatprep.subr.bf16.mxu0 0
        %1918 = vmatpush1.bf16.xpose.msra.mxu0 0
        %1919 = vmatprep.subr.bf16.mxu0 0
        %1920 = vmatpush1.bf16.xpose.msra.mxu0 0
        %1921 = vmatprep.subr.bf16.mxu0 0
        %1922 = vmatpush1.bf16.xpose.msra.mxu0 0
        %1923 = vmatprep.subr.bf16.mxu0 0
        %1924 = vmatpush1.bf16.xpose.msra.mxu0 0
        %1925 = vmatprep.subr.bf16.mxu0 0
        %1926 = vmatpush1.bf16.xpose.msra.mxu0 0
        %1927 = vmatprep.subr.bf16.mxu0 0
        %1928 = vmatpush1.bf16.xpose.msra.mxu0 0
        %1929 = vmatprep.subr.bf16.mxu0 0
        %1930 = vmatpush1.bf16.xpose.msra.mxu0 0
        %1931 = vmatprep.subr.bf16.mxu0 0
        %1932 = vmatpush1.bf16.xpose.msra.mxu0 0
        %1933 = vmatprep.subr.bf16.mxu0 0
        %1934 = vmatpush1.bf16.xpose.msra.mxu0 0
        %1935 = vmatprep.subr.bf16.mxu0 0
        %1936 = vmatpush1.bf16.xpose.msra.mxu0 0
        %1937 = vmatprep.mubr.bf16.mxu0 0
        %1938 = vmatmul.mubr.bf16.gmra.mrb[0].mxu0 %v1900
        %v1939 = vpop.f32.mrb[0].mxu0
        %v1940 = vadd.f32 0.0, %v1939
        %v1941 = vpop.f32.mrb[0].mxu0
        %v1942 = vpop.f32.mrb[0].mxu0
        %v1943 = vpop.f32.mrb[0].mxu0
        %1944 = vdwg.mxu0
        %v1945 = vmul.f32 %v1940, 0.17677669
        %v1946 = vsel %vm1149, %v1945, -inf
        %1947 = vmax.xlane.f32.xlu0 %v1946
        %v1948 = vpop.xlane.xlu0 %1947
        %v1949 = vsub.f32 %v1945, %v1948
        %v1950 = vmul.f32 %v1949, 1.442695
        %v1951 = vpow.pop %v1950
        %v1952 = vsel %vm1149, %v1951, 0.0
        %1953 = vadd.xlane.f32.xlu0 %v1952
        %v1954 = vpop.xlane.xlu0 %1953
        %v1955 = vrcp.pop %v1954
        %v1956 = vmul.f32 %v1951, %v1955
        %v1957 = vpack.c.bf16 %v1956, %v1956
        %1958 = vrot.lane.b32.xlu0 %v1564, 32
        %v1959 = vpop.permute.xlu0 %1958
        %v1961 = vsel %vm1149, %v1957, 0
        %v1964 = vsel %vm1165, %v1959, 0
        %1966 = vmatprep.subr.bf16.mxu0 0
        %1967 = vmatpush1.bf16.msra.mxu0 %v1964
        %1968 = vmatprep.subr.bf16.mxu0 0
        %1969 = vmatpush1.bf16.msra.mxu0 0
        %1970 = vmatprep.subr.bf16.mxu0 0
        %1971 = vmatpush1.bf16.msra.mxu0 0
        %1972 = vmatprep.subr.bf16.mxu0 0
        %1973 = vmatpush1.bf16.msra.mxu0 0
        %1974 = vmatprep.subr.bf16.mxu0 0
        %1975 = vmatpush1.bf16.msra.mxu0 0
        %1976 = vmatprep.subr.bf16.mxu0 0
        %1977 = vmatpush1.bf16.msra.mxu0 0
        %1978 = vmatprep.subr.bf16.mxu0 0
        %1979 = vmatpush1.bf16.msra.mxu0 0
        %1980 = vmatprep.subr.bf16.mxu0 0
        %1981 = vmatpush1.bf16.msra.mxu0 0
        %1982 = vmatprep.subr.bf16.mxu0 0
        %1983 = vmatpush1.bf16.msra.mxu0 0
        %1984 = vmatprep.subr.bf16.mxu0 0
        %1985 = vmatpush1.bf16.msra.mxu0 0
        %1986 = vmatprep.subr.bf16.mxu0 0
        %1987 = vmatpush1.bf16.msra.mxu0 0
        %1988 = vmatprep.subr.bf16.mxu0 0
        %1989 = vmatpush1.bf16.msra.mxu0 0
        %1990 = vmatprep.subr.bf16.mxu0 0
        %1991 = vmatpush1.bf16.msra.mxu0 0
        %1992 = vmatprep.subr.bf16.mxu0 0
        %1993 = vmatpush1.bf16.msra.mxu0 0
        %1994 = vmatprep.subr.bf16.mxu0 0
        %1995 = vmatpush1.bf16.msra.mxu0 0
        %1996 = vmatprep.subr.bf16.mxu0 0
        %1997 = vmatpush1.bf16.msra.mxu0 0
        %1998 = vmatprep.mubr.bf16.mxu0 0
        %1999 = vmatmul.mubr.bf16.gmra.mrb[0].mxu0 %v1961
        %v2000 = vpop.f32.mrb[0].mxu0
        %v2001 = vadd.f32 0.0, %v2000
        %v2002 = vpop.f32.mrb[0].mxu0
        %v2003 = vpop.f32.mrb[0].mxu0
        %v2004 = vpop.f32.mrb[0].mxu0
        %2005 = vdwg.mxu0
        %2007 = vrot.lane.b32.xlu0 %v1779, 32
        %v2008 = vpop.permute.xlu0 %2007
        %2011 = vrot.lane.b32.xlu0 %v1890, 64
        %v2012 = vpop.permute.xlu0 %2011
        %2015 = vrot.lane.b32.xlu0 %v2001, 96
        %v2016 = vpop.permute.xlu0 %2015
        %v2018 = vsel %vm1101, %v1665, %v2008
        %v2019 = vsel %vm1558, %v2018, %v2012
        %v2020 = vsel %vm1560, %v2019, %v2016
        %v2021 = vpack.c.bf16 %v2020, %v1561
        %v2022 = vld [vmem:[%s653] sm:$0xf]
        %v2023 = vld [vmem:[%s653 + $0x4] sm:$0xf]
        %v2024 = vld [vmem:[%s653 + $0x8] sm:$0xf]
        %v2025 = vld [vmem:[%s653 + $0xc] sm:$0xf]
        %v2026 = vld [vmem:[%s653 + $0x10] sm:$0xf]
        %v2027 = vld [vmem:[%s653 + $0x14] sm:$0xf]
        %v2028 = vld [vmem:[%s653 + $0x18] sm:$0xf]
        %v2029 = vld [vmem:[%s653 + $0x1c] sm:$0xf]
        %v2030 = vld [vmem:[%s653 + $0x20] sm:$0xf]
        %v2031 = vld [vmem:[%s653 + $0x24] sm:$0xf]
        %v2032 = vld [vmem:[%s653 + $0x28] sm:$0xf]
        %v2033 = vld [vmem:[%s653 + $0x2c] sm:$0xf]
        %v2034 = vld [vmem:[%s653 + $0x30] sm:$0xf]
        %v2035 = vld [vmem:[%s653 + $0x34] sm:$0xf]
        %v2036 = vld [vmem:[%s653 + $0x38] sm:$0xf]
        %v2037 = vld [vmem:[%s653 + $0x3c] sm:$0xf]
        %v2038 = vld [vmem:[%s759] sm:$0x1]
        %v2040 = vlaneseq
        %v2041 = vshrl.u32 %v2040, 7
        %v2042 = vsub.s32 0, %v2041
        %v2043 = vrot.slane %v2038, %v2042
        %v2061 = vunpack.c.l.b16 %v2022
        %v2062 = vunpack.c.l.b16 %v2023
        %v2063 = vunpack.c.l.b16 %v2024
        %v2064 = vunpack.c.l.b16 %v2025
        %v2065 = vunpack.c.l.b16 %v2026
        %v2066 = vunpack.c.l.b16 %v2027
        %v2067 = vunpack.c.l.b16 %v2028
        %v2068 = vunpack.c.l.b16 %v2029
        %v2069 = vunpack.c.l.b16 %v2030
        %v2070 = vunpack.c.l.b16 %v2031
        %v2071 = vunpack.c.l.b16 %v2032
        %v2072 = vunpack.c.l.b16 %v2033
        %v2073 = vunpack.c.l.b16 %v2034
        %v2074 = vunpack.c.l.b16 %v2035
        %v2075 = vunpack.c.l.b16 %v2036
        %v2076 = vunpack.c.l.b16 %v2037
        %v2077 = vpack.c.b16 %v2062, %v2061
        %v2078 = vpack.c.b16 %v2064, %v2063
        %v2079 = vpack.c.b16 %v2066, %v2065
        %v2080 = vpack.c.b16 %v2068, %v2067
        %v2081 = vpack.c.b16 %v2070, %v2069
        %v2082 = vpack.c.b16 %v2072, %v2071
        %v2083 = vpack.c.b16 %v2074, %v2073
        %v2084 = vpack.c.b16 %v2076, %v2075
        %2093 = vmatprep.subr.bf16.mxu0 0
        %2094 = vmatpush1.bf16.msra.mxu0 %v2077
        %2095 = vmatprep.subr.bf16.mxu0 0
        %2096 = vmatpush1.bf16.msra.mxu0 %v2078
        %2097 = vmatprep.subr.bf16.mxu0 0
        %2098 = vmatpush1.bf16.msra.mxu0 %v2079
        %2099 = vmatprep.subr.bf16.mxu0 0
        %2100 = vmatpush1.bf16.msra.mxu0 %v2080
        %2101 = vmatprep.subr.bf16.mxu0 0
        %2102 = vmatpush1.bf16.msra.mxu0 %v2081
        %2103 = vmatprep.subr.bf16.mxu0 0
        %2104 = vmatpush1.bf16.msra.mxu0 %v2082
        %2105 = vmatprep.subr.bf16.mxu0 0
        %2106 = vmatpush1.bf16.msra.mxu0 %v2083
        %2107 = vmatprep.subr.bf16.mxu0 0
        %2108 = vmatpush1.bf16.msra.mxu0 %v2084
        %2109 = vmatprep.subr.bf16.mxu0 0
        %2110 = vmatpush1.bf16.msra.mxu0 0
        %2111 = vmatprep.subr.bf16.mxu0 0
        %2112 = vmatpush1.bf16.msra.mxu0 0
        %2113 = vmatprep.subr.bf16.mxu0 0
        %2114 = vmatpush1.bf16.msra.mxu0 0
        %2115 = vmatprep.subr.bf16.mxu0 0
        %2116 = vmatpush1.bf16.msra.mxu0 0
        %2117 = vmatprep.subr.bf16.mxu0 0
        %2118 = vmatpush1.bf16.msra.mxu0 0
        %2119 = vmatprep.subr.bf16.mxu0 0
        %2120 = vmatpush1.bf16.msra.mxu0 0
        %2121 = vmatprep.subr.bf16.mxu0 0
        %2122 = vmatpush1.bf16.msra.mxu0 0
        %2123 = vmatprep.subr.bf16.mxu0 0
        %2124 = vmatpush1.bf16.msra.mxu0 0
        %2125 = vmatprep.mubr.bf16.mxu0 0
        %2126 = vmatmul.mubr.bf16.gmra.mrb[0].mxu0 %v2021
        %v2127 = vpop.f32.mrb[0].mxu0
        %v2128 = vadd.f32 %v2043, %v2127
        %v2129 = vpop.f32.mrb[0].mxu0
        %v2130 = vpop.f32.mrb[0].mxu0
        %v2131 = vadd.f32 %v2043, %v2130
        %v2132 = vpop.f32.mrb[0].mxu0
        %2133 = vdwg.mxu0
        %v2134 = vadd.f32 %v2128, %v834
        %v2135 = vadd.f32 %v2131, %v835
        %v2136 = vld [vmem:[%s762] sm:$0x1]
        %v2137 = vld [vmem:[%s765] sm:$0x1]
        %2138 = vadd.xlane.f32.xlu0 %v2134
        %v2139 = vpop.xlane.xlu0 %2138
        %2140 = vadd.xlane.f32.xlu0 %v2135
        %v2141 = vpop.xlane.xlu0 %2140
        %v2142 = vrcp.pop 128.0
        %v2143 = vmul.f32 %v2139, %v2142
        %v2144 = vmul.f32 %v2141, %v2142
        %v2145 = vsub.f32 %v2134, %v2143
        %v2146 = vsub.f32 %v2135, %v2144
        %v2147 = vmul.f32 %v2145, %v2145
        %v2148 = vmul.f32 %v2146, %v2146
        %2149 = vadd.xlane.f32.xlu0 %v2147
        %v2150 = vpop.xlane.xlu0 %2149
        %2151 = vadd.xlane.f32.xlu0 %v2148
        %v2152 = vpop.xlane.xlu0 %2151
        %v2153 = vmul.f32 %v2150, %v2142
        %v2154 = vmul.f32 %v2152, %v2142
        %v2155 = vadd.f32 %v2153, 1e-12
        %v2156 = vadd.f32 %v2154, 1e-12
        %v2157 = vrsqrt.pop %v2155
        %v2158 = vrsqrt.pop %v2156
        %v2159 = vmul.f32 %v2145, %v2157
        %v2160 = vmul.f32 %v2146, %v2158
        %v2162 = vlaneseq
        %v2163 = vshrl.u32 %v2162, 7
        %v2164 = vsub.s32 0, %v2163
        %v2165 = vrot.slane %v2136, %v2164
        %v2167 = vmul.f32 %v2159, %v2165
        %v2168 = vmul.f32 %v2160, %v2165
        %v2170 = vlaneseq
        %v2171 = vshrl.u32 %v2170, 7
        %v2172 = vsub.s32 0, %v2171
        %v2173 = vrot.slane %v2137, %v2172
        %v2175 = vadd.f32 %v2167, %v2173
        %v2176 = vadd.f32 %v2168, %v2173
        %v2177 = vpack.c.bf16 %v2176, %v2175
        %v2178 = vld [vmem:[%s770] sm:$0xff]
        %v2179 = vld [vmem:[%s770 + $0x8] sm:$0xff]
        %v2180 = vld [vmem:[%s770 + $0x10] sm:$0xff]
        %v2181 = vld [vmem:[%s770 + $0x18] sm:$0xff]
        %v2182 = vld [vmem:[%s770 + $0x20] sm:$0xff]
        %v2183 = vld [vmem:[%s770 + $0x28] sm:$0xff]
        %v2184 = vld [vmem:[%s770 + $0x30] sm:$0xff]
        %v2185 = vld [vmem:[%s770 + $0x38] sm:$0xff]
        %v2186 = vld [vmem:[%s770 + $0x40] sm:$0xff]
        %v2187 = vld [vmem:[%s770 + $0x48] sm:$0xff]
        %v2188 = vld [vmem:[%s770 + $0x50] sm:$0xff]
        %v2189 = vld [vmem:[%s770 + $0x58] sm:$0xff]
        %v2190 = vld [vmem:[%s770 + $0x60] sm:$0xff]
        %v2191 = vld [vmem:[%s770 + $0x68] sm:$0xff]
        %v2192 = vld [vmem:[%s770 + $0x70] sm:$0xff]
        %v2193 = vld [vmem:[%s770 + $0x78] sm:$0xff]
        %v2194 = vld [vmem:[%s774] sm:$0x3]
        %v2196 = vlaneseq
        %v2197 = vshrl.u32 %v2196, 7
        %v2198 = vsub.s32 0, %v2197
        %v2199 = vrot.slane %v2194, %v2198
        %v2200 = vlaneseq
        %v2201 = vshrl.u32 %v2200, 7
        %v2202 = vsub.s32 1, %v2201
        %v2203 = vrot.slane %v2194, %v2202
        %v2222 = vunpack.c.l.b16 %v2178
        %v2223 = vunpack.c.h.b16 %v2178
        %v2224 = vunpack.c.l.b16 %v2179
        %v2225 = vunpack.c.h.b16 %v2179
        %v2226 = vunpack.c.l.b16 %v2180
        %v2227 = vunpack.c.h.b16 %v2180
        %v2228 = vunpack.c.l.b16 %v2181
        %v2229 = vunpack.c.h.b16 %v2181
        %v2230 = vunpack.c.l.b16 %v2182
        %v2231 = vunpack.c.h.b16 %v2182
        %v2232 = vunpack.c.l.b16 %v2183
        %v2233 = vunpack.c.h.b16 %v2183
        %v2234 = vunpack.c.l.b16 %v2184
        %v2235 = vunpack.c.h.b16 %v2184
        %v2236 = vunpack.c.l.b16 %v2185
        %v2237 = vunpack.c.h.b16 %v2185
        %v2238 = vunpack.c.l.b16 %v2186
        %v2239 = vunpack.c.h.b16 %v2186
        %v2240 = vunpack.c.l.b16 %v2187
        %v2241 = vunpack.c.h.b16 %v2187
        %v2242 = vunpack.c.l.b16 %v2188
        %v2243 = vunpack.c.h.b16 %v2188
        %v2244 = vunpack.c.l.b16 %v2189
        %v2245 = vunpack.c.h.b16 %v2189
        %v2246 = vunpack.c.l.b16 %v2190
        %v2247 = vunpack.c.h.b16 %v2190
        %v2248 = vunpack.c.l.b16 %v2191
        %v2249 = vunpack.c.h.b16 %v2191
        %v2250 = vunpack.c.l.b16 %v2192
        %v2251 = vunpack.c.h.b16 %v2192
        %v2252 = vunpack.c.l.b16 %v2193
        %v2253 = vunpack.c.h.b16 %v2193
        %v2254 = vpack.c.b16 %v2224, %v2222
        %v2255 = vpack.c.b16 %v2225, %v2223
        %v2256 = vpack.c.b16 %v2228, %v2226
        %v2257 = vpack.c.b16 %v2229, %v2227
        %v2258 = vpack.c.b16 %v2232, %v2230
        %v2259 = vpack.c.b16 %v2233, %v2231
        %v2260 = vpack.c.b16 %v2236, %v2234
        %v2261 = vpack.c.b16 %v2237, %v2235
        %v2262 = vpack.c.b16 %v2240, %v2238
        %v2263 = vpack.c.b16 %v2241, %v2239
        %v2264 = vpack.c.b16 %v2244, %v2242
        %v2265 = vpack.c.b16 %v2245, %v2243
        %v2266 = vpack.c.b16 %v2248, %v2246
        %v2267 = vpack.c.b16 %v2249, %v2247
        %v2268 = vpack.c.b16 %v2252, %v2250
        %v2269 = vpack.c.b16 %v2253, %v2251
        %2286 = vmatprep.subr.bf16.mxu0 %v2255
        %2287 = vmatpush1.bf16.msra.mxu0 %v2254
        %2288 = vmatprep.subr.bf16.mxu0 %v2257
        %2289 = vmatpush1.bf16.msra.mxu0 %v2256
        %2290 = vmatprep.subr.bf16.mxu0 %v2259
        %2291 = vmatpush1.bf16.msra.mxu0 %v2258
        %2292 = vmatprep.subr.bf16.mxu0 %v2261
        %2293 = vmatpush1.bf16.msra.mxu0 %v2260
        %2294 = vmatprep.subr.bf16.mxu0 %v2263
        %2295 = vmatpush1.bf16.msra.mxu0 %v2262
        %2296 = vmatprep.subr.bf16.mxu0 %v2265
        %2297 = vmatpush1.bf16.msra.mxu0 %v2264
        %2298 = vmatprep.subr.bf16.mxu0 %v2267
        %2299 = vmatpush1.bf16.msra.mxu0 %v2266
        %2300 = vmatprep.subr.bf16.mxu0 %v2269
        %2301 = vmatpush1.bf16.msra.mxu0 %v2268
        %2302 = vmatprep.subr.bf16.mxu0 0
        %2303 = vmatpush1.bf16.msra.mxu0 0
        %2304 = vmatprep.subr.bf16.mxu0 0
        %2305 = vmatpush1.bf16.msra.mxu0 0
        %2306 = vmatprep.subr.bf16.mxu0 0
        %2307 = vmatpush1.bf16.msra.mxu0 0
        %2308 = vmatprep.subr.bf16.mxu0 0
        %2309 = vmatpush1.bf16.msra.mxu0 0
        %2310 = vmatprep.subr.bf16.mxu0 0
        %2311 = vmatpush1.bf16.msra.mxu0 0
        %2312 = vmatprep.subr.bf16.mxu0 0
        %2313 = vmatpush1.bf16.msra.mxu0 0
        %2314 = vmatprep.subr.bf16.mxu0 0
        %2315 = vmatpush1.bf16.msra.mxu0 0
        %2316 = vmatprep.subr.bf16.mxu0 0
        %2317 = vmatpush1.bf16.msra.mxu0 0
        %2318 = vmatprep.mubr.bf16.mxu0 0
        %2319 = vmatmul.mubr.bf16.gmra.mrb[0].mxu0 %v2177
        %v2320 = vpop.f32.mrb[0].mxu0
        %v2321 = vadd.f32 %v2199, %v2320
        %v2322 = vpop.f32.mrb[0].mxu0
        %v2323 = vadd.f32 %v2203, %v2322
        %v2324 = vpop.f32.mrb[0].mxu0
        %v2325 = vadd.f32 %v2199, %v2324
        %v2326 = vpop.f32.mrb[0].mxu0
        %v2327 = vadd.f32 %v2203, %v2326
        %2328 = vdwg.mxu0
        %v2329 = vmul.f32 %v2321, %v2321
        %v2330 = vmul.f32 %v2323, %v2323
        %v2331 = vmul.f32 %v2325, %v2325
        %v2332 = vmul.f32 %v2327, %v2327
        %v2333 = vmul.f32 %v2321, %v2329
        %v2334 = vmul.f32 %v2323, %v2330
        %v2335 = vmul.f32 %v2325, %v2331
        %v2336 = vmul.f32 %v2327, %v2332
        %v2337 = vmul.f32 %v2333, 0.044715
        %v2338 = vmul.f32 %v2334, 0.044715
        %v2339 = vmul.f32 %v2335, 0.044715
        %v2340 = vmul.f32 %v2336, 0.044715
        %v2341 = vadd.f32 %v2321, %v2337
        %v2342 = vadd.f32 %v2323, %v2338
        %v2343 = vadd.f32 %v2325, %v2339
        %v2344 = vadd.f32 %v2327, %v2340
        %v2345 = vmul.f32 %v2341, 0.7978846
        %v2346 = vmul.f32 %v2342, 0.7978846
        %v2347 = vmul.f32 %v2343, 0.7978846
        %v2348 = vmul.f32 %v2344, 0.7978846
        %v2349 = vtanh.pop %v2345
        %v2350 = vtanh.pop %v2346
        %v2351 = vtanh.pop %v2347
        %v2352 = vtanh.pop %v2348
        %v2353 = vadd.f32 %v2349, 1.0
        %v2354 = vadd.f32 %v2350, 1.0
        %v2355 = vadd.f32 %v2351, 1.0
        %v2356 = vadd.f32 %v2352, 1.0
        %v2357 = vmul.f32 %v2353, 0.5
        %v2358 = vmul.f32 %v2354, 0.5
        %v2359 = vmul.f32 %v2355, 0.5
        %v2360 = vmul.f32 %v2356, 0.5
        %v2361 = vmul.f32 %v2321, %v2357
        %v2362 = vmul.f32 %v2323, %v2358
        %v2363 = vmul.f32 %v2325, %v2359
        %v2364 = vmul.f32 %v2327, %v2360
        %v2365 = vpack.c.bf16 %v2363, %v2361
        %v2366 = vpack.c.bf16 %v2364, %v2362
        %v2367 = vld [vmem:[%s662] sm:$0xf]
        %v2368 = vld [vmem:[%s662 + $0x4] sm:$0xf]
        %v2369 = vld [vmem:[%s662 + $0x8] sm:$0xf]
        %v2370 = vld [vmem:[%s662 + $0xc] sm:$0xf]
        %v2371 = vld [vmem:[%s662 + $0x10] sm:$0xf]
        %v2372 = vld [vmem:[%s662 + $0x14] sm:$0xf]
        %v2373 = vld [vmem:[%s662 + $0x18] sm:$0xf]
        %v2374 = vld [vmem:[%s662 + $0x1c] sm:$0xf]
        %v2375 = vld [vmem:[%s662 + $0x20] sm:$0xf]
        %v2376 = vld [vmem:[%s662 + $0x24] sm:$0xf]
        %v2377 = vld [vmem:[%s662 + $0x28] sm:$0xf]
        %v2378 = vld [vmem:[%s662 + $0x2c] sm:$0xf]
        %v2379 = vld [vmem:[%s662 + $0x30] sm:$0xf]
        %v2380 = vld [vmem:[%s662 + $0x34] sm:$0xf]
        %v2381 = vld [vmem:[%s662 + $0x38] sm:$0xf]
        %v2382 = vld [vmem:[%s662 + $0x3c] sm:$0xf]
        %v2383 = vld [vmem:[%s662 + $0x40] sm:$0xf]
        %v2384 = vld [vmem:[%s662 + $0x44] sm:$0xf]
        %v2385 = vld [vmem:[%s662 + $0x48] sm:$0xf]
        %v2386 = vld [vmem:[%s662 + $0x4c] sm:$0xf]
        %v2387 = vld [vmem:[%s662 + $0x50] sm:$0xf]
        %v2388 = vld [vmem:[%s662 + $0x54] sm:$0xf]
        %v2389 = vld [vmem:[%s662 + $0x58] sm:$0xf]
        %v2390 = vld [vmem:[%s662 + $0x5c] sm:$0xf]
        %v2391 = vld [vmem:[%s662 + $0x60] sm:$0xf]
        %v2392 = vld [vmem:[%s662 + $0x64] sm:$0xf]
        %v2393 = vld [vmem:[%s662 + $0x68] sm:$0xf]
        %v2394 = vld [vmem:[%s662 + $0x6c] sm:$0xf]
        %v2395 = vld [vmem:[%s662 + $0x70] sm:$0xf]
        %v2396 = vld [vmem:[%s662 + $0x74] sm:$0xf]
        %v2397 = vld [vmem:[%s662 + $0x78] sm:$0xf]
        %v2398 = vld [vmem:[%s662 + $0x7c] sm:$0xf]
        %v2399 = vld [vmem:[%s777] sm:$0x1]
        %v2401 = vlaneseq
        %v2402 = vshrl.u32 %v2401, 7
        %v2403 = vsub.s32 0, %v2402
        %v2404 = vrot.slane %v2399, %v2403
        %v2438 = vunpack.c.l.b16 %v2367
        %v2439 = vunpack.c.l.b16 %v2368
        %v2440 = vunpack.c.l.b16 %v2369
        %v2441 = vunpack.c.l.b16 %v2370
        %v2442 = vunpack.c.l.b16 %v2371
        %v2443 = vunpack.c.l.b16 %v2372
        %v2444 = vunpack.c.l.b16 %v2373
        %v2445 = vunpack.c.l.b16 %v2374
        %v2446 = vunpack.c.l.b16 %v2375
        %v2447 = vunpack.c.l.b16 %v2376
        %v2448 = vunpack.c.l.b16 %v2377
        %v2449 = vunpack.c.l.b16 %v2378
        %v2450 = vunpack.c.l.b16 %v2379
        %v2451 = vunpack.c.l.b16 %v2380
        %v2452 = vunpack.c.l.b16 %v2381
        %v2453 = vunpack.c.l.b16 %v2382
        %v2454 = vunpack.c.l.b16 %v2383
        %v2455 = vunpack.c.l.b16 %v2384
        %v2456 = vunpack.c.l.b16 %v2385
        %v2457 = vunpack.c.l.b16 %v2386
        %v2458 = vunpack.c.l.b16 %v2387
        %v2459 = vunpack.c.l.b16 %v2388
        %v2460 = vunpack.c.l.b16 %v2389
        %v2461 = vunpack.c.l.b16 %v2390
        %v2462 = vunpack.c.l.b16 %v2391
        %v2463 = vunpack.c.l.b16 %v2392
        %v2464 = vunpack.c.l.b16 %v2393
        %v2465 = vunpack.c.l.b16 %v2394
        %v2466 = vunpack.c.l.b16 %v2395
        %v2467 = vunpack.c.l.b16 %v2396
        %v2468 = vunpack.c.l.b16 %v2397
        %v2469 = vunpack.c.l.b16 %v2398
        %v2470 = vpack.c.b16 %v2439, %v2438
        %v2471 = vpack.c.b16 %v2441, %v2440
        %v2472 = vpack.c.b16 %v2443, %v2442
        %v2473 = vpack.c.b16 %v2445, %v2444
        %v2474 = vpack.c.b16 %v2447, %v2446
        %v2475 = vpack.c.b16 %v2449, %v2448
        %v2476 = vpack.c.b16 %v2451, %v2450
        %v2477 = vpack.c.b16 %v2453, %v2452
        %v2478 = vpack.c.b16 %v2455, %v2454
        %v2479 = vpack.c.b16 %v2457, %v2456
        %v2480 = vpack.c.b16 %v2459, %v2458
        %v2481 = vpack.c.b16 %v2461, %v2460
        %v2482 = vpack.c.b16 %v2463, %v2462
        %v2483 = vpack.c.b16 %v2465, %v2464
        %v2484 = vpack.c.b16 %v2467, %v2466
        %v2485 = vpack.c.b16 %v2469, %v2468
        %2502 = vmatprep.subr.bf16.mxu0 0
        %2503 = vmatpush1.bf16.msra.mxu0 %v2470
        %2504 = vmatprep.subr.bf16.mxu0 0
        %2505 = vmatpush1.bf16.msra.mxu0 %v2471
        %2506 = vmatprep.subr.bf16.mxu0 0
        %2507 = vmatpush1.bf16.msra.mxu0 %v2472
        %2508 = vmatprep.subr.bf16.mxu0 0
        %2509 = vmatpush1.bf16.msra.mxu0 %v2473
        %2510 = vmatprep.subr.bf16.mxu0 0
        %2511 = vmatpush1.bf16.msra.mxu0 %v2474
        %2512 = vmatprep.subr.bf16.mxu0 0
        %2513 = vmatpush1.bf16.msra.mxu0 %v2475
        %2514 = vmatprep.subr.bf16.mxu0 0
        %2515 = vmatpush1.bf16.msra.mxu0 %v2476
        %2516 = vmatprep.subr.bf16.mxu0 0
        %2517 = vmatpush1.bf16.msra.mxu0 %v2477
        %2518 = vmatprep.subr.bf16.mxu0 0
        %2519 = vmatpush1.bf16.msra.mxu0 %v2478
        %2520 = vmatprep.subr.bf16.mxu0 0
        %2521 = vmatpush1.bf16.msra.mxu0 %v2479
        %2522 = vmatprep.subr.bf16.mxu0 0
        %2523 = vmatpush1.bf16.msra.mxu0 %v2480
        %2524 = vmatprep.subr.bf16.mxu0 0
        %2525 = vmatpush1.bf16.msra.mxu0 %v2481
        %2526 = vmatprep.subr.bf16.mxu0 0
        %2527 = vmatpush1.bf16.msra.mxu0 %v2482
        %2528 = vmatprep.subr.bf16.mxu0 0
        %2529 = vmatpush1.bf16.msra.mxu0 %v2483
        %2530 = vmatprep.subr.bf16.mxu0 0
        %2531 = vmatpush1.bf16.msra.mxu0 %v2484
        %2532 = vmatprep.subr.bf16.mxu0 0
        %2533 = vmatpush1.bf16.msra.mxu0 %v2485
        %2534 = vmatprep.mubr.bf16.mxu0 %v2366
        %2535 = vmatmul.mubr.bf16.gmra.mrb[0].mxu0 %v2365
        %v2536 = vpop.f32.mrb[0].mxu0
        %v2537 = vadd.f32 %v2404, %v2536
        %v2538 = vpop.f32.mrb[0].mxu0
        %v2539 = vpop.f32.mrb[0].mxu0
        %v2540 = vadd.f32 %v2404, %v2539
        %v2541 = vpop.f32.mrb[0].mxu0
        %2542 = vdwg.mxu0
        %v2543 = vadd.f32 %v2537, %v2175
        %v2544 = vadd.f32 %v2540, %v2176
        %v2545 = vld [vmem:[%s780] sm:$0x1]
        %v2546 = vld [vmem:[%s783] sm:$0x1]
        %2547 = vadd.xlane.f32.xlu0 %v2543
        %v2548 = vpop.xlane.xlu0 %2547
        %2549 = vadd.xlane.f32.xlu0 %v2544
        %v2550 = vpop.xlane.xlu0 %2549
        %v2551 = vmul.f32 %v2548, %v2142
        %v2552 = vmul.f32 %v2550, %v2142
        %v2553 = vsub.f32 %v2543, %v2551
        %v2554 = vsub.f32 %v2544, %v2552
        %v2555 = vmul.f32 %v2553, %v2553
        %v2556 = vmul.f32 %v2554, %v2554
        %2557 = vadd.xlane.f32.xlu0 %v2555
        %v2558 = vpop.xlane.xlu0 %2557
        %2559 = vadd.xlane.f32.xlu0 %v2556
        %v2560 = vpop.xlane.xlu0 %2559
        %v2561 = vmul.f32 %v2558, %v2142
        %v2562 = vmul.f32 %v2560, %v2142
        %v2563 = vadd.f32 %v2561, 1e-12
        %v2564 = vadd.f32 %v2562, 1e-12
        %v2565 = vrsqrt.pop %v2563
        %v2566 = vrsqrt.pop %v2564
        %v2567 = vmul.f32 %v2553, %v2565
        %v2568 = vmul.f32 %v2554, %v2566
        %v2570 = vlaneseq
        %v2571 = vshrl.u32 %v2570, 7
        %v2572 = vsub.s32 0, %v2571
        %v2573 = vrot.slane %v2545, %v2572
        %v2575 = vmul.f32 %v2567, %v2573
        %v2576 = vmul.f32 %v2568, %v2573
        %v2578 = vlaneseq
        %v2579 = vshrl.u32 %v2578, 7
        %v2580 = vsub.s32 0, %v2579
        %v2581 = vrot.slane %v2546, %v2580
        %v2583 = vadd.f32 %v2575, %v2581
        %v2584 = vadd.f32 %v2576, %v2581
        %2585 = vst [vmem:[#allocation2] sm:$0xff] %v2583
        %2586 = vst [vmem:[#allocation2 + $0x8] sm:$0xff] %v2584
        %p2587 = scmp.eq.s32.totalorder %s35, 1
        // Predicated region
        $region109: #{torch_model_forward.1} parent=87 // pred_check
          %p2588 = pneg %p2587
        $region110: #{torch_model_forward.1} parent=87 // pred_check_branch
          %2590 = sbr.rel (%p2588) target = $region112
        $region111: #{torch_model_forward.1} parent=87 // pred_region
          %v2591 = vpack.c.bf16 %v2584, %v2583
          %v2592 = vld [vmem:[#allocation8] sm:$0xf]
          %v2593 = vld [vmem:[#allocation8 + $0x4] sm:$0xf]
          %v2594 = vld [vmem:[#allocation8 + $0x8] sm:$0xf]
          %v2595 = vld [vmem:[#allocation8 + $0xc] sm:$0xf]
          %v2596 = vld [vmem:[#allocation8 + $0x10] sm:$0xf]
          %v2597 = vld [vmem:[#allocation8 + $0x14] sm:$0xf]
          %v2598 = vld [vmem:[#allocation8 + $0x18] sm:$0xf]
          %v2599 = vld [vmem:[#allocation8 + $0x1c] sm:$0xf]
          %v2600 = vld [vmem:[#allocation8 + $0x20] sm:$0xf]
          %v2601 = vld [vmem:[#allocation8 + $0x24] sm:$0xf]
          %v2602 = vld [vmem:[#allocation8 + $0x28] sm:$0xf]
          %v2603 = vld [vmem:[#allocation8 + $0x2c] sm:$0xf]
          %v2604 = vld [vmem:[#allocation8 + $0x30] sm:$0xf]
          %v2605 = vld [vmem:[#allocation8 + $0x34] sm:$0xf]
          %v2606 = vld [vmem:[#allocation8 + $0x38] sm:$0xf]
          %v2607 = vld [vmem:[#allocation8 + $0x3c] sm:$0xf]
          %v2608 = vld [vmem:[%s16] sm:$0x1]
          %v2610 = vlaneseq
          %v2611 = vshrl.u32 %v2610, 7
          %v2612 = vsub.s32 0, %v2611
          %v2613 = vrot.slane %v2608, %v2612
          %v2631 = vunpack.c.l.b16 %v2592
          %v2632 = vunpack.c.l.b16 %v2593
          %v2633 = vunpack.c.l.b16 %v2594
          %v2634 = vunpack.c.l.b16 %v2595
          %v2635 = vunpack.c.l.b16 %v2596
          %v2636 = vunpack.c.l.b16 %v2597
          %v2637 = vunpack.c.l.b16 %v2598
          %v2638 = vunpack.c.l.b16 %v2599
          %v2639 = vunpack.c.l.b16 %v2600
          %v2640 = vunpack.c.l.b16 %v2601
          %v2641 = vunpack.c.l.b16 %v2602
          %v2642 = vunpack.c.l.b16 %v2603
          %v2643 = vunpack.c.l.b16 %v2604
          %v2644 = vunpack.c.l.b16 %v2605
          %v2645 = vunpack.c.l.b16 %v2606
          %v2646 = vunpack.c.l.b16 %v2607
          %v2647 = vpack.c.b16 %v2632, %v2631
          %v2648 = vpack.c.b16 %v2634, %v2633
          %v2649 = vpack.c.b16 %v2636, %v2635
          %v2650 = vpack.c.b16 %v2638, %v2637
          %v2651 = vpack.c.b16 %v2640, %v2639
          %v2652 = vpack.c.b16 %v2642, %v2641
          %v2653 = vpack.c.b16 %v2644, %v2643
          %v2654 = vpack.c.b16 %v2646, %v2645
          %2663 = vmatprep.subr.bf16.mxu0 0
          %2664 = vmatpush1.bf16.msra.mxu0 %v2647
          %2665 = vmatprep.subr.bf16.mxu0 0
          %2666 = vmatpush1.bf16.msra.mxu0 %v2648
          %2667 = vmatprep.subr.bf16.mxu0 0
          %2668 = vmatpush1.bf16.msra.mxu0 %v2649
          %2669 = vmatprep.subr.bf16.mxu0 0
          %2670 = vmatpush1.bf16.msra.mxu0 %v2650
          %2671 = vmatprep.subr.bf16.mxu0 0
          %2672 = vmatpush1.bf16.msra.mxu0 %v2651
          %2673 = vmatprep.subr.bf16.mxu0 0
          %2674 = vmatpush1.bf16.msra.mxu0 %v2652
          %2675 = vmatprep.subr.bf16.mxu0 0
          %2676 = vmatpush1.bf16.msra.mxu0 %v2653
          %2677 = vmatprep.subr.bf16.mxu0 0
          %2678 = vmatpush1.bf16.msra.mxu0 %v2654
          %2679 = vmatprep.subr.bf16.mxu0 0
          %2680 = vmatpush1.bf16.msra.mxu0 0
          %2681 = vmatprep.subr.bf16.mxu0 0
          %2682 = vmatpush1.bf16.msra.mxu0 0
          %2683 = vmatprep.subr.bf16.mxu0 0
          %2684 = vmatpush1.bf16.msra.mxu0 0
          %2685 = vmatprep.subr.bf16.mxu0 0
          %2686 = vmatpush1.bf16.msra.mxu0 0
          %2687 = vmatprep.subr.bf16.mxu0 0
          %2688 = vmatpush1.bf16.msra.mxu0 0
          %2689 = vmatprep.subr.bf16.mxu0 0
          %2690 = vmatpush1.bf16.msra.mxu0 0
          %2691 = vmatprep.subr.bf16.mxu0 0
          %2692 = vmatpush1.bf16.msra.mxu0 0
          %2693 = vmatprep.subr.bf16.mxu0 0
          %2694 = vmatpush1.bf16.msra.mxu0 0
          %2695 = vmatprep.mubr.bf16.mxu0 0
          %2696 = vmatmul.mubr.bf16.gmra.mrb[0].mxu0 %v2591
          %v2697 = vpop.f32.mrb[0].mxu0
          %v2698 = vadd.f32 %v2613, %v2697
          %v2699 = vpop.f32.mrb[0].mxu0
          %v2700 = vpop.f32.mrb[0].mxu0
          %v2701 = vadd.f32 %v2613, %v2700
          %v2702 = vpop.f32.mrb[0].mxu0
          %2703 = vdwg.mxu0
          %2704 = vst [vmem:[%s17] sm:$0xff] %v2698
          %2705 = vst [vmem:[%s17 + $0x8] sm:$0xff] %v2701
        $region112: #{torch_model_forward.1} parent=87 // pred_fallthru
          _
        // Predicated region
        $region113: #{torch_model_forward.1} parent=87 // pred_check
          %p2706 = pneg %p465
        $region114: #{torch_model_forward.1} parent=87 // pred_check_branch
          %2708 = sbr.rel (%p2706) target = $region116
        $region115: #{torch_model_forward.1} parent=87 // pred_region
          _
        $region116: #{torch_model_forward.1} parent=87 // pred_fallthru
          _
        // Predicated region
        $region117: #{torch_model_forward.1} parent=87 // pred_check
          %p2709 = pneg %p465
        $region118: #{torch_model_forward.1} parent=87 // pred_check_branch
          %2711 = sbr.rel (%p2709) target = $region120
        $region119: #{torch_model_forward.1} parent=87 // pred_region
          _
        $region120: #{torch_model_forward.1} parent=87 // pred_fallthru
          _
      $region88: #{torch_model_forward.1} parent=5 // pred_fallthru
        _
      %p2712 = scmp.le.s32.totalorder 2, %s30
      // Predicated region
      $region121: #{torch_model_forward.1} parent=5 // pred_check
        %p2713 = pneg %p2712
      $region122: #{torch_model_forward.1} parent=5 // pred_check_branch
        %2715 = sbr.rel (%p2713) target = $region124
      $region123: #{torch_model_forward.1} parent=5 // pred_region
        %s2716 = ssub.s32 %s30, 2
      $region124: #{torch_model_forward.1} parent=5 // pred_fallthru
        _
    $region6: #{torch_model_forward.1} parent=1 // loop_footer
      %s34 = sadd.s32 1, %s30
    $region7: #{torch_model_forward.1} parent=1 // loop_footer_branch
      %29 = sbr.rel target = $region3
    $region8: #{torch_model_forward.1} parent=1 // loop_exit
      _
    %2717 = vsyncpa [#allocation4], 1
    %s2718 = scalar_lea.sflag [#allocation4], 1
    %2719 = vsyncpa %s2718, 1
    %2720 = vsyncpa [#allocation6], 1
    %s2721 = scalar_lea.sflag [#allocation6], 1
    %2722 = vsyncpa %s2721, 1
    %2723 = vsyncpa [#allocation9], 1

</llo_original>
